<compile_context>
chip_gen: v6e
topology: v6e:2x2x1
jax: 0.10.0
libtpu: 0.0.40
codegen_flags: <defaults>
</compile_context>

<pallas_src>
import math
import functools

import jax
import jax.numpy as jnp
from jax.experimental import pallas as pl
from jax.experimental.pallas import tpu as pltpu


# ----------------------------- in-kernel helpers -----------------------------

def _layer_norm(x, w, b, eps=1e-6):
    # x: [R, D] f32, w/b: [1, D] f32   (eps=1e-6 matches the signjoey module)
    mean = jnp.mean(x, axis=-1, keepdims=True)
    var = jnp.mean(jnp.square(x - mean), axis=-1, keepdims=True)
    return (x - mean) * jax.lax.rsqrt(var + eps) * w + b


def _mha_core(q, kv_scr, mask, w_o_ref, b_o_ref, q3_scr, ctx_scr,
              num_heads, head_size):
    """Head-batched attention core for one batch element / one query block.

    q:       [TQ, D] f32 (already projected, bias added)
    kv_scr:  VMEM (2, H, S, hs) bf16 — K/V already projected + head-split (hoisted)
    mask:    [TQ, S] bool (True = keep)
    w_o_ref: [D, D] bf16 output-projection weight ref, b_o_ref: [1, D] f32 ref
    q3_scr:  VMEM (H, TQ, hs) bf16 scratch
    ctx_scr: VMEM (TQ, D) f32 head-merge scratch
    """
    H, hs = num_heads, head_size
    scale = 1.0 / math.sqrt(hs)

    qs = q * scale  # scale in f32 before the bf16 cast (matches q / sqrt(hs))
    # Split query heads with static lane slices into a head-major scratch buffer.
    for h in range(H):
        q3_scr[h] = qs[:, h * hs:(h + 1) * hs].astype(jnp.bfloat16)

    q3 = q3_scr[...]      # [H, TQ, hs] bf16
    k3 = kv_scr[0]        # [H, S,  hs] bf16
    v3 = kv_scr[1]        # [H, S,  hs] bf16

    # Scores: batched over heads, contraction over head_size — no explicit K^T.
    s = jax.lax.dot_general(q3, k3,
                            dimension_numbers=(((2,), (2,)), ((0,), (0,))),
                            preferred_element_type=jnp.float32)   # [H, TQ, S] f32
    s = jnp.where(mask[None, :, :], s, jnp.float32(-1e30))

    # Online-softmax statistics in f32; exponentials in bf16 (EUP bf16 on v6e/v7x).
    m = jnp.max(s, axis=-1, keepdims=True)
    e = jnp.exp((s - m).astype(jnp.bfloat16))                     # [H, TQ, S] bf16
    denom = jnp.sum(e, axis=-1, keepdims=True, dtype=jnp.float32)  # [H, TQ, 1] f32

    # Deferred normalization: AV with unnormalized weights, scale the context.
    ctx3 = jax.lax.dot_general(e, v3,
                               dimension_numbers=(((2,), (1,)), ((0,), (0,))),
                               preferred_element_type=jnp.float32)  # [H, TQ, hs]
    ctx3 = ctx3 * pl.reciprocal(denom, approx=True)

    # Merge heads along lanes into one [TQ, D] slab, then ONE D-wide projection.
    for h in range(H):
        ctx_scr[:, h * hs:(h + 1) * hs] = ctx3[h]
    ctx = ctx_scr[...].astype(jnp.bfloat16)
    return jnp.dot(ctx, w_o_ref[...],
                   preferred_element_type=jnp.float32) + b_o_ref[...]


# --------------------------------- kernel ------------------------------------

def decoder_layer_kernel(
    lens_ref,                                 # SMEM [B, 2]: (trg_len, src_len)
    x_ref, mem_ref,                           # bf16 activations
    ln_w_ref, ln_b_ref,                       # [3, D] f32 (x / dec / ffn layernorms)
    w_sq_ref, b_sq_ref, w_skv_ref, b_skv_ref, w_so_ref, b_so_ref,
    w_cq_ref, b_cq_ref, w_ckv_ref, b_ckv_ref, w_co_ref, b_co_ref,
    w_ff1_ref, b_ff1_ref, w_ff2_ref, b_ff2_ref,
    out_ref,
    xn_scr, kvs_scr, kvc_scr, q3_scr, ctx_scr,
    *, num_heads, head_size, block_q):
    H, hs, TQ = num_heads, head_size, block_q
    D = H * hs
    T = x_ref.shape[1]
    M = mem_ref.shape[1]

    b = pl.program_id(0)
    qi = pl.program_id(1)
    q0 = pl.multiple_of(qi * TQ, TQ)
    trg_len = lens_ref[b, 0]
    src_len = lens_ref[b, 1]

    # ------------- per-batch prologue (hoisted out of the qi axis) -------------
    @pl.when(qi == 0)
    def _prologue():
        x_full = x_ref[0].astype(jnp.float32)                           # [T, D]
        xn = _layer_norm(x_full, ln_w_ref[0:1, :], ln_b_ref[0:1, :])
        xn_bf = xn.astype(jnp.bfloat16)
        xn_scr[...] = xn_bf

        # Self-attention K/V projection (once per batch).
        kv_s = (jnp.dot(xn_bf, w_skv_ref[...],
                        preferred_element_type=jnp.float32)
                + b_skv_ref[...])                                       # [T, 2D] f32
        # Cross-attention K/V projection from raw memory (once per batch).
        kv_c = (jnp.dot(mem_ref[0], w_ckv_ref[...],
                        preferred_element_type=jnp.float32)
                + b_ckv_ref[...])                                       # [M, 2D] f32

        # Head-split into head-major bf16 scratch (static lane slices).
        for h in range(H):
            lo, hi = h * hs, (h + 1) * hs
            kvs_scr[0, h] = kv_s[:, lo:hi].astype(jnp.bfloat16)
            kvs_scr[1, h] = kv_s[:, D + lo:D + hi].astype(jnp.bfloat16)
            kvc_scr[0, h] = kv_c[:, lo:hi].astype(jnp.bfloat16)
            kvc_scr[1, h] = kv_c[:, D + lo:D + hi].astype(jnp.bfloat16)

    # ---------------------- per query-block body -------------------------------
    x_blk = x_ref[0, pl.ds(q0, TQ), :].astype(jnp.float32)              # [TQ, D]
    xn_blk = xn_scr[pl.ds(q0, TQ), :]                                   # [TQ, D] bf16

    # ---------------- self-attention (pre-LN) ----------------
    q_s = (jnp.dot(xn_blk, w_sq_ref[...],
                   preferred_element_type=jnp.float32) + b_sq_ref[...])  # [TQ, D]

    # causal + target-padding mask, built in-kernel (no O(T^2) mask DMA)
    rows = q0 + jax.lax.broadcasted_iota(jnp.int32, (TQ, T), 0)
    cols = jax.lax.broadcasted_iota(jnp.int32, (TQ, T), 1)
    self_mask = (cols <= rows) & (cols < trg_len)

    a1 = _mha_core(q_s, kvs_scr, self_mask, w_so_ref, b_so_ref,
                   q3_scr, ctx_scr, H, hs)
    h1 = a1 + x_blk                                             # dropout = identity

    # ---------------- source (cross) attention ----------------
    h1n = _layer_norm(h1, ln_w_ref[1:2, :], ln_b_ref[1:2, :])
    q_c = (jnp.dot(h1n.astype(jnp.bfloat16), w_cq_ref[...],
                   preferred_element_type=jnp.float32) + b_cq_ref[...])  # [TQ, D]

    ccols = jax.lax.broadcasted_iota(jnp.int32, (TQ, M), 1)
    cross_mask = ccols < src_len

    a2 = _mha_core(q_c, kvc_scr, cross_mask, w_co_ref, b_co_ref,
                   q3_scr, ctx_scr, H, hs)
    h2 = a2 + h1                                                # dropout = identity

    # ---------------- position-wise feed-forward ----------------
    ffn_in = _layer_norm(h2, ln_w_ref[2:3, :], ln_b_ref[2:3, :])
    hid = jnp.maximum(
        jnp.dot(ffn_in.astype(jnp.bfloat16), w_ff1_ref[...],
                preferred_element_type=jnp.float32) + b_ff1_ref[...], 0.0)
    o = (jnp.dot(hid.astype(jnp.bfloat16), w_ff2_ref[...],
                 preferred_element_type=jnp.float32) + b_ff2_ref[...])
    out_ref[0] = (o + h2).astype(out_ref.dtype)


# ------------------------------- host wrapper ---------------------------------

def _pack_params(params):
    """Pack the 26 raw module params into separate bf16/f32 slabs."""
    (xln_w, xln_b,
     s_qw, s_qb, s_kw, s_kb, s_vw, s_vb, s_ow, s_ob,
     dln_w, dln_b,
     c_qw, c_qb, c_kw, c_kb, c_vw, c_vb, c_ow, c_ob,
     fln_w, fln_b, ff1_w, ff1_b, ff2_w, ff2_b) = params
    bf = jnp.bfloat16
    return [
        jnp.concatenate([xln_w, dln_w, fln_w], axis=0),          # ln_w  [3, D] f32
        jnp.concatenate([xln_b, dln_b, fln_b], axis=0),          # ln_b  [3, D] f32
        s_qw.astype(bf), s_qb,                                   # self Q proj
        jnp.concatenate([s_kw, s_vw], axis=1).astype(bf),        # self KV [D, 2D]
        jnp.concatenate([s_kb, s_vb], axis=1),                   # self KV bias f32
        s_ow.astype(bf), s_ob,                                   # self out proj
        c_qw.astype(bf), c_qb,                                   # cross Q proj
        jnp.concatenate([c_kw, c_vw], axis=1).astype(bf),        # cross KV [D, 2D]
        jnp.concatenate([c_kb, c_vb], axis=1),                   # cross KV bias f32
        c_ow.astype(bf), c_ob,                                   # cross out proj
        ff1_w.astype(bf), ff1_b,                                 # ffn 1
        ff2_w.astype(bf), ff2_b,                                 # ffn 2
    ]


def transformer_decoder_layer(x, memory, lengths, params, num_heads,
                              block_q=None):
    """x: [B,T,D] f32, memory: [B,M,D] f32, lengths: [B,2] int32 (trg_len, src_len)."""
    B, T, D = x.shape
    M = memory.shape[1]
    assert D % num_heads == 0
    head_size = D // num_heads
    if block_q is None:
        block_q = next((c for c in (256, 128, 64, 32, 16, 8) if T % c == 0), T)
    assert T % block_q == 0
    n_q = T // block_q
    FF = params[22].shape[1]

    packed = _pack_params(params)
    x_bf = x.astype(jnp.bfloat16)
    mem_bf = memory.astype(jnp.bfloat16)
    lens = lengths.astype(jnp.int32)

    kernel = functools.partial(decoder_layer_kernel,
                               num_heads=num_heads, head_size=head_size,
                               block_q=block_q)

    # Weights have constant index maps -> fetched once (never re-DMA'd across steps).
    def const_spec(p):
        n = p.ndim
        return pl.BlockSpec(p.shape, lambda b, qi, lens_ref, n=n: (0,) * n)

    in_specs = [
        pl.BlockSpec((1, T, D), lambda b, qi, lens_ref: (b, 0, 0)),   # x (full rows)
        pl.BlockSpec((1, M, D), lambda b, qi, lens_ref: (b, 0, 0)),   # memory
    ] + [const_spec(p) for p in packed]

    grid_spec = pltpu.PrefetchScalarGridSpec(
        num_scalar_prefetch=1,
        grid=(B, n_q),
        in_specs=in_specs,
        out_specs=pl.BlockSpec((1, block_q, D),
                               lambda b, qi, lens_ref: (b, qi, 0)),
        scratch_shapes=[
            pltpu.VMEM((T, D), jnp.bfloat16),                              # LN(x) rows
            pltpu.VMEM((2, num_heads, T, head_size), jnp.bfloat16),        # self K/V
            pltpu.VMEM((2, num_heads, M, head_size), jnp.bfloat16),        # cross K/V
            pltpu.VMEM((num_heads, block_q, head_size), jnp.bfloat16),     # q heads
            pltpu.VMEM((block_q, D), jnp.float32),                         # ctx merge
        ],
    )

    # Advisory cost estimate (matches the hoisted, once-per-batch KV projections).
    flops = 2 * B * (2 * T * D * D            # self q + out projections
                     + 2 * T * D * D          # self k/v projections (once per batch)
                     + 2 * T * T * D          # self scores + AV
                     + 2 * T * D * D          # cross q + out projections
                     + 2 * M * D * D          # cross k/v projections (once per batch)
                     + 2 * T * M * D          # cross scores + AV
                     + 2 * T * D * FF)        # feed-forward
    transcendentals = B * num_heads * (T * T + T * M)
    bytes_accessed = int(sum(int(a.size) * a.dtype.itemsize
                             for a in [x_bf, mem_bf] + packed)
                         + B * T * D * 4 + int(lens.size) * 4)

    return pl.pallas_call(
        kernel,
        out_shape=jax.ShapeDtypeStruct((B, T, D), jnp.float32),
        grid_spec=grid_spec,
        compiler_params=pltpu.CompilerParams(
            # b is megacore-parallel; qi must be "arbitrary" so the qi==0 prologue
            # and persistent scratch are valid across query blocks of one batch.
            dimension_semantics=("parallel", "arbitrary"),
            vmem_limit_bytes=64 * 1024 * 1024),
        cost_estimate=pl.CostEstimate(flops=int(flops),
                                      transcendentals=int(transcendentals),
                                      bytes_accessed=bytes_accessed),
    )(lens, x_bf, mem_bf, *packed)


# --------------------------- pure-JAX reference --------------------------------

def reference_decoder_layer(x, memory, trg_mask, src_mask, params, num_heads):
    (xln_w, xln_b,
     s_qw, s_qb, s_kw, s_kb, s_vw, s_vb, s_ow, s_ob,
     dln_w, dln_b,
     c_qw, c_qb, c_kw, c_kb, c_vw, c_vb, c_ow, c_ob,
     fln_w, fln_b, ff1_w, ff1_b, ff2_w, ff2_b) = params

    def ln(z, w, b, eps=1e-6):
        mean = jnp.mean(z, axis=-1, keepdims=True)
        var = jnp.mean(jnp.square(z - mean), axis=-1, keepdims=True)
        return (z - mean) / jnp.sqrt(var + eps) * w + b

    def mha(q_in, k_in, v_in, mask, wq, bq, wk, bk, wv, bv, wo, bo):
        B, Tq, D = q_in.shape
        hs = D // num_heads
        q = (q_in @ wq + bq).reshape(B, Tq, num_heads, hs).transpose(0, 2, 1, 3)
        k = (k_in @ wk + bk).reshape(B, -1, num_heads, hs).transpose(0, 2, 1, 3)
        v = (v_in @ wv + bv).reshape(B, -1, num_heads, hs).transpose(0, 2, 1, 3)
        q = q / math.sqrt(hs)
        scores = jnp.einsum('bhqd,bhkd->bhqk', q, k)
        scores = jnp.where(mask[:, None] != 0, scores, jnp.float32(-1e30))
        attn = jax.nn.softmax(scores, axis=-1)
        ctx = jnp.einsum('bhqk,bhkd->bhqd', attn, v)
        ctx = ctx.transpose(0, 2, 1, 3).reshape(B, Tq, D)
        return ctx @ wo + bo

    x_norm = ln(x, xln_w, xln_b)
    h1 = mha(x_norm, x_norm, x_norm, trg_mask,
             s_qw, s_qb, s_kw, s_kb, s_vw, s_vb, s_ow, s_ob) + x
    h1_norm = ln(h1, dln_w, dln_b)
    h2 = mha(h1_norm, memory, memory, src_mask,
             c_qw, c_qb, c_kw, c_kb, c_vw, c_vb, c_ow, c_ob) + h1
    ff_in = ln(h2, fln_w, fln_b)
    hidden = jax.nn.relu(ff_in @ ff1_w + ff1_b)
    return hidden @ ff2_w + ff2_b + h2


# ----------------------------------- main --------------------------------------

def make_params(key, D, FF):
    ks = jax.random.split(key, 32)
    i = iter(range(32))
    def w(shape, scale=0.1):
        return (scale * jax.random.normal(ks[next(i)], shape)).astype(jnp.float32)
    ones = lambda n: jnp.ones((1, n), jnp.float32)
    zeros = lambda n: jnp.zeros((1, n), jnp.float32)
    params = [
        ones(D), zeros(D),                                          # x_layer_norm
        w((D, D)), w((1, D), 0.02), w((D, D)), w((1, D), 0.02),     # self q, k
        w((D, D)), w((1, D), 0.02), w((D, D)), w((1, D), 0.02),     # self v, out
        ones(D), zeros(D),                                          # dec_layer_norm
        w((D, D)), w((1, D), 0.02), w((D, D)), w((1, D), 0.02),     # cross q, k
        w((D, D)), w((1, D), 0.02), w((D, D)), w((1, D), 0.02),     # cross v, out
        ones(D), zeros(D),                                          # ffn layer_norm
        w((D, FF)), w((1, FF), 0.02), w((FF, D)), w((1, D), 0.02),  # ffn linears
    ]
    return params


if __name__ == "__main__":
    B, T, M, D, FF, H = 2, 16, 8, 32, 64, 4

    key = jax.random.PRNGKey(0)
    kx, kmem, kp = jax.random.split(key, 3)
    x = jax.random.normal(kx, (B, T, D), dtype=jnp.float32)
    memory = jax.random.normal(kmem, (B, M, D), dtype=jnp.float32)

    # per-batch valid lengths: (target, source) -- batch 1 has padding on both
    trg_lens = jnp.array([T, T - 3], dtype=jnp.int32)
    src_lens = jnp.array([M, M - 2], dtype=jnp.int32)
    lengths = jnp.stack([trg_lens, src_lens], axis=1)               # [B, 2]

    params = make_params(kp, D, FF)

    out = transformer_decoder_layer(x, memory, lengths, params, H, block_q=8)
    out = jax.block_until_ready(out)

    # reference masks with identical semantics (causal & padding / source padding)
    r = jnp.arange(T)[:, None]
    c = jnp.arange(T)[None, :]
    causal = (c <= r)
    trg_mask = (causal[None] &
                (c[None] < trg_lens[:, None, None])).astype(jnp.int32)     # [B,T,T]
    src_mask = (jnp.arange(M)[None, None, :] <
                src_lens[:, None, None]).astype(jnp.int32)                 # [B,1,M]

    ref = reference_decoder_layer(x, memory, trg_mask, src_mask, params, H)

    assert out.shape == (B, T, D)
    err = float(jnp.max(jnp.abs(out - ref)))
    # bf16 matmul / bf16 exp path vs pure-f32 reference -> relaxed tolerance
    assert jnp.allclose(out, ref, rtol=5e-2, atol=5e-2), err

    print("KERNEL_OK")
</pallas_src>

<mosaic_0001>
module attributes {stable_mosaic.version = 11 : i64} {
  func.func @decoder_layer_kernel(%arg0: i32, %arg1: i32, %arg2: memref<2x2xi32, #tpu.memory_space<smem>>, %arg3: memref<1x16x32xbf16, #tpu.memory_space<vmem>>, %arg4: memref<1x8x32xbf16, #tpu.memory_space<vmem>>, %arg5: memref<3x32xf32, #tpu.memory_space<vmem>>, %arg6: memref<3x32xf32, #tpu.memory_space<vmem>>, %arg7: memref<32x32xbf16, #tpu.memory_space<vmem>>, %arg8: memref<1x32xf32, #tpu.memory_space<vmem>>, %arg9: memref<32x64xbf16, #tpu.memory_space<vmem>>, %arg10: memref<1x64xf32, #tpu.memory_space<vmem>>, %arg11: memref<32x32xbf16, #tpu.memory_space<vmem>>, %arg12: memref<1x32xf32, #tpu.memory_space<vmem>>, %arg13: memref<32x32xbf16, #tpu.memory_space<vmem>>, %arg14: memref<1x32xf32, #tpu.memory_space<vmem>>, %arg15: memref<32x64xbf16, #tpu.memory_space<vmem>>, %arg16: memref<1x64xf32, #tpu.memory_space<vmem>>, %arg17: memref<32x32xbf16, #tpu.memory_space<vmem>>, %arg18: memref<1x32xf32, #tpu.memory_space<vmem>>, %arg19: memref<32x64xbf16, #tpu.memory_space<vmem>>, %arg20: memref<1x64xf32, #tpu.memory_space<vmem>>, %arg21: memref<64x32xbf16, #tpu.memory_space<vmem>>, %arg22: memref<1x32xf32, #tpu.memory_space<vmem>>, %arg23: memref<1x8x32xf32, #tpu.memory_space<vmem>>, %arg24: memref<16x32xbf16, #tpu.memory_space<vmem>>, %arg25: memref<2x4x16x8xbf16, #tpu.memory_space<vmem>>, %arg26: memref<2x4x8x8xbf16, #tpu.memory_space<vmem>>, %arg27: memref<4x8x8xbf16, #tpu.memory_space<vmem>>, %arg28: memref<8x32xf32, #tpu.memory_space<vmem>>) attributes {dimension_semantics = [#tpu.dimension_semantics<parallel>, #tpu.dimension_semantics<arbitrary>], iteration_bounds = array<i64: 2, 2>, scalar_prefetch = 1 : i64, scratch_operands = 5 : i64, tpu.core_type = #tpu.core_type<tc>, window_params = [{transform_indices = @transform_0, window_bounds = array<i64: 1, 16, 32>}, {transform_indices = @transform_1, window_bounds = array<i64: 1, 8, 32>}, {pipeline_mode = #tpu.pipeline_mode<synchronous>, transform_indices = @transform_2, window_bounds = array<i64: 3, 32>}, {pipeline_mode = #tpu.pipeline_mode<synchronous>, transform_indices = @transform_3, window_bounds = array<i64: 3, 32>}, {pipeline_mode = #tpu.pipeline_mode<synchronous>, transform_indices = @transform_4, window_bounds = array<i64: 32, 32>}, {pipeline_mode = #tpu.pipeline_mode<synchronous>, transform_indices = @transform_5, window_bounds = array<i64: 1, 32>}, {pipeline_mode = #tpu.pipeline_mode<synchronous>, transform_indices = @transform_6, window_bounds = array<i64: 32, 64>}, {pipeline_mode = #tpu.pipeline_mode<synchronous>, transform_indices = @transform_7, window_bounds = array<i64: 1, 64>}, {pipeline_mode = #tpu.pipeline_mode<synchronous>, transform_indices = @transform_8, window_bounds = array<i64: 32, 32>}, {pipeline_mode = #tpu.pipeline_mode<synchronous>, transform_indices = @transform_9, window_bounds = array<i64: 1, 32>}, {pipeline_mode = #tpu.pipeline_mode<synchronous>, transform_indices = @transform_10, window_bounds = array<i64: 32, 32>}, {pipeline_mode = #tpu.pipeline_mode<synchronous>, transform_indices = @transform_11, window_bounds = array<i64: 1, 32>}, {pipeline_mode = #tpu.pipeline_mode<synchronous>, transform_indices = @transform_12, window_bounds = array<i64: 32, 64>}, {pipeline_mode = #tpu.pipeline_mode<synchronous>, transform_indices = @transform_13, window_bounds = array<i64: 1, 64>}, {pipeline_mode = #tpu.pipeline_mode<synchronous>, transform_indices = @transform_14, window_bounds = array<i64: 32, 32>}, {pipeline_mode = #tpu.pipeline_mode<synchronous>, transform_indices = @transform_15, window_bounds = array<i64: 1, 32>}, {pipeline_mode = #tpu.pipeline_mode<synchronous>, transform_indices = @transform_16, window_bounds = array<i64: 32, 64>}, {pipeline_mode = #tpu.pipeline_mode<synchronous>, transform_indices = @transform_17, window_bounds = array<i64: 1, 64>}, {pipeline_mode = #tpu.pipeline_mode<synchronous>, transform_indices = @transform_18, window_bounds = array<i64: 64, 32>}, {pipeline_mode = #tpu.pipeline_mode<synchronous>, transform_indices = @transform_19, window_bounds = array<i64: 1, 32>}, {transform_indices = @transform_20, window_bounds = array<i64: 1, 8, 32>}]} {
    %c8_i32 = arith.constant 8 : i32
    %0 = arith.muli %arg1, %c8_i32 : i32
    %1 = tpu.assume_multiple %0, 8 : i32
    %2 = arith.index_cast %arg0 : i32 to index
    %c0 = arith.constant 0 : index
    %3 = memref.load %arg2[%2, %c0] : memref<2x2xi32, #tpu.memory_space<smem>>
    %4 = arith.index_cast %arg0 : i32 to index
    %c1 = arith.constant 1 : index
    %5 = memref.load %arg2[%4, %c1] : memref<2x2xi32, #tpu.memory_space<smem>>
    %c0_i32 = arith.constant 0 : i32
    %6 = arith.cmpi eq, %arg1, %c0_i32 : i32
    %7 = arith.extui %6 : i1 to i32
    %c0_i32_0 = arith.constant 0 : i32
    %8 = arith.cmpi ne, %7, %c0_i32_0 : i32
    scf.if %8 {
      %c0_128 = arith.constant 0 : index
      %c0_129 = arith.constant 0 : index
      %c0_130 = arith.constant 0 : index
      %235 = vector.load %arg3[%c0_128, %c0_129, %c0_130] : memref<1x16x32xbf16, #tpu.memory_space<vmem>>, vector<1x16x32xbf16>
      %236 = vector.shape_cast %235 : vector<1x16x32xbf16> to vector<16x32xbf16>
      %237 = arith.extf %236 : vector<16x32xbf16> to vector<16x32xf32>
      %c0_131 = arith.constant 0 : index
      %c0_132 = arith.constant 0 : index
      %238 = vector.load %arg5[%c0_131, %c0_132] : memref<3x32xf32, #tpu.memory_space<vmem>>, vector<1x32xf32>
      %c0_133 = arith.constant 0 : index
      %c0_134 = arith.constant 0 : index
      %239 = vector.load %arg6[%c0_133, %c0_134] : memref<3x32xf32, #tpu.memory_space<vmem>>, vector<1x32xf32>
      %cst_135 = arith.constant dense<0.000000e+00> : vector<16xf32>
      %240 = vector.multi_reduction <add>, %237, %cst_135 [1] : vector<16x32xf32> to vector<16xf32>
      %241 = vector.shape_cast %240 : vector<16xf32> to vector<16x1xf32>
      %cst_136 = arith.constant 3.200000e+01 : f32
      %242 = vector.broadcast %cst_136 : f32 to vector<16x1xf32>
      %243 = arith.divf %241, %242 : vector<16x1xf32>
      %244 = vector.broadcast %243 : vector<16x1xf32> to vector<16x32xf32>
      %245 = arith.subf %237, %244 : vector<16x32xf32>
      %246 = arith.mulf %245, %245 : vector<16x32xf32>
      %cst_137 = arith.constant dense<0.000000e+00> : vector<16xf32>
      %247 = vector.multi_reduction <add>, %246, %cst_137 [1] : vector<16x32xf32> to vector<16xf32>
      %248 = vector.shape_cast %247 : vector<16xf32> to vector<16x1xf32>
      %cst_138 = arith.constant 3.200000e+01 : f32
      %249 = vector.broadcast %cst_138 : f32 to vector<16x1xf32>
      %250 = arith.divf %248, %249 : vector<16x1xf32>
      %251 = vector.broadcast %243 : vector<16x1xf32> to vector<16x32xf32>
      %252 = arith.subf %237, %251 : vector<16x32xf32>
      %cst_139 = arith.constant 9.99999997E-7 : f32
      %253 = vector.broadcast %cst_139 : f32 to vector<16x1xf32>
      %254 = arith.addf %250, %253 : vector<16x1xf32>
      %255 = math.rsqrt %254 : vector<16x1xf32>
      %256 = vector.broadcast %255 : vector<16x1xf32> to vector<16x32xf32>
      %257 = arith.mulf %252, %256 : vector<16x32xf32>
      %258 = vector.broadcast %238 : vector<1x32xf32> to vector<16x32xf32>
      %259 = arith.mulf %257, %258 : vector<16x32xf32>
      %260 = vector.broadcast %239 : vector<1x32xf32> to vector<16x32xf32>
      %261 = arith.addf %259, %260 : vector<16x32xf32>
      %262 = arith.truncf %261 : vector<16x32xf32> to vector<16x32xbf16>
      %c0_140 = arith.constant 0 : index
      %c0_141 = arith.constant 0 : index
      %263 = vector.load %arg24[%c0_140, %c0_141] : memref<16x32xbf16, #tpu.memory_space<vmem>>, vector<16x32xbf16>
      tpu.vector_store %arg24[%c0_140, %c0_141], %262 {strides = array<i32>} : memref<16x32xbf16, #tpu.memory_space<vmem>>, vector<16x32xbf16>,
      %c0_142 = arith.constant 0 : index
      %c0_143 = arith.constant 0 : index
      %264 = vector.load %arg9[%c0_142, %c0_143] : memref<32x64xbf16, #tpu.memory_space<vmem>>, vector<32x64xbf16>
      %cst_144 = arith.constant dense<0.000000e+00> : vector<16x64xf32>
      %265 = tpu.matmul %262, %264, %cst_144 {dimension_numbers = #tpu.dot_dimension_numbers<[1], [0], [0], [1], [0, 0, 1, 1], [], []>} : vector<16x32xbf16>, vector<32x64xbf16>, vector<16x64xf32> -> vector<16x64xf32>
      %c0_145 = arith.constant 0 : index
      %c0_146 = arith.constant 0 : index
      %266 = vector.load %arg10[%c0_145, %c0_146] : memref<1x64xf32, #tpu.memory_space<vmem>>, vector<1x64xf32>
      %267 = vector.broadcast %266 : vector<1x64xf32> to vector<16x64xf32>
      %268 = arith.addf %265, %267 : vector<16x64xf32>
      %c0_147 = arith.constant 0 : index
      %c0_148 = arith.constant 0 : index
      %c0_149 = arith.constant 0 : index
      %269 = vector.load %arg4[%c0_147, %c0_148, %c0_149] : memref<1x8x32xbf16, #tpu.memory_space<vmem>>, vector<1x8x32xbf16>
      %270 = vector.shape_cast %269 : vector<1x8x32xbf16> to vector<8x32xbf16>
      %c0_150 = arith.constant 0 : index
      %c0_151 = arith.constant 0 : index
      %271 = vector.load %arg15[%c0_150, %c0_151] : memref<32x64xbf16, #tpu.memory_space<vmem>>, vector<32x64xbf16>
      %cst_152 = arith.constant dense<0.000000e+00> : vector<8x64xf32>
      %272 = tpu.matmul %270, %271, %cst_152 {dimension_numbers = #tpu.dot_dimension_numbers<[1], [0], [0], [1], [0, 0, 1, 1], [], []>} : vector<8x32xbf16>, vector<32x64xbf16>, vector<8x64xf32> -> vector<8x64xf32>
      %c0_153 = arith.constant 0 : index
      %c0_154 = arith.constant 0 : index
      %273 = vector.load %arg16[%c0_153, %c0_154] : memref<1x64xf32, #tpu.memory_space<vmem>>, vector<1x64xf32>
      %274 = vector.broadcast %273 : vector<1x64xf32> to vector<8x64xf32>
      %275 = arith.addf %272, %274 : vector<8x64xf32>
      %276 = vector.extract_strided_slice %268 {offsets = [0, 0], sizes = [16, 8], strides = [1, 1]} : vector<16x64xf32> to vector<16x8xf32>
      %277 = arith.truncf %276 : vector<16x8xf32> to vector<16x8xbf16>
      %c0_155 = arith.constant 0 : index
      %c0_156 = arith.constant 0 : index
      %c0_157 = arith.constant 0 : index
      %c0_158 = arith.constant 0 : index
      %278 = vector.load %arg25[%c0_155, %c0_156, %c0_157, %c0_158] : memref<2x4x16x8xbf16, #tpu.memory_space<vmem>>, vector<1x1x16x8xbf16>
      %279 = vector.shape_cast %278 : vector<1x1x16x8xbf16> to vector<16x8xbf16>
      %280 = vector.shape_cast %277 : vector<16x8xbf16> to vector<1x1x16x8xbf16>
      tpu.vector_store %arg25[%c0_155, %c0_156, %c0_157, %c0_158], %280 {strides = array<i32>} : memref<2x4x16x8xbf16, #tpu.memory_space<vmem>>, vector<1x1x16x8xbf16>,
      %281 = vector.extract_strided_slice %268 {offsets = [0, 32], sizes = [16, 8], strides = [1, 1]} : vector<16x64xf32> to vector<16x8xf32>
      %282 = arith.truncf %281 : vector<16x8xf32> to vector<16x8xbf16>
      %c1_159 = arith.constant 1 : index
      %c0_160 = arith.constant 0 : index
      %c0_161 = arith.constant 0 : index
      %c0_162 = arith.constant 0 : index
      %283 = vector.load %arg25[%c1_159, %c0_160, %c0_161, %c0_162] : memref<2x4x16x8xbf16, #tpu.memory_space<vmem>>, vector<1x1x16x8xbf16>
      %284 = vector.shape_cast %283 : vector<1x1x16x8xbf16> to vector<16x8xbf16>
      %285 = vector.shape_cast %282 : vector<16x8xbf16> to vector<1x1x16x8xbf16>
      tpu.vector_store %arg25[%c1_159, %c0_160, %c0_161, %c0_162], %285 {strides = array<i32>} : memref<2x4x16x8xbf16, #tpu.memory_space<vmem>>, vector<1x1x16x8xbf16>,
      %286 = vector.extract_strided_slice %275 {offsets = [0, 0], sizes = [8, 8], strides = [1, 1]} : vector<8x64xf32> to vector<8x8xf32>
      %287 = arith.truncf %286 : vector<8x8xf32> to vector<8x8xbf16>
      %c0_163 = arith.constant 0 : index
      %c0_164 = arith.constant 0 : index
      %c0_165 = arith.constant 0 : index
      %c0_166 = arith.constant 0 : index
      %288 = vector.load %arg26[%c0_163, %c0_164, %c0_165, %c0_166] : memref<2x4x8x8xbf16, #tpu.memory_space<vmem>>, vector<1x1x8x8xbf16>
      %289 = vector.shape_cast %288 : vector<1x1x8x8xbf16> to vector<8x8xbf16>
      %290 = vector.shape_cast %287 : vector<8x8xbf16> to vector<1x1x8x8xbf16>
      tpu.vector_store %arg26[%c0_163, %c0_164, %c0_165, %c0_166], %290 {strides = array<i32>} : memref<2x4x8x8xbf16, #tpu.memory_space<vmem>>, vector<1x1x8x8xbf16>,
      %291 = vector.extract_strided_slice %275 {offsets = [0, 32], sizes = [8, 8], strides = [1, 1]} : vector<8x64xf32> to vector<8x8xf32>
      %292 = arith.truncf %291 : vector<8x8xf32> to vector<8x8xbf16>
      %c1_167 = arith.constant 1 : index
      %c0_168 = arith.constant 0 : index
      %c0_169 = arith.constant 0 : index
      %c0_170 = arith.constant 0 : index
      %293 = vector.load %arg26[%c1_167, %c0_168, %c0_169, %c0_170] : memref<2x4x8x8xbf16, #tpu.memory_space<vmem>>, vector<1x1x8x8xbf16>
      %294 = vector.shape_cast %293 : vector<1x1x8x8xbf16> to vector<8x8xbf16>
      %295 = vector.shape_cast %292 : vector<8x8xbf16> to vector<1x1x8x8xbf16>
      tpu.vector_store %arg26[%c1_167, %c0_168, %c0_169, %c0_170], %295 {strides = array<i32>} : memref<2x4x8x8xbf16, #tpu.memory_space<vmem>>, vector<1x1x8x8xbf16>,
      %296 = vector.extract_strided_slice %268 {offsets = [0, 8], sizes = [16, 8], strides = [1, 1]} : vector<16x64xf32> to vector<16x8xf32>
      %297 = arith.truncf %296 : vector<16x8xf32> to vector<16x8xbf16>
      %c0_171 = arith.constant 0 : index
      %c1_172 = arith.constant 1 : index
      %c0_173 = arith.constant 0 : index
      %c0_174 = arith.constant 0 : index
      %298 = vector.load %arg25[%c0_171, %c1_172, %c0_173, %c0_174] : memref<2x4x16x8xbf16, #tpu.memory_space<vmem>>, vector<1x1x16x8xbf16>
      %299 = vector.shape_cast %298 : vector<1x1x16x8xbf16> to vector<16x8xbf16>
      %300 = vector.shape_cast %297 : vector<16x8xbf16> to vector<1x1x16x8xbf16>
      tpu.vector_store %arg25[%c0_171, %c1_172, %c0_173, %c0_174], %300 {strides = array<i32>} : memref<2x4x16x8xbf16, #tpu.memory_space<vmem>>, vector<1x1x16x8xbf16>,
      %301 = vector.extract_strided_slice %268 {offsets = [0, 40], sizes = [16, 8], strides = [1, 1]} : vector<16x64xf32> to vector<16x8xf32>
      %302 = arith.truncf %301 : vector<16x8xf32> to vector<16x8xbf16>
      %c1_175 = arith.constant 1 : index
      %c1_176 = arith.constant 1 : index
      %c0_177 = arith.constant 0 : index
      %c0_178 = arith.constant 0 : index
      %303 = vector.load %arg25[%c1_175, %c1_176, %c0_177, %c0_178] : memref<2x4x16x8xbf16, #tpu.memory_space<vmem>>, vector<1x1x16x8xbf16>
      %304 = vector.shape_cast %303 : vector<1x1x16x8xbf16> to vector<16x8xbf16>
      %305 = vector.shape_cast %302 : vector<16x8xbf16> to vector<1x1x16x8xbf16>
      tpu.vector_store %arg25[%c1_175, %c1_176, %c0_177, %c0_178], %305 {strides = array<i32>} : memref<2x4x16x8xbf16, #tpu.memory_space<vmem>>, vector<1x1x16x8xbf16>,
      %306 = vector.extract_strided_slice %275 {offsets = [0, 8], sizes = [8, 8], strides = [1, 1]} : vector<8x64xf32> to vector<8x8xf32>
      %307 = arith.truncf %306 : vector<8x8xf32> to vector<8x8xbf16>
      %c0_179 = arith.constant 0 : index
      %c1_180 = arith.constant 1 : index
      %c0_181 = arith.constant 0 : index
      %c0_182 = arith.constant 0 : index
      %308 = vector.load %arg26[%c0_179, %c1_180, %c0_181, %c0_182] : memref<2x4x8x8xbf16, #tpu.memory_space<vmem>>, vector<1x1x8x8xbf16>
      %309 = vector.shape_cast %308 : vector<1x1x8x8xbf16> to vector<8x8xbf16>
      %310 = vector.shape_cast %307 : vector<8x8xbf16> to vector<1x1x8x8xbf16>
      tpu.vector_store %arg26[%c0_179, %c1_180, %c0_181, %c0_182], %310 {strides = array<i32>} : memref<2x4x8x8xbf16, #tpu.memory_space<vmem>>, vector<1x1x8x8xbf16>,
      %311 = vector.extract_strided_slice %275 {offsets = [0, 40], sizes = [8, 8], strides = [1, 1]} : vector<8x64xf32> to vector<8x8xf32>
      %312 = arith.truncf %311 : vector<8x8xf32> to vector<8x8xbf16>
      %c1_183 = arith.constant 1 : index
      %c1_184 = arith.constant 1 : index
      %c0_185 = arith.constant 0 : index
      %c0_186 = arith.constant 0 : index
      %313 = vector.load %arg26[%c1_183, %c1_184, %c0_185, %c0_186] : memref<2x4x8x8xbf16, #tpu.memory_space<vmem>>, vector<1x1x8x8xbf16>
      %314 = vector.shape_cast %313 : vector<1x1x8x8xbf16> to vector<8x8xbf16>
      %315 = vector.shape_cast %312 : vector<8x8xbf16> to vector<1x1x8x8xbf16>
      tpu.vector_store %arg26[%c1_183, %c1_184, %c0_185, %c0_186], %315 {strides = array<i32>} : memref<2x4x8x8xbf16, #tpu.memory_space<vmem>>, vector<1x1x8x8xbf16>,
      %316 = vector.extract_strided_slice %268 {offsets = [0, 16], sizes = [16, 8], strides = [1, 1]} : vector<16x64xf32> to vector<16x8xf32>
      %317 = arith.truncf %316 : vector<16x8xf32> to vector<16x8xbf16>
      %c0_187 = arith.constant 0 : index
      %c2_188 = arith.constant 2 : index
      %c0_189 = arith.constant 0 : index
      %c0_190 = arith.constant 0 : index
      %318 = vector.load %arg25[%c0_187, %c2_188, %c0_189, %c0_190] : memref<2x4x16x8xbf16, #tpu.memory_space<vmem>>, vector<1x1x16x8xbf16>
      %319 = vector.shape_cast %318 : vector<1x1x16x8xbf16> to vector<16x8xbf16>
      %320 = vector.shape_cast %317 : vector<16x8xbf16> to vector<1x1x16x8xbf16>
      tpu.vector_store %arg25[%c0_187, %c2_188, %c0_189, %c0_190], %320 {strides = array<i32>} : memref<2x4x16x8xbf16, #tpu.memory_space<vmem>>, vector<1x1x16x8xbf16>,
      %321 = vector.extract_strided_slice %268 {offsets = [0, 48], sizes = [16, 8], strides = [1, 1]} : vector<16x64xf32> to vector<16x8xf32>
      %322 = arith.truncf %321 : vector<16x8xf32> to vector<16x8xbf16>
      %c1_191 = arith.constant 1 : index
      %c2_192 = arith.constant 2 : index
      %c0_193 = arith.constant 0 : index
      %c0_194 = arith.constant 0 : index
      %323 = vector.load %arg25[%c1_191, %c2_192, %c0_193, %c0_194] : memref<2x4x16x8xbf16, #tpu.memory_space<vmem>>, vector<1x1x16x8xbf16>
      %324 = vector.shape_cast %323 : vector<1x1x16x8xbf16> to vector<16x8xbf16>
      %325 = vector.shape_cast %322 : vector<16x8xbf16> to vector<1x1x16x8xbf16>
      tpu.vector_store %arg25[%c1_191, %c2_192, %c0_193, %c0_194], %325 {strides = array<i32>} : memref<2x4x16x8xbf16, #tpu.memory_space<vmem>>, vector<1x1x16x8xbf16>,
      %326 = vector.extract_strided_slice %275 {offsets = [0, 16], sizes = [8, 8], strides = [1, 1]} : vector<8x64xf32> to vector<8x8xf32>
      %327 = arith.truncf %326 : vector<8x8xf32> to vector<8x8xbf16>
      %c0_195 = arith.constant 0 : index
      %c2_196 = arith.constant 2 : index
      %c0_197 = arith.constant 0 : index
      %c0_198 = arith.constant 0 : index
      %328 = vector.load %arg26[%c0_195, %c2_196, %c0_197, %c0_198] : memref<2x4x8x8xbf16, #tpu.memory_space<vmem>>, vector<1x1x8x8xbf16>
      %329 = vector.shape_cast %328 : vector<1x1x8x8xbf16> to vector<8x8xbf16>
      %330 = vector.shape_cast %327 : vector<8x8xbf16> to vector<1x1x8x8xbf16>
      tpu.vector_store %arg26[%c0_195, %c2_196, %c0_197, %c0_198], %330 {strides = array<i32>} : memref<2x4x8x8xbf16, #tpu.memory_space<vmem>>, vector<1x1x8x8xbf16>,
      %331 = vector.extract_strided_slice %275 {offsets = [0, 48], sizes = [8, 8], strides = [1, 1]} : vector<8x64xf32> to vector<8x8xf32>
      %332 = arith.truncf %331 : vector<8x8xf32> to vector<8x8xbf16>
      %c1_199 = arith.constant 1 : index
      %c2_200 = arith.constant 2 : index
      %c0_201 = arith.constant 0 : index
      %c0_202 = arith.constant 0 : index
      %333 = vector.load %arg26[%c1_199, %c2_200, %c0_201, %c0_202] : memref<2x4x8x8xbf16, #tpu.memory_space<vmem>>, vector<1x1x8x8xbf16>
      %334 = vector.shape_cast %333 : vector<1x1x8x8xbf16> to vector<8x8xbf16>
      %335 = vector.shape_cast %332 : vector<8x8xbf16> to vector<1x1x8x8xbf16>
      tpu.vector_store %arg26[%c1_199, %c2_200, %c0_201, %c0_202], %335 {strides = array<i32>} : memref<2x4x8x8xbf16, #tpu.memory_space<vmem>>, vector<1x1x8x8xbf16>,
      %336 = vector.extract_strided_slice %268 {offsets = [0, 24], sizes = [16, 8], strides = [1, 1]} : vector<16x64xf32> to vector<16x8xf32>
      %337 = arith.truncf %336 : vector<16x8xf32> to vector<16x8xbf16>
      %c0_203 = arith.constant 0 : index
      %c3_204 = arith.constant 3 : index
      %c0_205 = arith.constant 0 : index
      %c0_206 = arith.constant 0 : index
      %338 = vector.load %arg25[%c0_203, %c3_204, %c0_205, %c0_206] : memref<2x4x16x8xbf16, #tpu.memory_space<vmem>>, vector<1x1x16x8xbf16>
      %339 = vector.shape_cast %338 : vector<1x1x16x8xbf16> to vector<16x8xbf16>
      %340 = vector.shape_cast %337 : vector<16x8xbf16> to vector<1x1x16x8xbf16>
      tpu.vector_store %arg25[%c0_203, %c3_204, %c0_205, %c0_206], %340 {strides = array<i32>} : memref<2x4x16x8xbf16, #tpu.memory_space<vmem>>, vector<1x1x16x8xbf16>,
      %341 = vector.extract_strided_slice %268 {offsets = [0, 56], sizes = [16, 8], strides = [1, 1]} : vector<16x64xf32> to vector<16x8xf32>
      %342 = arith.truncf %341 : vector<16x8xf32> to vector<16x8xbf16>
      %c1_207 = arith.constant 1 : index
      %c3_208 = arith.constant 3 : index
      %c0_209 = arith.constant 0 : index
      %c0_210 = arith.constant 0 : index
      %343 = vector.load %arg25[%c1_207, %c3_208, %c0_209, %c0_210] : memref<2x4x16x8xbf16, #tpu.memory_space<vmem>>, vector<1x1x16x8xbf16>
      %344 = vector.shape_cast %343 : vector<1x1x16x8xbf16> to vector<16x8xbf16>
      %345 = vector.shape_cast %342 : vector<16x8xbf16> to vector<1x1x16x8xbf16>
      tpu.vector_store %arg25[%c1_207, %c3_208, %c0_209, %c0_210], %345 {strides = array<i32>} : memref<2x4x16x8xbf16, #tpu.memory_space<vmem>>, vector<1x1x16x8xbf16>,
      %346 = vector.extract_strided_slice %275 {offsets = [0, 24], sizes = [8, 8], strides = [1, 1]} : vector<8x64xf32> to vector<8x8xf32>
      %347 = arith.truncf %346 : vector<8x8xf32> to vector<8x8xbf16>
      %c0_211 = arith.constant 0 : index
      %c3_212 = arith.constant 3 : index
      %c0_213 = arith.constant 0 : index
      %c0_214 = arith.constant 0 : index
      %348 = vector.load %arg26[%c0_211, %c3_212, %c0_213, %c0_214] : memref<2x4x8x8xbf16, #tpu.memory_space<vmem>>, vector<1x1x8x8xbf16>
      %349 = vector.shape_cast %348 : vector<1x1x8x8xbf16> to vector<8x8xbf16>
      %350 = vector.shape_cast %347 : vector<8x8xbf16> to vector<1x1x8x8xbf16>
      tpu.vector_store %arg26[%c0_211, %c3_212, %c0_213, %c0_214], %350 {strides = array<i32>} : memref<2x4x8x8xbf16, #tpu.memory_space<vmem>>, vector<1x1x8x8xbf16>,
      %351 = vector.extract_strided_slice %275 {offsets = [0, 56], sizes = [8, 8], strides = [1, 1]} : vector<8x64xf32> to vector<8x8xf32>
      %352 = arith.truncf %351 : vector<8x8xf32> to vector<8x8xbf16>
      %c1_215 = arith.constant 1 : index
      %c3_216 = arith.constant 3 : index
      %c0_217 = arith.constant 0 : index
      %c0_218 = arith.constant 0 : index
      %353 = vector.load %arg26[%c1_215, %c3_216, %c0_217, %c0_218] : memref<2x4x8x8xbf16, #tpu.memory_space<vmem>>, vector<1x1x8x8xbf16>
      %354 = vector.shape_cast %353 : vector<1x1x8x8xbf16> to vector<8x8xbf16>
      %355 = vector.shape_cast %352 : vector<8x8xbf16> to vector<1x1x8x8xbf16>
      tpu.vector_store %arg26[%c1_215, %c3_216, %c0_217, %c0_218], %355 {strides = array<i32>} : memref<2x4x8x8xbf16, #tpu.memory_space<vmem>>, vector<1x1x8x8xbf16>,
    } else {
    }
    %c0_1 = arith.constant 0 : index
    %9 = arith.index_cast %1 : i32 to index
    %c0_2 = arith.constant 0 : index
    %10 = vector.load %arg3[%c0_1, %9, %c0_2] : memref<1x16x32xbf16, #tpu.memory_space<vmem>>, vector<1x8x32xbf16>
    %11 = vector.shape_cast %10 : vector<1x8x32xbf16> to vector<8x32xbf16>
    %12 = arith.extf %11 : vector<8x32xbf16> to vector<8x32xf32>
    %13 = arith.index_cast %1 : i32 to index
    %c0_3 = arith.constant 0 : index
    %14 = vector.load %arg24[%13, %c0_3] : memref<16x32xbf16, #tpu.memory_space<vmem>>, vector<8x32xbf16>
    %c0_4 = arith.constant 0 : index
    %c0_5 = arith.constant 0 : index
    %15 = vector.load %arg7[%c0_4, %c0_5] : memref<32x32xbf16, #tpu.memory_space<vmem>>, vector<32x32xbf16>
    %cst = arith.constant dense<0.000000e+00> : vector<8x32xf32>
    %16 = tpu.matmul %14, %15, %cst {dimension_numbers = #tpu.dot_dimension_numbers<[1], [0], [0], [1], [0, 0, 1, 1], [], []>} : vector<8x32xbf16>, vector<32x32xbf16>, vector<8x32xf32> -> vector<8x32xf32>
    %c0_6 = arith.constant 0 : index
    %c0_7 = arith.constant 0 : index
    %17 = vector.load %arg8[%c0_6, %c0_7] : memref<1x32xf32, #tpu.memory_space<vmem>>, vector<1x32xf32>
    %18 = vector.broadcast %17 : vector<1x32xf32> to vector<8x32xf32>
    %19 = arith.addf %16, %18 : vector<8x32xf32>
    %20 = tpu.iota {dimensions = array<i32: 0>} : vector<8x16xi32>
    %21 = vector.broadcast %1 : i32 to vector<8x16xi32>
    %22 = arith.addi %21, %20 : vector<8x16xi32>
    %23 = tpu.iota {dimensions = array<i32: 1>} : vector<8x16xi32>
    %24 = arith.cmpi sle, %23, %22 : vector<8x16xi32>
    %25 = vector.broadcast %3 : i32 to vector<8x16xi32>
    %26 = arith.cmpi slt, %23, %25 : vector<8x16xi32>
    %27 = arith.andi %24, %26 : vector<8x16xi1>
    %cst_8 = arith.constant 0.353553385 : f32
    %28 = vector.broadcast %cst_8 : f32 to vector<8x32xf32>
    %29 = arith.mulf %19, %28 : vector<8x32xf32>
    %30 = vector.extract_strided_slice %29 {offsets = [0, 0], sizes = [8, 8], strides = [1, 1]} : vector<8x32xf32> to vector<8x8xf32>
    %31 = arith.truncf %30 : vector<8x8xf32> to vector<8x8xbf16>
    %c0_9 = arith.constant 0 : index
    %c0_10 = arith.constant 0 : index
    %c0_11 = arith.constant 0 : index
    %32 = vector.load %arg27[%c0_9, %c0_10, %c0_11] : memref<4x8x8xbf16, #tpu.memory_space<vmem>>, vector<1x8x8xbf16>
    %33 = vector.shape_cast %32 : vector<1x8x8xbf16> to vector<8x8xbf16>
    %34 = vector.shape_cast %31 : vector<8x8xbf16> to vector<1x8x8xbf16>
    tpu.vector_store %arg27[%c0_9, %c0_10, %c0_11], %34 {strides = array<i32>} : memref<4x8x8xbf16, #tpu.memory_space<vmem>>, vector<1x8x8xbf16>,
    %35 = vector.extract_strided_slice %29 {offsets = [0, 8], sizes = [8, 8], strides = [1, 1]} : vector<8x32xf32> to vector<8x8xf32>
    %36 = arith.truncf %35 : vector<8x8xf32> to vector<8x8xbf16>
    %c1_12 = arith.constant 1 : index
    %c0_13 = arith.constant 0 : index
    %c0_14 = arith.constant 0 : index
    %37 = vector.load %arg27[%c1_12, %c0_13, %c0_14] : memref<4x8x8xbf16, #tpu.memory_space<vmem>>, vector<1x8x8xbf16>
    %38 = vector.shape_cast %37 : vector<1x8x8xbf16> to vector<8x8xbf16>
    %39 = vector.shape_cast %36 : vector<8x8xbf16> to vector<1x8x8xbf16>
    tpu.vector_store %arg27[%c1_12, %c0_13, %c0_14], %39 {strides = array<i32>} : memref<4x8x8xbf16, #tpu.memory_space<vmem>>, vector<1x8x8xbf16>,
    %40 = vector.extract_strided_slice %29 {offsets = [0, 16], sizes = [8, 8], strides = [1, 1]} : vector<8x32xf32> to vector<8x8xf32>
    %41 = arith.truncf %40 : vector<8x8xf32> to vector<8x8xbf16>
    %c2 = arith.constant 2 : index
    %c0_15 = arith.constant 0 : index
    %c0_16 = arith.constant 0 : index
    %42 = vector.load %arg27[%c2, %c0_15, %c0_16] : memref<4x8x8xbf16, #tpu.memory_space<vmem>>, vector<1x8x8xbf16>
    %43 = vector.shape_cast %42 : vector<1x8x8xbf16> to vector<8x8xbf16>
    %44 = vector.shape_cast %41 : vector<8x8xbf16> to vector<1x8x8xbf16>
    tpu.vector_store %arg27[%c2, %c0_15, %c0_16], %44 {strides = array<i32>} : memref<4x8x8xbf16, #tpu.memory_space<vmem>>, vector<1x8x8xbf16>,
    %45 = vector.extract_strided_slice %29 {offsets = [0, 24], sizes = [8, 8], strides = [1, 1]} : vector<8x32xf32> to vector<8x8xf32>
    %46 = arith.truncf %45 : vector<8x8xf32> to vector<8x8xbf16>
    %c3 = arith.constant 3 : index
    %c0_17 = arith.constant 0 : index
    %c0_18 = arith.constant 0 : index
    %47 = vector.load %arg27[%c3, %c0_17, %c0_18] : memref<4x8x8xbf16, #tpu.memory_space<vmem>>, vector<1x8x8xbf16>
    %48 = vector.shape_cast %47 : vector<1x8x8xbf16> to vector<8x8xbf16>
    %49 = vector.shape_cast %46 : vector<8x8xbf16> to vector<1x8x8xbf16>
    tpu.vector_store %arg27[%c3, %c0_17, %c0_18], %49 {strides = array<i32>} : memref<4x8x8xbf16, #tpu.memory_space<vmem>>, vector<1x8x8xbf16>,
    %c0_19 = arith.constant 0 : index
    %c0_20 = arith.constant 0 : index
    %c0_21 = arith.constant 0 : index
    %50 = vector.load %arg27[%c0_19, %c0_20, %c0_21] : memref<4x8x8xbf16, #tpu.memory_space<vmem>>, vector<4x8x8xbf16>
    %c0_22 = arith.constant 0 : index
    %c0_23 = arith.constant 0 : index
    %c0_24 = arith.constant 0 : index
    %c0_25 = arith.constant 0 : index
    %51 = vector.load %arg25[%c0_22, %c0_23, %c0_24, %c0_25] : memref<2x4x16x8xbf16, #tpu.memory_space<vmem>>, vector<1x4x16x8xbf16>
    %52 = vector.shape_cast %51 : vector<1x4x16x8xbf16> to vector<4x16x8xbf16>
    %c1_26 = arith.constant 1 : index
    %c0_27 = arith.constant 0 : index
    %c0_28 = arith.constant 0 : index
    %c0_29 = arith.constant 0 : index
    %53 = vector.load %arg25[%c1_26, %c0_27, %c0_28, %c0_29] : memref<2x4x16x8xbf16, #tpu.memory_space<vmem>>, vector<1x4x16x8xbf16>
    %54 = vector.shape_cast %53 : vector<1x4x16x8xbf16> to vector<4x16x8xbf16>
    %cst_30 = arith.constant dense<0.000000e+00> : vector<4x8x16xf32>
    %55 = tpu.matmul %50, %52, %cst_30 {dimension_numbers = #tpu.dot_dimension_numbers<[2], [2], [1], [1], [0, 0, 0, 1, 1, 1], [0], [0]>} : vector<4x8x8xbf16>, vector<4x16x8xbf16>, vector<4x8x16xf32> -> vector<4x8x16xf32>
    %56 = vector.shape_cast %27 : vector<8x16xi1> to vector<1x8x16xi1>
    %cst_31 = arith.constant -1.000000e+30 : f32
    %57 = vector.shape_cast %56 : vector<1x8x16xi1> to vector<1x8x16xi1>
    %58 = vector.broadcast %57 : vector<1x8x16xi1> to vector<4x8x16xi1>
    %59 = vector.broadcast %cst_31 : f32 to vector<4x8x16xf32>
    %60 = arith.select %58, %55, %59 : vector<4x8x16xi1>, vector<4x8x16xf32>
    %cst_32 = arith.constant dense<0xFF800000> : vector<4x8xf32>
    %61 = vector.multi_reduction <maximumf>, %60, %cst_32 [2] : vector<4x8x16xf32> to vector<4x8xf32>
    %62 = vector.shape_cast %61 : vector<4x8xf32> to vector<4x8x1xf32>
    %63 = vector.broadcast %62 : vector<4x8x1xf32> to vector<4x8x16xf32>
    %64 = arith.subf %60, %63 : vector<4x8x16xf32>
    %65 = arith.truncf %64 : vector<4x8x16xf32> to vector<4x8x16xbf16>
    %66 = math.exp %65 : vector<4x8x16xbf16>
    %67 = arith.extf %66 : vector<4x8x16xbf16> to vector<4x8x16xf32>
    %cst_33 = arith.constant dense<0.000000e+00> : vector<4x8xf32>
    %68 = vector.multi_reduction <add>, %67, %cst_33 [2] : vector<4x8x16xf32> to vector<4x8xf32>
    %69 = vector.shape_cast %68 : vector<4x8xf32> to vector<4x8x1xf32>
    %cst_34 = arith.constant dense<0.000000e+00> : vector<4x8x8xf32>
    %70 = tpu.matmul %66, %54, %cst_34 {dimension_numbers = #tpu.dot_dimension_numbers<[2], [1], [1], [2], [0, 0, 0, 1, 1, 2], [0], [0]>} : vector<4x8x16xbf16>, vector<4x16x8xbf16>, vector<4x8x8xf32> -> vector<4x8x8xf32>
    %71 = tpu.reciprocal %69 {approx = true} : vector<4x8x1xf32> -> vector<4x8x1xf32>
    %72 = vector.broadcast %71 : vector<4x8x1xf32> to vector<4x8x8xf32>
    %73 = arith.mulf %70, %72 : vector<4x8x8xf32>
    %74 = vector.extract_strided_slice %73 {offsets = [0, 0, 0], sizes = [1, 8, 8], strides = [1, 1, 1]} : vector<4x8x8xf32> to vector<1x8x8xf32>
    %75 = vector.shape_cast %74 : vector<1x8x8xf32> to vector<8x8xf32>
    %c0_35 = arith.constant 0 : index
    %c0_36 = arith.constant 0 : index
    %76 = vector.load %arg28[%c0_35, %c0_36] : memref<8x32xf32, #tpu.memory_space<vmem>>, vector<8x8xf32>
    tpu.vector_store %arg28[%c0_35, %c0_36], %75 {strides = array<i32>} : memref<8x32xf32, #tpu.memory_space<vmem>>, vector<8x8xf32>,
    %77 = vector.extract_strided_slice %73 {offsets = [1, 0, 0], sizes = [1, 8, 8], strides = [1, 1, 1]} : vector<4x8x8xf32> to vector<1x8x8xf32>
    %78 = vector.shape_cast %77 : vector<1x8x8xf32> to vector<8x8xf32>
    %c0_37 = arith.constant 0 : index
    %c8 = arith.constant 8 : index
    %79 = vector.load %arg28[%c0_37, %c8] : memref<8x32xf32, #tpu.memory_space<vmem>>, vector<8x8xf32>
    tpu.vector_store %arg28[%c0_37, %c8], %78 {strides = array<i32>} : memref<8x32xf32, #tpu.memory_space<vmem>>, vector<8x8xf32>,
    %80 = vector.extract_strided_slice %73 {offsets = [2, 0, 0], sizes = [1, 8, 8], strides = [1, 1, 1]} : vector<4x8x8xf32> to vector<1x8x8xf32>
    %81 = vector.shape_cast %80 : vector<1x8x8xf32> to vector<8x8xf32>
    %c0_38 = arith.constant 0 : index
    %c16 = arith.constant 16 : index
    %82 = vector.load %arg28[%c0_38, %c16] : memref<8x32xf32, #tpu.memory_space<vmem>>, vector<8x8xf32>
    tpu.vector_store %arg28[%c0_38, %c16], %81 {strides = array<i32>} : memref<8x32xf32, #tpu.memory_space<vmem>>, vector<8x8xf32>,
    %83 = vector.extract_strided_slice %73 {offsets = [3, 0, 0], sizes = [1, 8, 8], strides = [1, 1, 1]} : vector<4x8x8xf32> to vector<1x8x8xf32>
    %84 = vector.shape_cast %83 : vector<1x8x8xf32> to vector<8x8xf32>
    %c0_39 = arith.constant 0 : index
    %c24 = arith.constant 24 : index
    %85 = vector.load %arg28[%c0_39, %c24] : memref<8x32xf32, #tpu.memory_space<vmem>>, vector<8x8xf32>
    tpu.vector_store %arg28[%c0_39, %c24], %84 {strides = array<i32>} : memref<8x32xf32, #tpu.memory_space<vmem>>, vector<8x8xf32>,
    %c0_40 = arith.constant 0 : index
    %c0_41 = arith.constant 0 : index
    %86 = vector.load %arg28[%c0_40, %c0_41] : memref<8x32xf32, #tpu.memory_space<vmem>>, vector<8x32xf32>
    %87 = arith.truncf %86 : vector<8x32xf32> to vector<8x32xbf16>
    %c0_42 = arith.constant 0 : index
    %c0_43 = arith.constant 0 : index
    %88 = vector.load %arg11[%c0_42, %c0_43] : memref<32x32xbf16, #tpu.memory_space<vmem>>, vector<32x32xbf16>
    %cst_44 = arith.constant dense<0.000000e+00> : vector<8x32xf32>
    %89 = tpu.matmul %87, %88, %cst_44 {dimension_numbers = #tpu.dot_dimension_numbers<[1], [0], [0], [1], [0, 0, 1, 1], [], []>} : vector<8x32xbf16>, vector<32x32xbf16>, vector<8x32xf32> -> vector<8x32xf32>
    %c0_45 = arith.constant 0 : index
    %c0_46 = arith.constant 0 : index
    %90 = vector.load %arg12[%c0_45, %c0_46] : memref<1x32xf32, #tpu.memory_space<vmem>>, vector<1x32xf32>
    %91 = vector.broadcast %90 : vector<1x32xf32> to vector<8x32xf32>
    %92 = arith.addf %89, %91 : vector<8x32xf32>
    %93 = arith.addf %92, %12 : vector<8x32xf32>
    %c1_47 = arith.constant 1 : index
    %c0_48 = arith.constant 0 : index
    %94 = vector.load %arg5[%c1_47, %c0_48] : memref<3x32xf32, #tpu.memory_space<vmem>>, vector<1x32xf32>
    %c1_49 = arith.constant 1 : index
    %c0_50 = arith.constant 0 : index
    %95 = vector.load %arg6[%c1_49, %c0_50] : memref<3x32xf32, #tpu.memory_space<vmem>>, vector<1x32xf32>
    %cst_51 = arith.constant dense<0.000000e+00> : vector<8xf32>
    %96 = vector.multi_reduction <add>, %93, %cst_51 [1] : vector<8x32xf32> to vector<8xf32>
    %97 = vector.shape_cast %96 : vector<8xf32> to vector<8x1xf32>
    %cst_52 = arith.constant 3.200000e+01 : f32
    %98 = vector.broadcast %cst_52 : f32 to vector<8x1xf32>
    %99 = arith.divf %97, %98 : vector<8x1xf32>
    %100 = vector.broadcast %99 : vector<8x1xf32> to vector<8x32xf32>
    %101 = arith.subf %93, %100 : vector<8x32xf32>
    %102 = arith.mulf %101, %101 : vector<8x32xf32>
    %cst_53 = arith.constant dense<0.000000e+00> : vector<8xf32>
    %103 = vector.multi_reduction <add>, %102, %cst_53 [1] : vector<8x32xf32> to vector<8xf32>
    %104 = vector.shape_cast %103 : vector<8xf32> to vector<8x1xf32>
    %cst_54 = arith.constant 3.200000e+01 : f32
    %105 = vector.broadcast %cst_54 : f32 to vector<8x1xf32>
    %106 = arith.divf %104, %105 : vector<8x1xf32>
    %107 = vector.broadcast %99 : vector<8x1xf32> to vector<8x32xf32>
    %108 = arith.subf %93, %107 : vector<8x32xf32>
    %cst_55 = arith.constant 9.99999997E-7 : f32
    %109 = vector.broadcast %cst_55 : f32 to vector<8x1xf32>
    %110 = arith.addf %106, %109 : vector<8x1xf32>
    %111 = math.rsqrt %110 : vector<8x1xf32>
    %112 = vector.broadcast %111 : vector<8x1xf32> to vector<8x32xf32>
    %113 = arith.mulf %108, %112 : vector<8x32xf32>
    %114 = vector.broadcast %94 : vector<1x32xf32> to vector<8x32xf32>
    %115 = arith.mulf %113, %114 : vector<8x32xf32>
    %116 = vector.broadcast %95 : vector<1x32xf32> to vector<8x32xf32>
    %117 = arith.addf %115, %116 : vector<8x32xf32>
    %118 = arith.truncf %117 : vector<8x32xf32> to vector<8x32xbf16>
    %c0_56 = arith.constant 0 : index
    %c0_57 = arith.constant 0 : index
    %119 = vector.load %arg13[%c0_56, %c0_57] : memref<32x32xbf16, #tpu.memory_space<vmem>>, vector<32x32xbf16>
    %cst_58 = arith.constant dense<0.000000e+00> : vector<8x32xf32>
    %120 = tpu.matmul %118, %119, %cst_58 {dimension_numbers = #tpu.dot_dimension_numbers<[1], [0], [0], [1], [0, 0, 1, 1], [], []>} : vector<8x32xbf16>, vector<32x32xbf16>, vector<8x32xf32> -> vector<8x32xf32>
    %c0_59 = arith.constant 0 : index
    %c0_60 = arith.constant 0 : index
    %121 = vector.load %arg14[%c0_59, %c0_60] : memref<1x32xf32, #tpu.memory_space<vmem>>, vector<1x32xf32>
    %122 = vector.broadcast %121 : vector<1x32xf32> to vector<8x32xf32>
    %123 = arith.addf %120, %122 : vector<8x32xf32>
    %124 = tpu.iota {dimensions = array<i32: 1>} : vector<8x8xi32>
    %125 = vector.broadcast %5 : i32 to vector<8x8xi32>
    %126 = arith.cmpi slt, %124, %125 : vector<8x8xi32>
    %cst_61 = arith.constant 0.353553385 : f32
    %127 = vector.broadcast %cst_61 : f32 to vector<8x32xf32>
    %128 = arith.mulf %123, %127 : vector<8x32xf32>
    %129 = vector.extract_strided_slice %128 {offsets = [0, 0], sizes = [8, 8], strides = [1, 1]} : vector<8x32xf32> to vector<8x8xf32>
    %130 = arith.truncf %129 : vector<8x8xf32> to vector<8x8xbf16>
    %c0_62 = arith.constant 0 : index
    %c0_63 = arith.constant 0 : index
    %c0_64 = arith.constant 0 : index
    %131 = vector.load %arg27[%c0_62, %c0_63, %c0_64] : memref<4x8x8xbf16, #tpu.memory_space<vmem>>, vector<1x8x8xbf16>
    %132 = vector.shape_cast %131 : vector<1x8x8xbf16> to vector<8x8xbf16>
    %133 = vector.shape_cast %130 : vector<8x8xbf16> to vector<1x8x8xbf16>
    tpu.vector_store %arg27[%c0_62, %c0_63, %c0_64], %133 {strides = array<i32>} : memref<4x8x8xbf16, #tpu.memory_space<vmem>>, vector<1x8x8xbf16>,
    %134 = vector.extract_strided_slice %128 {offsets = [0, 8], sizes = [8, 8], strides = [1, 1]} : vector<8x32xf32> to vector<8x8xf32>
    %135 = arith.truncf %134 : vector<8x8xf32> to vector<8x8xbf16>
    %c1_65 = arith.constant 1 : index
    %c0_66 = arith.constant 0 : index
    %c0_67 = arith.constant 0 : index
    %136 = vector.load %arg27[%c1_65, %c0_66, %c0_67] : memref<4x8x8xbf16, #tpu.memory_space<vmem>>, vector<1x8x8xbf16>
    %137 = vector.shape_cast %136 : vector<1x8x8xbf16> to vector<8x8xbf16>
    %138 = vector.shape_cast %135 : vector<8x8xbf16> to vector<1x8x8xbf16>
    tpu.vector_store %arg27[%c1_65, %c0_66, %c0_67], %138 {strides = array<i32>} : memref<4x8x8xbf16, #tpu.memory_space<vmem>>, vector<1x8x8xbf16>,
    %139 = vector.extract_strided_slice %128 {offsets = [0, 16], sizes = [8, 8], strides = [1, 1]} : vector<8x32xf32> to vector<8x8xf32>
    %140 = arith.truncf %139 : vector<8x8xf32> to vector<8x8xbf16>
    %c2_68 = arith.constant 2 : index
    %c0_69 = arith.constant 0 : index
    %c0_70 = arith.constant 0 : index
    %141 = vector.load %arg27[%c2_68, %c0_69, %c0_70] : memref<4x8x8xbf16, #tpu.memory_space<vmem>>, vector<1x8x8xbf16>
    %142 = vector.shape_cast %141 : vector<1x8x8xbf16> to vector<8x8xbf16>
    %143 = vector.shape_cast %140 : vector<8x8xbf16> to vector<1x8x8xbf16>
    tpu.vector_store %arg27[%c2_68, %c0_69, %c0_70], %143 {strides = array<i32>} : memref<4x8x8xbf16, #tpu.memory_space<vmem>>, vector<1x8x8xbf16>,
    %144 = vector.extract_strided_slice %128 {offsets = [0, 24], sizes = [8, 8], strides = [1, 1]} : vector<8x32xf32> to vector<8x8xf32>
    %145 = arith.truncf %144 : vector<8x8xf32> to vector<8x8xbf16>
    %c3_71 = arith.constant 3 : index
    %c0_72 = arith.constant 0 : index
    %c0_73 = arith.constant 0 : index
    %146 = vector.load %arg27[%c3_71, %c0_72, %c0_73] : memref<4x8x8xbf16, #tpu.memory_space<vmem>>, vector<1x8x8xbf16>
    %147 = vector.shape_cast %146 : vector<1x8x8xbf16> to vector<8x8xbf16>
    %148 = vector.shape_cast %145 : vector<8x8xbf16> to vector<1x8x8xbf16>
    tpu.vector_store %arg27[%c3_71, %c0_72, %c0_73], %148 {strides = array<i32>} : memref<4x8x8xbf16, #tpu.memory_space<vmem>>, vector<1x8x8xbf16>,
    %c0_74 = arith.constant 0 : index
    %c0_75 = arith.constant 0 : index
    %c0_76 = arith.constant 0 : index
    %149 = vector.load %arg27[%c0_74, %c0_75, %c0_76] : memref<4x8x8xbf16, #tpu.memory_space<vmem>>, vector<4x8x8xbf16>
    %c0_77 = arith.constant 0 : index
    %c0_78 = arith.constant 0 : index
    %c0_79 = arith.constant 0 : index
    %c0_80 = arith.constant 0 : index
    %150 = vector.load %arg26[%c0_77, %c0_78, %c0_79, %c0_80] : memref<2x4x8x8xbf16, #tpu.memory_space<vmem>>, vector<1x4x8x8xbf16>
    %151 = vector.shape_cast %150 : vector<1x4x8x8xbf16> to vector<4x8x8xbf16>
    %c1_81 = arith.constant 1 : index
    %c0_82 = arith.constant 0 : index
    %c0_83 = arith.constant 0 : index
    %c0_84 = arith.constant 0 : index
    %152 = vector.load %arg26[%c1_81, %c0_82, %c0_83, %c0_84] : memref<2x4x8x8xbf16, #tpu.memory_space<vmem>>, vector<1x4x8x8xbf16>
    %153 = vector.shape_cast %152 : vector<1x4x8x8xbf16> to vector<4x8x8xbf16>
    %cst_85 = arith.constant dense<0.000000e+00> : vector<4x8x8xf32>
    %154 = tpu.matmul %149, %151, %cst_85 {dimension_numbers = #tpu.dot_dimension_numbers<[2], [2], [1], [1], [0, 0, 0, 1, 1, 1], [0], [0]>} : vector<4x8x8xbf16>, vector<4x8x8xbf16>, vector<4x8x8xf32> -> vector<4x8x8xf32>
    %155 = vector.shape_cast %126 : vector<8x8xi1> to vector<1x8x8xi1>
    %cst_86 = arith.constant -1.000000e+30 : f32
    %156 = vector.shape_cast %155 : vector<1x8x8xi1> to vector<1x8x8xi1>
    %157 = vector.broadcast %156 : vector<1x8x8xi1> to vector<4x8x8xi1>
    %158 = vector.broadcast %cst_86 : f32 to vector<4x8x8xf32>
    %159 = arith.select %157, %154, %158 : vector<4x8x8xi1>, vector<4x8x8xf32>
    %cst_87 = arith.constant dense<0xFF800000> : vector<4x8xf32>
    %160 = vector.multi_reduction <maximumf>, %159, %cst_87 [2] : vector<4x8x8xf32> to vector<4x8xf32>
    %161 = vector.shape_cast %160 : vector<4x8xf32> to vector<4x8x1xf32>
    %162 = vector.broadcast %161 : vector<4x8x1xf32> to vector<4x8x8xf32>
    %163 = arith.subf %159, %162 : vector<4x8x8xf32>
    %164 = arith.truncf %163 : vector<4x8x8xf32> to vector<4x8x8xbf16>
    %165 = math.exp %164 : vector<4x8x8xbf16>
    %166 = arith.extf %165 : vector<4x8x8xbf16> to vector<4x8x8xf32>
    %cst_88 = arith.constant dense<0.000000e+00> : vector<4x8xf32>
    %167 = vector.multi_reduction <add>, %166, %cst_88 [2] : vector<4x8x8xf32> to vector<4x8xf32>
    %168 = vector.shape_cast %167 : vector<4x8xf32> to vector<4x8x1xf32>
    %cst_89 = arith.constant dense<0.000000e+00> : vector<4x8x8xf32>
    %169 = tpu.matmul %165, %153, %cst_89 {dimension_numbers = #tpu.dot_dimension_numbers<[2], [1], [1], [2], [0, 0, 0, 1, 1, 2], [0], [0]>} : vector<4x8x8xbf16>, vector<4x8x8xbf16>, vector<4x8x8xf32> -> vector<4x8x8xf32>
    %170 = tpu.reciprocal %168 {approx = true} : vector<4x8x1xf32> -> vector<4x8x1xf32>
    %171 = vector.broadcast %170 : vector<4x8x1xf32> to vector<4x8x8xf32>
    %172 = arith.mulf %169, %171 : vector<4x8x8xf32>
    %173 = vector.extract_strided_slice %172 {offsets = [0, 0, 0], sizes = [1, 8, 8], strides = [1, 1, 1]} : vector<4x8x8xf32> to vector<1x8x8xf32>
    %174 = vector.shape_cast %173 : vector<1x8x8xf32> to vector<8x8xf32>
    %c0_90 = arith.constant 0 : index
    %c0_91 = arith.constant 0 : index
    %175 = vector.load %arg28[%c0_90, %c0_91] : memref<8x32xf32, #tpu.memory_space<vmem>>, vector<8x8xf32>
    tpu.vector_store %arg28[%c0_90, %c0_91], %174 {strides = array<i32>} : memref<8x32xf32, #tpu.memory_space<vmem>>, vector<8x8xf32>,
    %176 = vector.extract_strided_slice %172 {offsets = [1, 0, 0], sizes = [1, 8, 8], strides = [1, 1, 1]} : vector<4x8x8xf32> to vector<1x8x8xf32>
    %177 = vector.shape_cast %176 : vector<1x8x8xf32> to vector<8x8xf32>
    %c0_92 = arith.constant 0 : index
    %c8_93 = arith.constant 8 : index
    %178 = vector.load %arg28[%c0_92, %c8_93] : memref<8x32xf32, #tpu.memory_space<vmem>>, vector<8x8xf32>
    tpu.vector_store %arg28[%c0_92, %c8_93], %177 {strides = array<i32>} : memref<8x32xf32, #tpu.memory_space<vmem>>, vector<8x8xf32>,
    %179 = vector.extract_strided_slice %172 {offsets = [2, 0, 0], sizes = [1, 8, 8], strides = [1, 1, 1]} : vector<4x8x8xf32> to vector<1x8x8xf32>
    %180 = vector.shape_cast %179 : vector<1x8x8xf32> to vector<8x8xf32>
    %c0_94 = arith.constant 0 : index
    %c16_95 = arith.constant 16 : index
    %181 = vector.load %arg28[%c0_94, %c16_95] : memref<8x32xf32, #tpu.memory_space<vmem>>, vector<8x8xf32>
    tpu.vector_store %arg28[%c0_94, %c16_95], %180 {strides = array<i32>} : memref<8x32xf32, #tpu.memory_space<vmem>>, vector<8x8xf32>,
    %182 = vector.extract_strided_slice %172 {offsets = [3, 0, 0], sizes = [1, 8, 8], strides = [1, 1, 1]} : vector<4x8x8xf32> to vector<1x8x8xf32>
    %183 = vector.shape_cast %182 : vector<1x8x8xf32> to vector<8x8xf32>
    %c0_96 = arith.constant 0 : index
    %c24_97 = arith.constant 24 : index
    %184 = vector.load %arg28[%c0_96, %c24_97] : memref<8x32xf32, #tpu.memory_space<vmem>>, vector<8x8xf32>
    tpu.vector_store %arg28[%c0_96, %c24_97], %183 {strides = array<i32>} : memref<8x32xf32, #tpu.memory_space<vmem>>, vector<8x8xf32>,
    %c0_98 = arith.constant 0 : index
    %c0_99 = arith.constant 0 : index
    %185 = vector.load %arg28[%c0_98, %c0_99] : memref<8x32xf32, #tpu.memory_space<vmem>>, vector<8x32xf32>
    %186 = arith.truncf %185 : vector<8x32xf32> to vector<8x32xbf16>
    %c0_100 = arith.constant 0 : index
    %c0_101 = arith.constant 0 : index
    %187 = vector.load %arg17[%c0_100, %c0_101] : memref<32x32xbf16, #tpu.memory_space<vmem>>, vector<32x32xbf16>
    %cst_102 = arith.constant dense<0.000000e+00> : vector<8x32xf32>
    %188 = tpu.matmul %186, %187, %cst_102 {dimension_numbers = #tpu.dot_dimension_numbers<[1], [0], [0], [1], [0, 0, 1, 1], [], []>} : vector<8x32xbf16>, vector<32x32xbf16>, vector<8x32xf32> -> vector<8x32xf32>
    %c0_103 = arith.constant 0 : index
    %c0_104 = arith.constant 0 : index
    %189 = vector.load %arg18[%c0_103, %c0_104] : memref<1x32xf32, #tpu.memory_space<vmem>>, vector<1x32xf32>
    %190 = vector.broadcast %189 : vector<1x32xf32> to vector<8x32xf32>
    %191 = arith.addf %188, %190 : vector<8x32xf32>
    %192 = arith.addf %191, %93 : vector<8x32xf32>
    %c2_105 = arith.constant 2 : index
    %c0_106 = arith.constant 0 : index
    %193 = vector.load %arg5[%c2_105, %c0_106] : memref<3x32xf32, #tpu.memory_space<vmem>>, vector<1x32xf32>
    %c2_107 = arith.constant 2 : index
    %c0_108 = arith.constant 0 : index
    %194 = vector.load %arg6[%c2_107, %c0_108] : memref<3x32xf32, #tpu.memory_space<vmem>>, vector<1x32xf32>
    %cst_109 = arith.constant dense<0.000000e+00> : vector<8xf32>
    %195 = vector.multi_reduction <add>, %192, %cst_109 [1] : vector<8x32xf32> to vector<8xf32>
    %196 = vector.shape_cast %195 : vector<8xf32> to vector<8x1xf32>
    %cst_110 = arith.constant 3.200000e+01 : f32
    %197 = vector.broadcast %cst_110 : f32 to vector<8x1xf32>
    %198 = arith.divf %196, %197 : vector<8x1xf32>
    %199 = vector.broadcast %198 : vector<8x1xf32> to vector<8x32xf32>
    %200 = arith.subf %192, %199 : vector<8x32xf32>
    %201 = arith.mulf %200, %200 : vector<8x32xf32>
    %cst_111 = arith.constant dense<0.000000e+00> : vector<8xf32>
    %202 = vector.multi_reduction <add>, %201, %cst_111 [1] : vector<8x32xf32> to vector<8xf32>
    %203 = vector.shape_cast %202 : vector<8xf32> to vector<8x1xf32>
    %cst_112 = arith.constant 3.200000e+01 : f32
    %204 = vector.broadcast %cst_112 : f32 to vector<8x1xf32>
    %205 = arith.divf %203, %204 : vector<8x1xf32>
    %206 = vector.broadcast %198 : vector<8x1xf32> to vector<8x32xf32>
    %207 = arith.subf %192, %206 : vector<8x32xf32>
    %cst_113 = arith.constant 9.99999997E-7 : f32
    %208 = vector.broadcast %cst_113 : f32 to vector<8x1xf32>
    %209 = arith.addf %205, %208 : vector<8x1xf32>
    %210 = math.rsqrt %209 : vector<8x1xf32>
    %211 = vector.broadcast %210 : vector<8x1xf32> to vector<8x32xf32>
    %212 = arith.mulf %207, %211 : vector<8x32xf32>
    %213 = vector.broadcast %193 : vector<1x32xf32> to vector<8x32xf32>
    %214 = arith.mulf %212, %213 : vector<8x32xf32>
    %215 = vector.broadcast %194 : vector<1x32xf32> to vector<8x32xf32>
    %216 = arith.addf %214, %215 : vector<8x32xf32>
    %217 = arith.truncf %216 : vector<8x32xf32> to vector<8x32xbf16>
    %c0_114 = arith.constant 0 : index
    %c0_115 = arith.constant 0 : index
    %218 = vector.load %arg19[%c0_114, %c0_115] : memref<32x64xbf16, #tpu.memory_space<vmem>>, vector<32x64xbf16>
    %cst_116 = arith.constant dense<0.000000e+00> : vector<8x64xf32>
    %219 = tpu.matmul %217, %218, %cst_116 {dimension_numbers = #tpu.dot_dimension_numbers<[1], [0], [0], [1], [0, 0, 1, 1], [], []>} : vector<8x32xbf16>, vector<32x64xbf16>, vector<8x64xf32> -> vector<8x64xf32>
    %c0_117 = arith.constant 0 : index
    %c0_118 = arith.constant 0 : index
    %220 = vector.load %arg20[%c0_117, %c0_118] : memref<1x64xf32, #tpu.memory_space<vmem>>, vector<1x64xf32>
    %221 = vector.broadcast %220 : vector<1x64xf32> to vector<8x64xf32>
    %222 = arith.addf %219, %221 : vector<8x64xf32>
    %cst_119 = arith.constant 0.000000e+00 : f32
    %223 = vector.broadcast %cst_119 : f32 to vector<8x64xf32>
    %224 = arith.maximumf %222, %223 : vector<8x64xf32>
    %225 = arith.truncf %224 : vector<8x64xf32> to vector<8x64xbf16>
    %c0_120 = arith.constant 0 : index
    %c0_121 = arith.constant 0 : index
    %226 = vector.load %arg21[%c0_120, %c0_121] : memref<64x32xbf16, #tpu.memory_space<vmem>>, vector<64x32xbf16>
    %cst_122 = arith.constant dense<0.000000e+00> : vector<8x32xf32>
    %227 = tpu.matmul %225, %226, %cst_122 {dimension_numbers = #tpu.dot_dimension_numbers<[1], [0], [0], [1], [0, 0, 1, 1], [], []>} : vector<8x64xbf16>, vector<64x32xbf16>, vector<8x32xf32> -> vector<8x32xf32>
    %c0_123 = arith.constant 0 : index
    %c0_124 = arith.constant 0 : index
    %228 = vector.load %arg22[%c0_123, %c0_124] : memref<1x32xf32, #tpu.memory_space<vmem>>, vector<1x32xf32>
    %229 = vector.broadcast %228 : vector<1x32xf32> to vector<8x32xf32>
    %230 = arith.addf %227, %229 : vector<8x32xf32>
    %231 = arith.addf %230, %192 : vector<8x32xf32>
    %c0_125 = arith.constant 0 : index
    %c0_126 = arith.constant 0 : index
    %c0_127 = arith.constant 0 : index
    %232 = vector.load %arg23[%c0_125, %c0_126, %c0_127] : memref<1x8x32xf32, #tpu.memory_space<vmem>>, vector<1x8x32xf32>
    %233 = vector.shape_cast %232 : vector<1x8x32xf32> to vector<8x32xf32>
    %234 = vector.shape_cast %231 : vector<8x32xf32> to vector<1x8x32xf32>
    tpu.vector_store %arg23[%c0_125, %c0_126, %c0_127], %234 {strides = array<i32>} : memref<1x8x32xf32, #tpu.memory_space<vmem>>, vector<1x8x32xf32>,
    return
  }
  func.func @transform_0(%arg0: i32, %arg1: i32, %arg2: memref<2x2xi32, #tpu.memory_space<smem>>) -> (i32, i32, i32) {
    %c0_i32 = arith.constant 0 : i32
    %c0_i32_0 = arith.constant 0 : i32
    %c0_i32_1 = arith.constant 0 : i32
    return %arg0, %c0_i32, %c0_i32_0 : i32, i32, i32
  }
  func.func @transform_1(%arg0: i32, %arg1: i32, %arg2: memref<2x2xi32, #tpu.memory_space<smem>>) -> (i32, i32, i32) {
    %c0_i32 = arith.constant 0 : i32
    %c0_i32_0 = arith.constant 0 : i32
    %c0_i32_1 = arith.constant 0 : i32
    return %arg0, %c0_i32, %c0_i32_0 : i32, i32, i32
  }
  func.func @transform_2(%arg0: i32, %arg1: i32, %arg2: memref<2x2xi32, #tpu.memory_space<smem>>) -> (i32, i32) {
    %c0_i32 = arith.constant 0 : i32
    %c0_i32_0 = arith.constant 0 : i32
    %c0_i32_1 = arith.constant 0 : i32
    return %c0_i32, %c0_i32_0 : i32, i32
  }
  func.func @transform_3(%arg0: i32, %arg1: i32, %arg2: memref<2x2xi32, #tpu.memory_space<smem>>) -> (i32, i32) {
    %c0_i32 = arith.constant 0 : i32
    %c0_i32_0 = arith.constant 0 : i32
    %c0_i32_1 = arith.constant 0 : i32
    return %c0_i32, %c0_i32_0 : i32, i32
  }
  func.func @transform_4(%arg0: i32, %arg1: i32, %arg2: memref<2x2xi32, #tpu.memory_space<smem>>) -> (i32, i32) {
    %c0_i32 = arith.constant 0 : i32
    %c0_i32_0 = arith.constant 0 : i32
    %c0_i32_1 = arith.constant 0 : i32
    return %c0_i32, %c0_i32_0 : i32, i32
  }
  func.func @transform_5(%arg0: i32, %arg1: i32, %arg2: memref<2x2xi32, #tpu.memory_space<smem>>) -> (i32, i32) {
    %c0_i32 = arith.constant 0 : i32
    %c0_i32_0 = arith.constant 0 : i32
    %c0_i32_1 = arith.constant 0 : i32
    return %c0_i32, %c0_i32_0 : i32, i32
  }
  func.func @transform_6(%arg0: i32, %arg1: i32, %arg2: memref<2x2xi32, #tpu.memory_space<smem>>) -> (i32, i32) {
    %c0_i32 = arith.constant 0 : i32
    %c0_i32_0 = arith.constant 0 : i32
    %c0_i32_1 = arith.constant 0 : i32
    return %c0_i32, %c0_i32_0 : i32, i32
  }
  func.func @transform_7(%arg0: i32, %arg1: i32, %arg2: memref<2x2xi32, #tpu.memory_space<smem>>) -> (i32, i32) {
    %c0_i32 = arith.constant 0 : i32
    %c0_i32_0 = arith.constant 0 : i32
    %c0_i32_1 = arith.constant 0 : i32
    return %c0_i32, %c0_i32_0 : i32, i32
  }
  func.func @transform_8(%arg0: i32, %arg1: i32, %arg2: memref<2x2xi32, #tpu.memory_space<smem>>) -> (i32, i32) {
    %c0_i32 = arith.constant 0 : i32
    %c0_i32_0 = arith.constant 0 : i32
    %c0_i32_1 = arith.constant 0 : i32
    return %c0_i32, %c0_i32_0 : i32, i32
  }
  func.func @transform_9(%arg0: i32, %arg1: i32, %arg2: memref<2x2xi32, #tpu.memory_space<smem>>) -> (i32, i32) {
    %c0_i32 = arith.constant 0 : i32
    %c0_i32_0 = arith.constant 0 : i32
    %c0_i32_1 = arith.constant 0 : i32
    return %c0_i32, %c0_i32_0 : i32, i32
  }
  func.func @transform_10(%arg0: i32, %arg1: i32, %arg2: memref<2x2xi32, #tpu.memory_space<smem>>) -> (i32, i32) {
    %c0_i32 = arith.constant 0 : i32
    %c0_i32_0 = arith.constant 0 : i32
    %c0_i32_1 = arith.constant 0 : i32
    return %c0_i32, %c0_i32_0 : i32, i32
  }
  func.func @transform_11(%arg0: i32, %arg1: i32, %arg2: memref<2x2xi32, #tpu.memory_space<smem>>) -> (i32, i32) {
    %c0_i32 = arith.constant 0 : i32
    %c0_i32_0 = arith.constant 0 : i32
    %c0_i32_1 = arith.constant 0 : i32
    return %c0_i32, %c0_i32_0 : i32, i32
  }
  func.func @transform_12(%arg0: i32, %arg1: i32, %arg2: memref<2x2xi32, #tpu.memory_space<smem>>) -> (i32, i32) {
    %c0_i32 = arith.constant 0 : i32
    %c0_i32_0 = arith.constant 0 : i32
    %c0_i32_1 = arith.constant 0 : i32
    return %c0_i32, %c0_i32_0 : i32, i32
  }
  func.func @transform_13(%arg0: i32, %arg1: i32, %arg2: memref<2x2xi32, #tpu.memory_space<smem>>) -> (i32, i32) {
    %c0_i32 = arith.constant 0 : i32
    %c0_i32_0 = arith.constant 0 : i32
    %c0_i32_1 = arith.constant 0 : i32
    return %c0_i32, %c0_i32_0 : i32, i32
  }
  func.func @transform_14(%arg0: i32, %arg1: i32, %arg2: memref<2x2xi32, #tpu.memory_space<smem>>) -> (i32, i32) {
    %c0_i32 = arith.constant 0 : i32
    %c0_i32_0 = arith.constant 0 : i32
    %c0_i32_1 = arith.constant 0 : i32
    return %c0_i32, %c0_i32_0 : i32, i32
  }
  func.func @transform_15(%arg0: i32, %arg1: i32, %arg2: memref<2x2xi32, #tpu.memory_space<smem>>) -> (i32, i32) {
    %c0_i32 = arith.constant 0 : i32
    %c0_i32_0 = arith.constant 0 : i32
    %c0_i32_1 = arith.constant 0 : i32
    return %c0_i32, %c0_i32_0 : i32, i32
  }
  func.func @transform_16(%arg0: i32, %arg1: i32, %arg2: memref<2x2xi32, #tpu.memory_space<smem>>) -> (i32, i32) {
    %c0_i32 = arith.constant 0 : i32
    %c0_i32_0 = arith.constant 0 : i32
    %c0_i32_1 = arith.constant 0 : i32
    return %c0_i32, %c0_i32_0 : i32, i32
  }
  func.func @transform_17(%arg0: i32, %arg1: i32, %arg2: memref<2x2xi32, #tpu.memory_space<smem>>) -> (i32, i32) {
    %c0_i32 = arith.constant 0 : i32
    %c0_i32_0 = arith.constant 0 : i32
    %c0_i32_1 = arith.constant 0 : i32
    return %c0_i32, %c0_i32_0 : i32, i32
  }
  func.func @transform_18(%arg0: i32, %arg1: i32, %arg2: memref<2x2xi32, #tpu.memory_space<smem>>) -> (i32, i32) {
    %c0_i32 = arith.constant 0 : i32
    %c0_i32_0 = arith.constant 0 : i32
    %c0_i32_1 = arith.constant 0 : i32
    return %c0_i32, %c0_i32_0 : i32, i32
  }
  func.func @transform_19(%arg0: i32, %arg1: i32, %arg2: memref<2x2xi32, #tpu.memory_space<smem>>) -> (i32, i32) {
    %c0_i32 = arith.constant 0 : i32
    %c0_i32_0 = arith.constant 0 : i32
    %c0_i32_1 = arith.constant 0 : i32
    return %c0_i32, %c0_i32_0 : i32, i32
  }
  func.func @transform_20(%arg0: i32, %arg1: i32, %arg2: memref<2x2xi32, #tpu.memory_space<smem>>) -> (i32, i32, i32) {
    %c0_i32 = arith.constant 0 : i32
    %c0_i32_0 = arith.constant 0 : i32
    return %arg0, %arg1, %c0_i32 : i32, i32, i32
  }
}

</mosaic_0001>

<llo_original>
// kernel: tpu_custom_call.1
$region0: #{tpu_custom_call.1}
  #allocation0 [shape = 'u32[]', space=smem, size = 0x4, offset = 0x4, fixed_abs, tag = 'smem constant byte address 0x4 - core index']
  #allocation1 [shape = 'u32[144,128]{1,0:T(1,128)}', space=vmem, size = 0x12000, scoped, tag = 'internal scratch']
  #allocation2 [shape = 'bf16[16,32]{1,0:T(8,128)(2,1)}', space=vmem, size = 0x1000, scoped, tag = 'scratch operand']
  #allocation3 [shape = 'bf16[2,4,16,8]{3,2,1,0:T(8,128)(2,1)}', space=vmem, size = 0x8000, scoped, tag = 'scratch operand']
  #allocation4 [shape = 'bf16[2,4,8,8]{3,2,1,0:T(8,128)(2,1)}', space=vmem, size = 0x4000, scoped, tag = 'scratch operand']
  #allocation5 [shape = 'bf16[4,8,8]{2,1,0:T(8,128)(2,1)}', space=vmem, size = 0x2000, scoped, tag = 'scratch operand']
  #allocation6 [shape = 'f32[8,32]{1,0:T(8,128)}', space=vmem, size = 0x1000, scoped, tag = 'scratch operand']
  #allocation7 [shape = 's32[1]{0}', space=sflag, size = 0x4, scoped, tag = 'scoped memory for tpu_custom_call.1']
  #allocation8 [shape = 'u8[1024]{0}', space=smem, size = 0x400, scoped, tag = 'prefetched SMEM operand 0']
  %s0 = inlined_call_operand.hbm [shape: s32[2,2], index: 0, kind: input, shape index: {}]
  %s1 = inlined_call_operand.vmem [shape: bf16[2,16,32], index: 1, kind: input, shape index: {}]
  %s2 = inlined_call_operand.hbm [shape: bf16[2,8,32], index: 2, kind: input, shape index: {}]
  %s3 = inlined_call_operand.hbm [shape: f32[3,32], index: 3, kind: input, shape index: {}]
  %s4 = inlined_call_operand.hbm [shape: f32[3,32], index: 4, kind: input, shape index: {}]
  %s5 = inlined_call_operand.vmem [shape: bf16[32,32], index: 5, kind: input, shape index: {}]
  %s6 = inlined_call_operand.hbm [shape: f32[1,32], index: 6, kind: input, shape index: {}]
  %s7 = inlined_call_operand.vmem [shape: bf16[32,64], index: 7, kind: input, shape index: {}]
  %s8 = inlined_call_operand.hbm [shape: f32[1,64], index: 8, kind: input, shape index: {}]
  %s9 = inlined_call_operand.vmem [shape: bf16[32,32], index: 9, kind: input, shape index: {}]
  %s10 = inlined_call_operand.hbm [shape: f32[1,32], index: 10, kind: input, shape index: {}]
  %s11 = inlined_call_operand.hbm [shape: bf16[32,32], index: 11, kind: input, shape index: {}]
  %s12 = inlined_call_operand.hbm [shape: f32[1,32], index: 12, kind: input, shape index: {}]
  %s13 = inlined_call_operand.hbm [shape: bf16[32,64], index: 13, kind: input, shape index: {}]
  %s14 = inlined_call_operand.hbm [shape: f32[1,64], index: 14, kind: input, shape index: {}]
  %s15 = inlined_call_operand.hbm [shape: bf16[32,32], index: 15, kind: input, shape index: {}]
  %s16 = inlined_call_operand.hbm [shape: f32[1,32], index: 16, kind: input, shape index: {}]
  %s17 = inlined_call_operand.hbm [shape: bf16[32,64], index: 17, kind: input, shape index: {}]
  %s18 = inlined_call_operand.hbm [shape: f32[1,64], index: 18, kind: input, shape index: {}]
  %s19 = inlined_call_operand.vmem [shape: bf16[64,32], index: 19, kind: input, shape index: {}]
  %s20 = inlined_call_operand.vmem [shape: f32[1,32], index: 20, kind: input, shape index: {}]
  %s21 = inlined_call_operand.hbm [shape: f32[2,16,32], index: 21, kind: output, shape index: {}]
  %s22 = sld [smem:[#allocation0]]
  $region173: #{tpu_custom_call.1} parent=0
    _
  %s24 = ssub.s32 1, %s22
  %s25 = scalar_select 0, %s24, %s22
  %27 = dma.hbm_to_smem %s0, 32, [#allocation8], [#allocation7]
  %28 = dma.done [#allocation7], 32
  %29 = sfence
  $region1: #{tpu_custom_call.1} parent=0
    #allocation9 [shape = 'u8[4096]{0}', space=vmem, size = 0x1000, scoped, tag = 'input window, operand 2']
    #allocation10 [shape = 's32[2]{0}', space=sflag, size = 0x8, scoped, tag = 'scoped memory for tpu_custom_call.1']
    #allocation11 [shape = 's32[2]{0}', space=sflag, size = 0x8, scoped, tag = 'scoped memory for tpu_custom_call.1']
    #allocation12 [shape = 'u8[2048]{0}', space=vmem, size = 0x800, scoped, tag = 'input window, operand 3, single buffered']
    #allocation13 [shape = 's32[1]{0}', space=sflag, size = 0x4, scoped, tag = 'scoped memory for tpu_custom_call.1']
    #allocation14 [shape = 'u8[2048]{0}', space=vmem, size = 0x800, scoped, tag = 'input window, operand 4, single buffered']
    #allocation15 [shape = 'u8[512]{0}', space=vmem, size = 0x400, scoped, tag = 'input window, operand 6, single buffered']
    #allocation16 [shape = 's32[1]{0}', space=sflag, size = 0x4, scoped, tag = 'scoped memory for tpu_custom_call.1']
    #allocation17 [shape = 'u8[512]{0}', space=vmem, size = 0x400, scoped, tag = 'input window, operand 8, single buffered']
    #allocation18 [shape = 'u8[512]{0}', space=vmem, size = 0x400, scoped, tag = 'input window, operand 10, single buffered']
    #allocation19 [shape = 's32[1]{0}', space=sflag, size = 0x4, scoped, tag = 'scoped memory for tpu_custom_call.1']
    #allocation20 [shape = 'u8[8192]{0}', space=vmem, size = 0x2000, scoped, tag = 'input window, operand 11, single buffered']
    #allocation21 [shape = 'u8[512]{0}', space=vmem, size = 0x400, scoped, tag = 'input window, operand 12, single buffered']
    #allocation22 [shape = 's32[1]{0}', space=sflag, size = 0x4, scoped, tag = 'scoped memory for tpu_custom_call.1']
    #allocation23 [shape = 'u8[8192]{0}', space=vmem, size = 0x2000, scoped, tag = 'input window, operand 13, single buffered']
    #allocation24 [shape = 'u8[512]{0}', space=vmem, size = 0x400, scoped, tag = 'input window, operand 14, single buffered']
    #allocation25 [shape = 's32[1]{0}', space=sflag, size = 0x4, scoped, tag = 'scoped memory for tpu_custom_call.1']
    #allocation26 [shape = 'u8[8192]{0}', space=vmem, size = 0x2000, scoped, tag = 'input window, operand 15, single buffered']
    #allocation27 [shape = 'u8[512]{0}', space=vmem, size = 0x400, scoped, tag = 'input window, operand 16, single buffered']
    #allocation28 [shape = 's32[1]{0}', space=sflag, size = 0x4, scoped, tag = 'scoped memory for tpu_custom_call.1']
    #allocation29 [shape = 'u8[8192]{0}', space=vmem, size = 0x2000, scoped, tag = 'input window, operand 17, single buffered']
    #allocation30 [shape = 'u8[512]{0}', space=vmem, size = 0x400, scoped, tag = 'input window, operand 18, single buffered']
    #allocation31 [shape = 's32[1]{0}', space=sflag, size = 0x4, scoped, tag = 'scoped memory for tpu_custom_call.1']
    #allocation32 [shape = 'u8[8192]{0}', space=vmem, size = 0x2000, scoped, tag = 'output window, operand 0']
    %30 = vsyncpa [#allocation10], 0
    %s31 = scalar_lea.sflag [#allocation10], 1
    %32 = vsyncpa %s31, 0
    %33 = vsyncpa [#allocation13], 0
    %34 = vsyncpa [#allocation16], 0
    %35 = vsyncpa [#allocation19], 0
    %36 = vsyncpa [#allocation22], 0
    %37 = vsyncpa [#allocation25], 0
    %38 = vsyncpa [#allocation28], 0
    %39 = vsyncpa [#allocation31], 0
    %40 = vsyncpa [#allocation11], 0
    %s41 = scalar_lea.sflag [#allocation11], 1
    %42 = vsyncpa %s41, 0
    loop: start=0, step=1, limit=6
    $region2: #{tpu_custom_call.1} parent=1 // loop_pre_header
      _
    $region3: #{tpu_custom_call.1} parent=1 // loop_header
      %s44 = sphi 0, %s48
      %p45 = scmp.ge.s32.totalorder %s44, 6
      %s51 = sphi 0, %s63
      %s52 = sphi 0, %s59
      %s53 = sphi 0, %s51
      %s54 = sphi 0, %s52
      %s55 = sphi 0, %s53
      %s56 = sphi 0, %s54
      %s66 = sphi 0, %s68
      %s69 = sphi 0, %s66
      %s70 = sphi 0, %s69
      %s86 = sphi 0, %s70
      %s92 = sphi 0, %s94
      %s95 = sphi 0, %s92
      %s96 = sphi 0, %s95
      %s112 = sphi 0, %s96
      %s116 = sphi 0, %s116
      %s118 = sphi 0, %s116
      %s119 = sphi 0, %s118
      %s133 = sphi 0, %s119
      %s137 = sphi 0, %s137
      %s139 = sphi 0, %s137
      %s140 = sphi 0, %s139
      %s154 = sphi 0, %s140
      %s158 = sphi 0, %s158
      %s160 = sphi 0, %s158
      %s161 = sphi 0, %s160
      %s175 = sphi 0, %s161
      %s179 = sphi 0, %s179
      %s181 = sphi 0, %s179
      %s182 = sphi 0, %s181
      %s196 = sphi 0, %s182
      %s200 = sphi 0, %s200
      %s202 = sphi 0, %s200
      %s203 = sphi 0, %s202
      %s217 = sphi 0, %s203
      %s221 = sphi 0, %s221
      %s223 = sphi 0, %s221
      %s224 = sphi 0, %s223
      %s238 = sphi 0, %s224
      %s242 = sphi 0, %s242
      %s244 = sphi 0, %s242
      %s245 = sphi 0, %s244
      %s259 = sphi 0, %s245
      %s263 = sphi 0, %s263
      %s265 = sphi 0, %s263
      %s266 = sphi 0, %s265
      %s280 = sphi 0, %s266
      %s284 = sphi 0, %s284
      %s286 = sphi 0, %s284
      %s287 = sphi 0, %s286
      %s301 = sphi 0, %s287
      %s305 = sphi 0, %s305
      %s307 = sphi 0, %s305
      %s308 = sphi 0, %s307
      %s322 = sphi 0, %s308
      %s326 = sphi 0, %s326
      %s328 = sphi 0, %s326
      %s329 = sphi 0, %s328
      %s343 = sphi 0, %s329
      %s347 = sphi 0, %s347
      %s349 = sphi 0, %s347
      %s350 = sphi 0, %s349
      %s364 = sphi 0, %s350
      %s368 = sphi 0, %s368
      %s370 = sphi 0, %s368
      %s371 = sphi 0, %s370
      %s385 = sphi 0, %s371
      %s389 = sphi 0, %s389
      %s391 = sphi 0, %s389
      %s392 = sphi 0, %s391
      %s406 = sphi 0, %s392
      %s410 = sphi 0, %s410
      %s412 = sphi 0, %s410
      %s413 = sphi 0, %s412
      %s427 = sphi 0, %s413
      %s431 = sphi 0, %s431
      %s433 = sphi 0, %s431
      %s434 = sphi 0, %s433
      %s448 = sphi 0, %s434
      %s452 = sphi 0, %s452
      %s454 = sphi 0, %s452
      %s455 = sphi 0, %s454
      %s469 = sphi 0, %s455
      %s473 = sphi 0, %s473
      %s475 = sphi 0, %s473
      %s476 = sphi 0, %s475
      %s490 = sphi 0, %s476
      %s498 = sphi 0, %s500
      %s501 = sphi 0, %s498
      %s502 = sphi 0, %s501
      %s518 = sphi 0, %s502
    $region4: #{tpu_custom_call.1} parent=1 // loop_header_branch
      %47 = sbr.rel (%p45) target = $region8
    $region5: #{tpu_custom_call.1} parent=1 // loop_body
      %s49 = ssub.s32 %s44, 1
      %s50 = ssub.s32 %s44, 2
      %s57 = sadd.s32 1, %s52
      %p58 = scmp.ge.s32.totalorder %s57, 2
      %s59 = scalar_select %p58, 0, %s57
      %s60 = sadd.s32 1, %s51
      %s61 = scalar_select %p58, %s60, %s51
      %p62 = scmp.ge.s32.totalorder %s61, 2
      %s63 = scalar_select %p62, 0, %s61
      %s64 = ssub.s32 %s51, %s63
      %p65 = scmp.eq.s32.totalorder %s64, 0
      %s67 = sadd.s32 %s66, 1
      %s68 = scalar_select %p65, %s66, %s67
      %p71 = pneg %p65
      %p72 = scmp.eq.s32.totalorder %s44, 3
      %p73 = por %p71, %p72
      %p74 = scmp.ne.s32.totalorder %s66, %s69
      %p75 = scmp.eq.s32.totalorder %s44, 0
      %p76 = por %p74, %p75
      %p77 = scmp.ne.s32.totalorder %s66, %s69
      %p78 = scmp.eq.s32.totalorder %s49, 3
      %p79 = por %p77, %p78
      %p80 = scmp.ne.s32.totalorder %s69, %s70
      %p81 = scmp.eq.s32.totalorder %s49, 0
      %p82 = por %p80, %p81
      %p83 = scmp.ne.s32.totalorder %s69, %s70
      %p84 = scmp.eq.s32.totalorder %s50, 3
      %p85 = por %p83, %p84
      %p87 = scmp.ne.s32.totalorder %s70, %s86
      %p88 = scmp.eq.s32.totalorder %s50, 0
      %p89 = por %p87, %p88
      %s90 = ssub.s32 %s51, %s63
      %p91 = scmp.eq.s32.totalorder %s90, 0
      %s93 = sadd.s32 %s92, 1
      %s94 = scalar_select %p91, %s92, %s93
      %p97 = pneg %p91
      %p98 = scmp.eq.s32.totalorder %s44, 3
      %p99 = por %p97, %p98
      %p100 = scmp.ne.s32.totalorder %s92, %s95
      %p101 = scmp.eq.s32.totalorder %s44, 0
      %p102 = por %p100, %p101
      %p103 = scmp.ne.s32.totalorder %s92, %s95
      %p104 = scmp.eq.s32.totalorder %s49, 3
      %p105 = por %p103, %p104
      %p106 = scmp.ne.s32.totalorder %s95, %s96
      %p107 = scmp.eq.s32.totalorder %s49, 0
      %p108 = por %p106, %p107
      %p109 = scmp.ne.s32.totalorder %s95, %s96
      %p110 = scmp.eq.s32.totalorder %s50, 3
      %p111 = por %p109, %p110
      %p113 = scmp.ne.s32.totalorder %s96, %s112
      %p114 = scmp.eq.s32.totalorder %s50, 0
      %p115 = por %p113, %p114
      %s117 = sadd.s32 %s116, 1
      %p120 = scmp.eq.s32.totalorder %s44, 3
      %p121 = scmp.ne.s32.totalorder %s116, %s118
      %p122 = scmp.eq.s32.totalorder %s44, 0
      %p123 = por %p121, %p122
      %p124 = scmp.ne.s32.totalorder %s116, %s118
      %p125 = scmp.eq.s32.totalorder %s49, 3
      %p126 = por %p124, %p125
      %p127 = scmp.ne.s32.totalorder %s118, %s119
      %p128 = scmp.eq.s32.totalorder %s49, 0
      %p129 = por %p127, %p128
      %p130 = scmp.ne.s32.totalorder %s118, %s119
      %p131 = scmp.eq.s32.totalorder %s50, 3
      %p132 = por %p130, %p131
      %p134 = scmp.ne.s32.totalorder %s119, %s133
      %p135 = scmp.eq.s32.totalorder %s50, 0
      %p136 = por %p134, %p135
      %s138 = sadd.s32 %s137, 1
      %p141 = scmp.eq.s32.totalorder %s44, 3
      %p142 = scmp.ne.s32.totalorder %s137, %s139
      %p143 = scmp.eq.s32.totalorder %s44, 0
      %p144 = por %p142, %p143
      %p145 = scmp.ne.s32.totalorder %s137, %s139
      %p146 = scmp.eq.s32.totalorder %s49, 3
      %p147 = por %p145, %p146
      %p148 = scmp.ne.s32.totalorder %s139, %s140
      %p149 = scmp.eq.s32.totalorder %s49, 0
      %p150 = por %p148, %p149
      %p151 = scmp.ne.s32.totalorder %s139, %s140
      %p152 = scmp.eq.s32.totalorder %s50, 3
      %p153 = por %p151, %p152
      %p155 = scmp.ne.s32.totalorder %s140, %s154
      %p156 = scmp.eq.s32.totalorder %s50, 0
      %p157 = por %p155, %p156
      %s159 = sadd.s32 %s158, 1
      %p162 = scmp.eq.s32.totalorder %s44, 3
      %p163 = scmp.ne.s32.totalorder %s158, %s160
      %p164 = scmp.eq.s32.totalorder %s44, 0
      %p165 = por %p163, %p164
      %p166 = scmp.ne.s32.totalorder %s158, %s160
      %p167 = scmp.eq.s32.totalorder %s49, 3
      %p168 = por %p166, %p167
      %p169 = scmp.ne.s32.totalorder %s160, %s161
      %p170 = scmp.eq.s32.totalorder %s49, 0
      %p171 = por %p169, %p170
      %p172 = scmp.ne.s32.totalorder %s160, %s161
      %p173 = scmp.eq.s32.totalorder %s50, 3
      %p174 = por %p172, %p173
      %p176 = scmp.ne.s32.totalorder %s161, %s175
      %p177 = scmp.eq.s32.totalorder %s50, 0
      %p178 = por %p176, %p177
      %s180 = sadd.s32 %s179, 1
      %p183 = scmp.eq.s32.totalorder %s44, 3
      %p184 = scmp.ne.s32.totalorder %s179, %s181
      %p185 = scmp.eq.s32.totalorder %s44, 0
      %p186 = por %p184, %p185
      %p187 = scmp.ne.s32.totalorder %s179, %s181
      %p188 = scmp.eq.s32.totalorder %s49, 3
      %p189 = por %p187, %p188
      %p190 = scmp.ne.s32.totalorder %s181, %s182
      %p191 = scmp.eq.s32.totalorder %s49, 0
      %p192 = por %p190, %p191
      %p193 = scmp.ne.s32.totalorder %s181, %s182
      %p194 = scmp.eq.s32.totalorder %s50, 3
      %p195 = por %p193, %p194
      %p197 = scmp.ne.s32.totalorder %s182, %s196
      %p198 = scmp.eq.s32.totalorder %s50, 0
      %p199 = por %p197, %p198
      %s201 = sadd.s32 %s200, 1
      %p204 = scmp.eq.s32.totalorder %s44, 3
      %p205 = scmp.ne.s32.totalorder %s200, %s202
      %p206 = scmp.eq.s32.totalorder %s44, 0
      %p207 = por %p205, %p206
      %p208 = scmp.ne.s32.totalorder %s200, %s202
      %p209 = scmp.eq.s32.totalorder %s49, 3
      %p210 = por %p208, %p209
      %p211 = scmp.ne.s32.totalorder %s202, %s203
      %p212 = scmp.eq.s32.totalorder %s49, 0
      %p213 = por %p211, %p212
      %p214 = scmp.ne.s32.totalorder %s202, %s203
      %p215 = scmp.eq.s32.totalorder %s50, 3
      %p216 = por %p214, %p215
      %p218 = scmp.ne.s32.totalorder %s203, %s217
      %p219 = scmp.eq.s32.totalorder %s50, 0
      %p220 = por %p218, %p219
      %s222 = sadd.s32 %s221, 1
      %p225 = scmp.eq.s32.totalorder %s44, 3
      %p226 = scmp.ne.s32.totalorder %s221, %s223
      %p227 = scmp.eq.s32.totalorder %s44, 0
      %p228 = por %p226, %p227
      %p229 = scmp.ne.s32.totalorder %s221, %s223
      %p230 = scmp.eq.s32.totalorder %s49, 3
      %p231 = por %p229, %p230
      %p232 = scmp.ne.s32.totalorder %s223, %s224
      %p233 = scmp.eq.s32.totalorder %s49, 0
      %p234 = por %p232, %p233
      %p235 = scmp.ne.s32.totalorder %s223, %s224
      %p236 = scmp.eq.s32.totalorder %s50, 3
      %p237 = por %p235, %p236
      %p239 = scmp.ne.s32.totalorder %s224, %s238
      %p240 = scmp.eq.s32.totalorder %s50, 0
      %p241 = por %p239, %p240
      %s243 = sadd.s32 %s242, 1
      %p246 = scmp.eq.s32.totalorder %s44, 3
      %p247 = scmp.ne.s32.totalorder %s242, %s244
      %p248 = scmp.eq.s32.totalorder %s44, 0
      %p249 = por %p247, %p248
      %p250 = scmp.ne.s32.totalorder %s242, %s244
      %p251 = scmp.eq.s32.totalorder %s49, 3
      %p252 = por %p250, %p251
      %p253 = scmp.ne.s32.totalorder %s244, %s245
      %p254 = scmp.eq.s32.totalorder %s49, 0
      %p255 = por %p253, %p254
      %p256 = scmp.ne.s32.totalorder %s244, %s245
      %p257 = scmp.eq.s32.totalorder %s50, 3
      %p258 = por %p256, %p257
      %p260 = scmp.ne.s32.totalorder %s245, %s259
      %p261 = scmp.eq.s32.totalorder %s50, 0
      %p262 = por %p260, %p261
      %s264 = sadd.s32 %s263, 1
      %p267 = scmp.eq.s32.totalorder %s44, 3
      %p268 = scmp.ne.s32.totalorder %s263, %s265
      %p269 = scmp.eq.s32.totalorder %s44, 0
      %p270 = por %p268, %p269
      %p271 = scmp.ne.s32.totalorder %s263, %s265
      %p272 = scmp.eq.s32.totalorder %s49, 3
      %p273 = por %p271, %p272
      %p274 = scmp.ne.s32.totalorder %s265, %s266
      %p275 = scmp.eq.s32.totalorder %s49, 0
      %p276 = por %p274, %p275
      %p277 = scmp.ne.s32.totalorder %s265, %s266
      %p278 = scmp.eq.s32.totalorder %s50, 3
      %p279 = por %p277, %p278
      %p281 = scmp.ne.s32.totalorder %s266, %s280
      %p282 = scmp.eq.s32.totalorder %s50, 0
      %p283 = por %p281, %p282
      %s285 = sadd.s32 %s284, 1
      %p288 = scmp.eq.s32.totalorder %s44, 3
      %p289 = scmp.ne.s32.totalorder %s284, %s286
      %p290 = scmp.eq.s32.totalorder %s44, 0
      %p291 = por %p289, %p290
      %p292 = scmp.ne.s32.totalorder %s284, %s286
      %p293 = scmp.eq.s32.totalorder %s49, 3
      %p294 = por %p292, %p293
      %p295 = scmp.ne.s32.totalorder %s286, %s287
      %p296 = scmp.eq.s32.totalorder %s49, 0
      %p297 = por %p295, %p296
      %p298 = scmp.ne.s32.totalorder %s286, %s287
      %p299 = scmp.eq.s32.totalorder %s50, 3
      %p300 = por %p298, %p299
      %p302 = scmp.ne.s32.totalorder %s287, %s301
      %p303 = scmp.eq.s32.totalorder %s50, 0
      %p304 = por %p302, %p303
      %s306 = sadd.s32 %s305, 1
      %p309 = scmp.eq.s32.totalorder %s44, 3
      %p310 = scmp.ne.s32.totalorder %s305, %s307
      %p311 = scmp.eq.s32.totalorder %s44, 0
      %p312 = por %p310, %p311
      %p313 = scmp.ne.s32.totalorder %s305, %s307
      %p314 = scmp.eq.s32.totalorder %s49, 3
      %p315 = por %p313, %p314
      %p316 = scmp.ne.s32.totalorder %s307, %s308
      %p317 = scmp.eq.s32.totalorder %s49, 0
      %p318 = por %p316, %p317
      %p319 = scmp.ne.s32.totalorder %s307, %s308
      %p320 = scmp.eq.s32.totalorder %s50, 3
      %p321 = por %p319, %p320
      %p323 = scmp.ne.s32.totalorder %s308, %s322
      %p324 = scmp.eq.s32.totalorder %s50, 0
      %p325 = por %p323, %p324
      %s327 = sadd.s32 %s326, 1
      %p330 = scmp.eq.s32.totalorder %s44, 3
      %p331 = scmp.ne.s32.totalorder %s326, %s328
      %p332 = scmp.eq.s32.totalorder %s44, 0
      %p333 = por %p331, %p332
      %p334 = scmp.ne.s32.totalorder %s326, %s328
      %p335 = scmp.eq.s32.totalorder %s49, 3
      %p336 = por %p334, %p335
      %p337 = scmp.ne.s32.totalorder %s328, %s329
      %p338 = scmp.eq.s32.totalorder %s49, 0
      %p339 = por %p337, %p338
      %p340 = scmp.ne.s32.totalorder %s328, %s329
      %p341 = scmp.eq.s32.totalorder %s50, 3
      %p342 = por %p340, %p341
      %p344 = scmp.ne.s32.totalorder %s329, %s343
      %p345 = scmp.eq.s32.totalorder %s50, 0
      %p346 = por %p344, %p345
      %s348 = sadd.s32 %s347, 1
      %p351 = scmp.eq.s32.totalorder %s44, 3
      %p352 = scmp.ne.s32.totalorder %s347, %s349
      %p353 = scmp.eq.s32.totalorder %s44, 0
      %p354 = por %p352, %p353
      %p355 = scmp.ne.s32.totalorder %s347, %s349
      %p356 = scmp.eq.s32.totalorder %s49, 3
      %p357 = por %p355, %p356
      %p358 = scmp.ne.s32.totalorder %s349, %s350
      %p359 = scmp.eq.s32.totalorder %s49, 0
      %p360 = por %p358, %p359
      %p361 = scmp.ne.s32.totalorder %s349, %s350
      %p362 = scmp.eq.s32.totalorder %s50, 3
      %p363 = por %p361, %p362
      %p365 = scmp.ne.s32.totalorder %s350, %s364
      %p366 = scmp.eq.s32.totalorder %s50, 0
      %p367 = por %p365, %p366
      %s369 = sadd.s32 %s368, 1
      %p372 = scmp.eq.s32.totalorder %s44, 3
      %p373 = scmp.ne.s32.totalorder %s368, %s370
      %p374 = scmp.eq.s32.totalorder %s44, 0
      %p375 = por %p373, %p374
      %p376 = scmp.ne.s32.totalorder %s368, %s370
      %p377 = scmp.eq.s32.totalorder %s49, 3
      %p378 = por %p376, %p377
      %p379 = scmp.ne.s32.totalorder %s370, %s371
      %p380 = scmp.eq.s32.totalorder %s49, 0
      %p381 = por %p379, %p380
      %p382 = scmp.ne.s32.totalorder %s370, %s371
      %p383 = scmp.eq.s32.totalorder %s50, 3
      %p384 = por %p382, %p383
      %p386 = scmp.ne.s32.totalorder %s371, %s385
      %p387 = scmp.eq.s32.totalorder %s50, 0
      %p388 = por %p386, %p387
      %s390 = sadd.s32 %s389, 1
      %p393 = scmp.eq.s32.totalorder %s44, 3
      %p394 = scmp.ne.s32.totalorder %s389, %s391
      %p395 = scmp.eq.s32.totalorder %s44, 0
      %p396 = por %p394, %p395
      %p397 = scmp.ne.s32.totalorder %s389, %s391
      %p398 = scmp.eq.s32.totalorder %s49, 3
      %p399 = por %p397, %p398
      %p400 = scmp.ne.s32.totalorder %s391, %s392
      %p401 = scmp.eq.s32.totalorder %s49, 0
      %p402 = por %p400, %p401
      %p403 = scmp.ne.s32.totalorder %s391, %s392
      %p404 = scmp.eq.s32.totalorder %s50, 3
      %p405 = por %p403, %p404
      %p407 = scmp.ne.s32.totalorder %s392, %s406
      %p408 = scmp.eq.s32.totalorder %s50, 0
      %p409 = por %p407, %p408
      %s411 = sadd.s32 %s410, 1
      %p414 = scmp.eq.s32.totalorder %s44, 3
      %p415 = scmp.ne.s32.totalorder %s410, %s412
      %p416 = scmp.eq.s32.totalorder %s44, 0
      %p417 = por %p415, %p416
      %p418 = scmp.ne.s32.totalorder %s410, %s412
      %p419 = scmp.eq.s32.totalorder %s49, 3
      %p420 = por %p418, %p419
      %p421 = scmp.ne.s32.totalorder %s412, %s413
      %p422 = scmp.eq.s32.totalorder %s49, 0
      %p423 = por %p421, %p422
      %p424 = scmp.ne.s32.totalorder %s412, %s413
      %p425 = scmp.eq.s32.totalorder %s50, 3
      %p426 = por %p424, %p425
      %p428 = scmp.ne.s32.totalorder %s413, %s427
      %p429 = scmp.eq.s32.totalorder %s50, 0
      %p430 = por %p428, %p429
      %s432 = sadd.s32 %s431, 1
      %p435 = scmp.eq.s32.totalorder %s44, 3
      %p436 = scmp.ne.s32.totalorder %s431, %s433
      %p437 = scmp.eq.s32.totalorder %s44, 0
      %p438 = por %p436, %p437
      %p439 = scmp.ne.s32.totalorder %s431, %s433
      %p440 = scmp.eq.s32.totalorder %s49, 3
      %p441 = por %p439, %p440
      %p442 = scmp.ne.s32.totalorder %s433, %s434
      %p443 = scmp.eq.s32.totalorder %s49, 0
      %p444 = por %p442, %p443
      %p445 = scmp.ne.s32.totalorder %s433, %s434
      %p446 = scmp.eq.s32.totalorder %s50, 3
      %p447 = por %p445, %p446
      %p449 = scmp.ne.s32.totalorder %s434, %s448
      %p450 = scmp.eq.s32.totalorder %s50, 0
      %p451 = por %p449, %p450
      %s453 = sadd.s32 %s452, 1
      %p456 = scmp.eq.s32.totalorder %s44, 3
      %p457 = scmp.ne.s32.totalorder %s452, %s454
      %p458 = scmp.eq.s32.totalorder %s44, 0
      %p459 = por %p457, %p458
      %p460 = scmp.ne.s32.totalorder %s452, %s454
      %p461 = scmp.eq.s32.totalorder %s49, 3
      %p462 = por %p460, %p461
      %p463 = scmp.ne.s32.totalorder %s454, %s455
      %p464 = scmp.eq.s32.totalorder %s49, 0
      %p465 = por %p463, %p464
      %p466 = scmp.ne.s32.totalorder %s454, %s455
      %p467 = scmp.eq.s32.totalorder %s50, 3
      %p468 = por %p466, %p467
      %p470 = scmp.ne.s32.totalorder %s455, %s469
      %p471 = scmp.eq.s32.totalorder %s50, 0
      %p472 = por %p470, %p471
      %s474 = sadd.s32 %s473, 1
      %p477 = scmp.eq.s32.totalorder %s44, 3
      %p478 = scmp.ne.s32.totalorder %s473, %s475
      %p479 = scmp.eq.s32.totalorder %s44, 0
      %p480 = por %p478, %p479
      %p481 = scmp.ne.s32.totalorder %s473, %s475
      %p482 = scmp.eq.s32.totalorder %s49, 3
      %p483 = por %p481, %p482
      %p484 = scmp.ne.s32.totalorder %s475, %s476
      %p485 = scmp.eq.s32.totalorder %s49, 0
      %p486 = por %p484, %p485
      %p487 = scmp.ne.s32.totalorder %s475, %s476
      %p488 = scmp.eq.s32.totalorder %s50, 3
      %p489 = por %p487, %p488
      %p491 = scmp.ne.s32.totalorder %s476, %s490
      %p492 = scmp.eq.s32.totalorder %s50, 0
      %p493 = por %p491, %p492
      %s494 = ssub.s32 %s51, %s63
      %s495 = ssub.s32 %s52, %s59
      %s496 = sor.u32 %s494, %s495
      %p497 = scmp.eq.s32.totalorder %s496, 0
      %s499 = sadd.s32 %s498, 1
      %s500 = scalar_select %p497, %s498, %s499
      %p503 = pneg %p497
      %p504 = scmp.eq.s32.totalorder %s44, 3
      %p505 = por %p503, %p504
      %p506 = scmp.ne.s32.totalorder %s498, %s501
      %p507 = scmp.eq.s32.totalorder %s44, 0
      %p508 = por %p506, %p507
      %p509 = scmp.ne.s32.totalorder %s498, %s501
      %p510 = scmp.eq.s32.totalorder %s49, 3
      %p511 = por %p509, %p510
      %p512 = scmp.ne.s32.totalorder %s501, %s502
      %p513 = scmp.eq.s32.totalorder %s49, 0
      %p514 = por %p512, %p513
      %p515 = scmp.ne.s32.totalorder %s501, %s502
      %p516 = scmp.eq.s32.totalorder %s50, 3
      %p517 = por %p515, %p516
      %p519 = scmp.ne.s32.totalorder %s502, %s518
      %p520 = scmp.eq.s32.totalorder %s50, 0
      %p521 = por %p519, %p520
      %p522 = scmp.le.s32.totalorder 1, %s44
      %p523 = scmp.lt.s32.totalorder %s44, 5
      %p524 = pnand %p522, %p523
      %p525 = pneg %p524
      // Predicated region
      $region9: #{tpu_custom_call.1} parent=5 // pred_check
        _
      $region10: #{tpu_custom_call.1} parent=5 // pred_check_branch
        %527 = sbr.rel (%p524) target = $region12
      $region11: #{tpu_custom_call.1} parent=5 // pred_region
        %s528 = ssub.s32 %s44, 1
        // Predicated region
        $region13: #{tpu_custom_call.1} parent=11 // pred_check
          %p529 = pneg %p129
        $region14: #{tpu_custom_call.1} parent=11 // pred_check_branch
          %531 = sbr.rel (%p529) target = $region16
        $region15: #{tpu_custom_call.1} parent=11 // pred_region
          %s533 = ssub.s32 64, 64
          %534 = vsyncadd [#allocation13], %s533
          %s536 = sshll.u32 [#allocation12], 4
          %s537 = int_to_ptr.vmem [resolvable:$true] %s536
          %539 = dma.hbm_to_vmem [thread:$0]  %s3, 64, %s537, [#allocation13]
        $region16: #{tpu_custom_call.1} parent=11 // pred_fallthru
          _
        // Predicated region
        $region17: #{tpu_custom_call.1} parent=11 // pred_check
          %p540 = pneg %p150
        $region18: #{tpu_custom_call.1} parent=11 // pred_check_branch
          %542 = sbr.rel (%p540) target = $region20
        $region19: #{tpu_custom_call.1} parent=11 // pred_region
          %s544 = ssub.s32 64, 64
          %545 = vsyncadd [#allocation13], %s544
          %s547 = sshll.u32 [#allocation14], 4
          %s548 = int_to_ptr.vmem [resolvable:$true] %s547
          %550 = dma.hbm_to_vmem [thread:$0]  %s4, 64, %s548, [#allocation13]
        $region20: #{tpu_custom_call.1} parent=11 // pred_fallthru
          _
        // Predicated region
        $region21: #{tpu_custom_call.1} parent=11 // pred_check
          %p551 = pneg %p171
        $region22: #{tpu_custom_call.1} parent=11 // pred_check_branch
          %553 = sbr.rel (%p551) target = $region24
        $region23: #{tpu_custom_call.1} parent=11 // pred_region
          _
        $region24: #{tpu_custom_call.1} parent=11 // pred_fallthru
          _
        // Predicated region
        $region25: #{tpu_custom_call.1} parent=11 // pred_check
          %p554 = pneg %p192
        $region26: #{tpu_custom_call.1} parent=11 // pred_check_branch
          %556 = sbr.rel (%p554) target = $region28
        $region27: #{tpu_custom_call.1} parent=11 // pred_region
          %s558 = ssub.s32 16, 16
          %559 = vsyncadd [#allocation16], %s558
          %s561 = sshll.u32 [#allocation15], 4
          %s562 = int_to_ptr.vmem [resolvable:$true] %s561
          %564 = dma.hbm_to_vmem [thread:$0]  %s6, 16, %s562, [#allocation16]
        $region28: #{tpu_custom_call.1} parent=11 // pred_fallthru
          _
        // Predicated region
        $region29: #{tpu_custom_call.1} parent=11 // pred_check
          %p565 = pneg %p213
        $region30: #{tpu_custom_call.1} parent=11 // pred_check_branch
          %567 = sbr.rel (%p565) target = $region32
        $region31: #{tpu_custom_call.1} parent=11 // pred_region
          _
        $region32: #{tpu_custom_call.1} parent=11 // pred_fallthru
          _
        // Predicated region
        $region33: #{tpu_custom_call.1} parent=11 // pred_check
          %p568 = pneg %p234
        $region34: #{tpu_custom_call.1} parent=11 // pred_check_branch
          %570 = sbr.rel (%p568) target = $region36
        $region35: #{tpu_custom_call.1} parent=11 // pred_region
          %s572 = ssub.s32 16, 16
          %573 = vsyncadd [#allocation16], %s572
          %s575 = sshll.u32 [#allocation17], 4
          %s576 = int_to_ptr.vmem [resolvable:$true] %s575
          %578 = dma.hbm_to_vmem [thread:$0]  %s8, 16, %s576, [#allocation16]
        $region36: #{tpu_custom_call.1} parent=11 // pred_fallthru
          _
        // Predicated region
        $region37: #{tpu_custom_call.1} parent=11 // pred_check
          %p579 = pneg %p255
        $region38: #{tpu_custom_call.1} parent=11 // pred_check_branch
          %581 = sbr.rel (%p579) target = $region40
        $region39: #{tpu_custom_call.1} parent=11 // pred_region
          _
        $region40: #{tpu_custom_call.1} parent=11 // pred_fallthru
          _
        // Predicated region
        $region41: #{tpu_custom_call.1} parent=11 // pred_check
          %p582 = pneg %p276
        $region42: #{tpu_custom_call.1} parent=11 // pred_check_branch
          %584 = sbr.rel (%p582) target = $region44
        $region43: #{tpu_custom_call.1} parent=11 // pred_region
          %s586 = ssub.s32 16, 16
          %587 = vsyncadd [#allocation19], %s586
          %s589 = sshll.u32 [#allocation18], 4
          %s590 = int_to_ptr.vmem [resolvable:$true] %s589
          %592 = dma.hbm_to_vmem [thread:$0]  %s10, 16, %s590, [#allocation19]
        $region44: #{tpu_custom_call.1} parent=11 // pred_fallthru
          _
        // Predicated region
        $region45: #{tpu_custom_call.1} parent=11 // pred_check
          %p593 = pneg %p297
        $region46: #{tpu_custom_call.1} parent=11 // pred_check_branch
          %595 = sbr.rel (%p593) target = $region48
        $region47: #{tpu_custom_call.1} parent=11 // pred_region
          %s597 = ssub.s32 256, 256
          %598 = vsyncadd [#allocation19], %s597
          %s599 = sshll.u32 [#allocation20], 4
          %s600 = int_to_ptr.vmem [resolvable:$true] %s599
          %605 = dma.hbm_to_vmem [thread:$0]  %s11, 256, %s600, [#allocation19], 64, 64, 4
        $region48: #{tpu_custom_call.1} parent=11 // pred_fallthru
          _
        // Predicated region
        $region49: #{tpu_custom_call.1} parent=11 // pred_check
          %p606 = pneg %p318
        $region50: #{tpu_custom_call.1} parent=11 // pred_check_branch
          %608 = sbr.rel (%p606) target = $region52
        $region51: #{tpu_custom_call.1} parent=11 // pred_region
          %s610 = ssub.s32 16, 16
          %611 = vsyncadd [#allocation22], %s610
          %s613 = sshll.u32 [#allocation21], 4
          %s614 = int_to_ptr.vmem [resolvable:$true] %s613
          %616 = dma.hbm_to_vmem [thread:$0]  %s12, 16, %s614, [#allocation22]
        $region52: #{tpu_custom_call.1} parent=11 // pred_fallthru
          _
        // Predicated region
        $region53: #{tpu_custom_call.1} parent=11 // pred_check
          %p617 = pneg %p339
        $region54: #{tpu_custom_call.1} parent=11 // pred_check_branch
          %619 = sbr.rel (%p617) target = $region56
        $region55: #{tpu_custom_call.1} parent=11 // pred_region
          %s621 = ssub.s32 256, 256
          %622 = vsyncadd [#allocation22], %s621
          %s623 = sshll.u32 [#allocation23], 4
          %s624 = int_to_ptr.vmem [resolvable:$true] %s623
          %629 = dma.hbm_to_vmem [thread:$0]  %s13, 256, %s624, [#allocation22], 64, 64, 4
        $region56: #{tpu_custom_call.1} parent=11 // pred_fallthru
          _
        // Predicated region
        $region57: #{tpu_custom_call.1} parent=11 // pred_check
          %p630 = pneg %p360
        $region58: #{tpu_custom_call.1} parent=11 // pred_check_branch
          %632 = sbr.rel (%p630) target = $region60
        $region59: #{tpu_custom_call.1} parent=11 // pred_region
          %s634 = ssub.s32 16, 16
          %635 = vsyncadd [#allocation25], %s634
          %s637 = sshll.u32 [#allocation24], 4
          %s638 = int_to_ptr.vmem [resolvable:$true] %s637
          %640 = dma.hbm_to_vmem [thread:$0]  %s14, 16, %s638, [#allocation25]
        $region60: #{tpu_custom_call.1} parent=11 // pred_fallthru
          _
        // Predicated region
        $region61: #{tpu_custom_call.1} parent=11 // pred_check
          %p641 = pneg %p381
        $region62: #{tpu_custom_call.1} parent=11 // pred_check_branch
          %643 = sbr.rel (%p641) target = $region64
        $region63: #{tpu_custom_call.1} parent=11 // pred_region
          %s645 = ssub.s32 256, 256
          %646 = vsyncadd [#allocation25], %s645
          %s647 = sshll.u32 [#allocation26], 4
          %s648 = int_to_ptr.vmem [resolvable:$true] %s647
          %653 = dma.hbm_to_vmem [thread:$0]  %s15, 256, %s648, [#allocation25], 64, 64, 4
        $region64: #{tpu_custom_call.1} parent=11 // pred_fallthru
          _
        // Predicated region
        $region65: #{tpu_custom_call.1} parent=11 // pred_check
          %p654 = pneg %p402
        $region66: #{tpu_custom_call.1} parent=11 // pred_check_branch
          %656 = sbr.rel (%p654) target = $region68
        $region67: #{tpu_custom_call.1} parent=11 // pred_region
          %s658 = ssub.s32 16, 16
          %659 = vsyncadd [#allocation28], %s658
          %s661 = sshll.u32 [#allocation27], 4
          %s662 = int_to_ptr.vmem [resolvable:$true] %s661
          %664 = dma.hbm_to_vmem [thread:$0]  %s16, 16, %s662, [#allocation28]
        $region68: #{tpu_custom_call.1} parent=11 // pred_fallthru
          _
        // Predicated region
        $region69: #{tpu_custom_call.1} parent=11 // pred_check
          %p665 = pneg %p423
        $region70: #{tpu_custom_call.1} parent=11 // pred_check_branch
          %667 = sbr.rel (%p665) target = $region72
        $region71: #{tpu_custom_call.1} parent=11 // pred_region
          %s669 = ssub.s32 256, 256
          %670 = vsyncadd [#allocation28], %s669
          %s671 = sshll.u32 [#allocation29], 4
          %s672 = int_to_ptr.vmem [resolvable:$true] %s671
          %677 = dma.hbm_to_vmem [thread:$0]  %s17, 256, %s672, [#allocation28], 64, 64, 4
        $region72: #{tpu_custom_call.1} parent=11 // pred_fallthru
          _
        // Predicated region
        $region73: #{tpu_custom_call.1} parent=11 // pred_check
          %p678 = pneg %p444
        $region74: #{tpu_custom_call.1} parent=11 // pred_check_branch
          %680 = sbr.rel (%p678) target = $region76
        $region75: #{tpu_custom_call.1} parent=11 // pred_region
          %s682 = ssub.s32 16, 16
          %683 = vsyncadd [#allocation31], %s682
          %s685 = sshll.u32 [#allocation30], 4
          %s686 = int_to_ptr.vmem [resolvable:$true] %s685
          %688 = dma.hbm_to_vmem [thread:$0]  %s18, 16, %s686, [#allocation31]
        $region76: #{tpu_custom_call.1} parent=11 // pred_fallthru
          _
        // Predicated region
        $region77: #{tpu_custom_call.1} parent=11 // pred_check
          %p689 = pneg %p465
        $region78: #{tpu_custom_call.1} parent=11 // pred_check_branch
          %691 = sbr.rel (%p689) target = $region80
        $region79: #{tpu_custom_call.1} parent=11 // pred_region
          _
        $region80: #{tpu_custom_call.1} parent=11 // pred_fallthru
          _
        // Predicated region
        $region81: #{tpu_custom_call.1} parent=11 // pred_check
          %p692 = pneg %p486
        $region82: #{tpu_custom_call.1} parent=11 // pred_check_branch
          %694 = sbr.rel (%p692) target = $region84
        $region83: #{tpu_custom_call.1} parent=11 // pred_region
          _
        $region84: #{tpu_custom_call.1} parent=11 // pred_fallthru
          _
      $region12: #{tpu_custom_call.1} parent=5 // pred_fallthru
        _
      %p695 = scmp.lt.s32.totalorder %s44, 4
      // Predicated region
      $region85: #{tpu_custom_call.1} parent=5 // pred_check
        %p696 = pneg %p695
      $region86: #{tpu_custom_call.1} parent=5 // pred_check_branch
        %698 = sbr.rel (%p696) target = $region88
      $region87: #{tpu_custom_call.1} parent=5 // pred_region
        // Predicated region
        $region89: #{tpu_custom_call.1} parent=87 // pred_check
          %p699 = pneg %p76
        $region90: #{tpu_custom_call.1} parent=87 // pred_check_branch
          %701 = sbr.rel (%p699) target = $region92
        $region91: #{tpu_custom_call.1} parent=87 // pred_region
          %p702 = scmp.lt.s32.totalorder %s51, 1
          %s703 = scalar_select %p702, %s51, 1
          %s704 = smul.addr %s703, 2
          %s705 = smul.addr %s704, 4
          %s706 = scalar_lea.vmem %s1, %s705
        $region92: #{tpu_custom_call.1} parent=87 // pred_fallthru
          _
        // Predicated region
        $region93: #{tpu_custom_call.1} parent=87 // pred_check
          %p707 = pneg %p102
        $region94: #{tpu_custom_call.1} parent=87 // pred_check_branch
          %709 = sbr.rel (%p707) target = $region96
        $region95: #{tpu_custom_call.1} parent=87 // pred_region
          %s710 = sand.u32 %s92, 1
          %s711 = scalar_lea.sflag [#allocation10], %s710
          %s712 = sand.u32 %s92, 1
          %s713 = smul.addr %s712, 4
          %s714 = scalar_lea.vmem [#allocation9], %s713
          %s716 = ssub.s32 64, 64
          %717 = vsyncadd %s711, %s716
          %s718 = smul.addr %s51, 64
          %s719 = scalar_lea.hbm %s2, %s718
          %s721 = sshll.u32 %s714, 4
          %s722 = int_to_ptr.vmem [resolvable:$true] %s721
          %724 = dma.hbm_to_vmem [thread:$0]  %s719, 64, %s722, %s711
        $region96: #{tpu_custom_call.1} parent=87 // pred_fallthru
          _
      $region88: #{tpu_custom_call.1} parent=5 // pred_fallthru
        _
      %p725 = scmp.le.s32.totalorder 1, %s44
      %p726 = scmp.lt.s32.totalorder %s44, 5
      %p727 = pnand %p725, %p726
      %p728 = pneg %p727
      // Predicated region
      $region97: #{tpu_custom_call.1} parent=5 // pred_check
        _
      $region98: #{tpu_custom_call.1} parent=5 // pred_check_branch
        %730 = sbr.rel (%p727) target = $region100
      $region99: #{tpu_custom_call.1} parent=5 // pred_region
        %s731 = ssub.s32 %s44, 1
        %s732 = sand.u32 %s95, 1
        %s733 = scalar_lea.sflag [#allocation10], %s732
        %s734 = sand.u32 %s95, 1
        %s735 = smul.addr %s734, 4
        %s736 = scalar_lea.vmem [#allocation9], %s735
        // Predicated region
        $region101: #{tpu_custom_call.1} parent=99 // pred_check
          %p737 = pneg %p108
        $region102: #{tpu_custom_call.1} parent=99 // pred_check_branch
          %739 = sbr.rel (%p737) target = $region104
        $region103: #{tpu_custom_call.1} parent=99 // pred_region
          %740 = dma.done %s733, 64
        $region104: #{tpu_custom_call.1} parent=99 // pred_fallthru
          _
        // Predicated region
        $region105: #{tpu_custom_call.1} parent=99 // pred_check
          %p741 = pneg %p129
        $region106: #{tpu_custom_call.1} parent=99 // pred_check_branch
          %743 = sbr.rel (%p741) target = $region108
        $region107: #{tpu_custom_call.1} parent=99 // pred_region
          %744 = dma.done [#allocation13], 64
        $region108: #{tpu_custom_call.1} parent=99 // pred_fallthru
          _
        // Predicated region
        $region109: #{tpu_custom_call.1} parent=99 // pred_check
          %p745 = pneg %p150
        $region110: #{tpu_custom_call.1} parent=99 // pred_check_branch
          %747 = sbr.rel (%p745) target = $region112
        $region111: #{tpu_custom_call.1} parent=99 // pred_region
          %748 = dma.done [#allocation13], 64
        $region112: #{tpu_custom_call.1} parent=99 // pred_fallthru
          _
        // Predicated region
        $region113: #{tpu_custom_call.1} parent=99 // pred_check
          %p749 = pneg %p192
        $region114: #{tpu_custom_call.1} parent=99 // pred_check_branch
          %751 = sbr.rel (%p749) target = $region116
        $region115: #{tpu_custom_call.1} parent=99 // pred_region
          %752 = dma.done [#allocation16], 16
        $region116: #{tpu_custom_call.1} parent=99 // pred_fallthru
          _
        // Predicated region
        $region117: #{tpu_custom_call.1} parent=99 // pred_check
          %p753 = pneg %p234
        $region118: #{tpu_custom_call.1} parent=99 // pred_check_branch
          %755 = sbr.rel (%p753) target = $region120
        $region119: #{tpu_custom_call.1} parent=99 // pred_region
          %756 = dma.done [#allocation16], 16
        $region120: #{tpu_custom_call.1} parent=99 // pred_fallthru
          _
        // Predicated region
        $region121: #{tpu_custom_call.1} parent=99 // pred_check
          %p757 = pneg %p276
        $region122: #{tpu_custom_call.1} parent=99 // pred_check_branch
          %759 = sbr.rel (%p757) target = $region124
        $region123: #{tpu_custom_call.1} parent=99 // pred_region
          %760 = dma.done [#allocation19], 16
        $region124: #{tpu_custom_call.1} parent=99 // pred_fallthru
          _
        // Predicated region
        $region125: #{tpu_custom_call.1} parent=99 // pred_check
          %p761 = pneg %p297
        $region126: #{tpu_custom_call.1} parent=99 // pred_check_branch
          %763 = sbr.rel (%p761) target = $region128
        $region127: #{tpu_custom_call.1} parent=99 // pred_region
          %764 = dma.done [#allocation19], 256
        $region128: #{tpu_custom_call.1} parent=99 // pred_fallthru
          _
        // Predicated region
        $region129: #{tpu_custom_call.1} parent=99 // pred_check
          %p765 = pneg %p318
        $region130: #{tpu_custom_call.1} parent=99 // pred_check_branch
          %767 = sbr.rel (%p765) target = $region132
        $region131: #{tpu_custom_call.1} parent=99 // pred_region
          %768 = dma.done [#allocation22], 16
        $region132: #{tpu_custom_call.1} parent=99 // pred_fallthru
          _
        // Predicated region
        $region133: #{tpu_custom_call.1} parent=99 // pred_check
          %p769 = pneg %p339
        $region134: #{tpu_custom_call.1} parent=99 // pred_check_branch
          %771 = sbr.rel (%p769) target = $region136
        $region135: #{tpu_custom_call.1} parent=99 // pred_region
          %772 = dma.done [#allocation22], 256
        $region136: #{tpu_custom_call.1} parent=99 // pred_fallthru
          _
        // Predicated region
        $region137: #{tpu_custom_call.1} parent=99 // pred_check
          %p773 = pneg %p360
        $region138: #{tpu_custom_call.1} parent=99 // pred_check_branch
          %775 = sbr.rel (%p773) target = $region140
        $region139: #{tpu_custom_call.1} parent=99 // pred_region
          %776 = dma.done [#allocation25], 16
        $region140: #{tpu_custom_call.1} parent=99 // pred_fallthru
          _
        // Predicated region
        $region141: #{tpu_custom_call.1} parent=99 // pred_check
          %p777 = pneg %p381
        $region142: #{tpu_custom_call.1} parent=99 // pred_check_branch
          %779 = sbr.rel (%p777) target = $region144
        $region143: #{tpu_custom_call.1} parent=99 // pred_region
          %780 = dma.done [#allocation25], 256
        $region144: #{tpu_custom_call.1} parent=99 // pred_fallthru
          _
        // Predicated region
        $region145: #{tpu_custom_call.1} parent=99 // pred_check
          %p781 = pneg %p402
        $region146: #{tpu_custom_call.1} parent=99 // pred_check_branch
          %783 = sbr.rel (%p781) target = $region148
        $region147: #{tpu_custom_call.1} parent=99 // pred_region
          %784 = dma.done [#allocation28], 16
        $region148: #{tpu_custom_call.1} parent=99 // pred_fallthru
          _
        // Predicated region
        $region149: #{tpu_custom_call.1} parent=99 // pred_check
          %p785 = pneg %p423
        $region150: #{tpu_custom_call.1} parent=99 // pred_check_branch
          %787 = sbr.rel (%p785) target = $region152
        $region151: #{tpu_custom_call.1} parent=99 // pred_region
          %788 = dma.done [#allocation28], 256
        $region152: #{tpu_custom_call.1} parent=99 // pred_fallthru
          _
        // Predicated region
        $region153: #{tpu_custom_call.1} parent=99 // pred_check
          %p789 = pneg %p444
        $region154: #{tpu_custom_call.1} parent=99 // pred_check_branch
          %791 = sbr.rel (%p789) target = $region156
        $region155: #{tpu_custom_call.1} parent=99 // pred_region
          %792 = dma.done [#allocation31], 16
        $region156: #{tpu_custom_call.1} parent=99 // pred_fallthru
          _
        %p793 = scmp.lt.s32.totalorder %s53, 1
        %s794 = scalar_select %p793, %s53, 1
        %s795 = smul.addr %s794, 2
        %s796 = smul.addr %s795, 4
        %s797 = scalar_lea.vmem %s1, %s796
        %p798 = pneg %p82
        %p799 = pneg %p79
        %s800 = sand.u32 %s95, 1
        %s801 = scalar_lea.sflag [#allocation10], %s800
        %s802 = sand.u32 %s95, 1
        %s803 = smul.addr %s802, 4
        %s804 = scalar_lea.vmem [#allocation9], %s803
        %p805 = pneg %p108
        %p806 = pneg %p105
        %p807 = pneg %p129
        %p808 = pneg %p126
        %p809 = pneg %p150
        %p810 = pneg %p147
        %p811 = pneg %p171
        %p812 = pneg %p168
        %p813 = pneg %p192
        %p814 = pneg %p189
        %p815 = pneg %p213
        %p816 = pneg %p210
        %p817 = pneg %p234
        %p818 = pneg %p231
        %p819 = pneg %p255
        %p820 = pneg %p252
        %p821 = pneg %p276
        %p822 = pneg %p273
        %p823 = pneg %p297
        %p824 = pneg %p294
        %p825 = pneg %p318
        %p826 = pneg %p315
        %p827 = pneg %p339
        %p828 = pneg %p336
        %p829 = pneg %p360
        %p830 = pneg %p357
        %p831 = pneg %p381
        %p832 = pneg %p378
        %p833 = pneg %p402
        %p834 = pneg %p399
        %p835 = pneg %p423
        %p836 = pneg %p420
        %p837 = pneg %p444
        %p838 = pneg %p441
        %p839 = pneg %p465
        %p840 = pneg %p462
        %p841 = pneg %p486
        %p842 = pneg %p483
        %p843 = pneg %p514
        %p844 = pneg %p511
        %s845 = sand.u32 %s501, 1
        %s846 = scalar_lea.sflag [#allocation11], %s845
        %s847 = sand.u32 %s501, 1
        %s848 = smul.addr %s847, 8
        %s849 = scalar_lea.vmem [#allocation32], %s848
        %p850 = scmp.lt.s32.totalorder %s53, 1
        %s851 = scalar_select %p850, %s53, 1
        %s852 = smul.addr %s851, 2
        %s853 = smul.addr %s852, 4
        %s854 = scalar_lea.vmem %s1, %s853
        %s856 = smul.u32 %s54, 8
        %s857 = smul.u32 %s53, 128
        %s858 = sld [smem:[#allocation8 + %s857]]
        %s859 = sadd.s32 %s857, 1
        %s860 = sld [smem:[#allocation8 + %s859]]
        %p861 = scmp.eq.s32.totalorder %s54, 0
        // Predicated region
        $region157: #{tpu_custom_call.1} parent=99 // pred_check
          %p862 = pneg %p861
        $region158: #{tpu_custom_call.1} parent=99 // pred_check_branch
          %864 = sbr.rel (%p862) target = $region160
        $region159: #{tpu_custom_call.1} parent=99 // pred_region
          %v865 = vld [vmem:[%s854] sm:$0xf]
          %v866 = vld [vmem:[%s854 + $0x4] sm:$0xf]
          %v867 = vunpack.c.l.bf16 %v865
          %v868 = vunpack.c.l.bf16 %v866
          %v869 = vld [vmem:[#allocation12] sm:$0x1]
          %v870 = vld [vmem:[#allocation14] sm:$0x1]
          %vm871 = vcmask 261120
          %v872 = vsel %vm871, %v867, 0.0
          %873 = vadd.xlane.f32.xlu0 %v872
          %v874 = vpop.xlane.xlu0 %873
          %v875 = vsel %vm871, %v868, 0.0
          %876 = vadd.xlane.f32.xlu0 %v875
          %v877 = vpop.xlane.xlu0 %876
          %v878 = vrcp.pop 32.0
          %v879 = vmul.f32 %v874, %v878
          %v880 = vmul.f32 %v877, %v878
          %v881 = vsub.f32 %v867, %v879
          %v882 = vsub.f32 %v868, %v880
          %v883 = vmul.f32 %v881, %v881
          %v884 = vmul.f32 %v882, %v882
          %v885 = vsel %vm871, %v883, 0.0
          %886 = vadd.xlane.f32.xlu0 %v885
          %v887 = vpop.xlane.xlu0 %886
          %v888 = vsel %vm871, %v884, 0.0
          %889 = vadd.xlane.f32.xlu0 %v888
          %v890 = vpop.xlane.xlu0 %889
          %v891 = vmul.f32 %v887, %v878
          %v892 = vmul.f32 %v890, %v878
          %v893 = vadd.f32 %v891, 1e-06
          %v894 = vadd.f32 %v892, 1e-06
          %v895 = vrsqrt.pop %v893
          %v896 = vrsqrt.pop %v894
          %v897 = vmul.f32 %v881, %v895
          %v898 = vmul.f32 %v882, %v896
          %v899 = vlaneseq
          %v900 = vshrl.u32 %v899, 7
          %v901 = vsub.s32 0, %v900
          %v902 = vrot.slane %v869, %v901
          %v903 = vmul.f32 %v897, %v902
          %v904 = vmul.f32 %v898, %v902
          %v905 = vlaneseq
          %v906 = vshrl.u32 %v905, 7
          %v907 = vsub.s32 0, %v906
          %v908 = vrot.slane %v870, %v907
          %v909 = vadd.f32 %v903, %v908
          %v910 = vadd.f32 %v904, %v908
          %v911 = vpack.c.bf16 %v910, %v909
          %v913 = vunpack.c.l.b16 %v911
          %v914 = vunpack.c.h.b16 %v911
          %v915 = vpack.c.b16 %v913, %v913
          %v916 = vpack.c.b16 %v914, %v914
          %vm919 = vcmask 257024
          %920 = vst.msk [vmem:[#allocation2] sm:$0xf] %vm919, %v915
          %921 = vst.msk [vmem:[#allocation2 + $0x4] sm:$0xf] %vm919, %v916
          %v922 = vld [vmem:[%s7] sm:$0xf]
          %v923 = vld [vmem:[%s7 + $0x4] sm:$0xf]
          %v924 = vld [vmem:[%s7 + $0x8] sm:$0xf]
          %v925 = vld [vmem:[%s7 + $0xc] sm:$0xf]
          %v926 = vld [vmem:[#allocation17] sm:$0x1]
          %v928 = vlaneseq
          %v929 = vshrl.u32 %v928, 7
          %v930 = vsub.s32 0, %v929
          %v931 = vrot.slane %v926, %v930
          %v937 = vunpack.c.l.b16 %v922
          %v938 = vunpack.c.l.b16 %v923
          %v939 = vunpack.c.l.b16 %v924
          %v940 = vunpack.c.l.b16 %v925
          %v941 = vpack.c.b16 %v938, %v937
          %v942 = vpack.c.b16 %v940, %v939
          %v946 = vsel %vm871, %v911, 0
          %948 = vmatprep.subr.bf16.mxu0 0
          %949 = vmatpush1.bf16.msra.mxu0 0
          %950 = vmatprep.subr.bf16.mxu0 0
          %951 = vmatpush1.bf16.msra.mxu0 0
          %952 = vmatprep.subr.bf16.mxu0 0
          %953 = vmatpush1.bf16.msra.mxu0 0
          %954 = vmatprep.subr.bf16.mxu0 0
          %955 = vmatpush1.bf16.msra.mxu0 0
          %956 = vmatprep.subr.bf16.mxu0 0
          %957 = vmatpush1.bf16.msra.mxu0 0
          %958 = vmatprep.subr.bf16.mxu0 0
          %959 = vmatpush1.bf16.msra.mxu0 0
          %960 = vmatprep.subr.bf16.mxu0 0
          %961 = vmatpush1.bf16.msra.mxu0 %v942
          %962 = vmatprep.subr.bf16.mxu0 0
          %963 = vmatpush1.bf16.msra.mxu0 %v941
          %964 = vmatprep.subr.bf16.mxu0 0
          %965 = vmatpush2.bf16.msra.mxu0 0
          %966 = vmatprep.subr.bf16.mxu0 0
          %967 = vmatpush2.bf16.msra.mxu0 0
          %968 = vmatprep.subr.bf16.mxu0 0
          %969 = vmatpush2.bf16.msra.mxu0 0
          %970 = vmatprep.subr.bf16.mxu0 0
          %971 = vmatpush2.bf16.msra.mxu0 0
          %972 = vmatprep.subr.bf16.mxu0 0
          %973 = vmatpush2.bf16.msra.mxu0 0
          %974 = vmatprep.subr.bf16.mxu0 0
          %975 = vmatpush2.bf16.msra.mxu0 0
          %976 = vmatprep.subr.bf16.mxu0 0
          %977 = vmatpush2.bf16.msra.mxu0 0
          %978 = vmatprep.subr.bf16.mxu0 0
          %979 = vmatpush2.bf16.msra.mxu0 0
          %980 = vmatprep.mubr.bf16.mxu0 0
          %981 = vmatmul.mubr.bf16.gmra.mxu0 %v946
          %v982 = vpop.f32.mrf.mxu0
          %v983 = vadd.f32 %v931, %v982
          %v984 = vpop.f32.mrf.mxu0
          %v985 = vpop.f32.mrf.mxu0
          %v986 = vadd.f32 %v931, %v985
          %v987 = vpop.f32.mrf.mxu0
          %988 = vdwg.mxu0
          %v989 = vld [vmem:[%s736] sm:$0xf]
          %v990 = vld [vmem:[#allocation23] sm:$0xf]
          %v991 = vld [vmem:[#allocation23 + $0x4] sm:$0xf]
          %v992 = vld [vmem:[#allocation23 + $0x8] sm:$0xf]
          %v993 = vld [vmem:[#allocation23 + $0xc] sm:$0xf]
          %v994 = vld [vmem:[#allocation24] sm:$0x1]
          %v996 = vlaneseq
          %v997 = vshrl.u32 %v996, 7
          %v998 = vsub.s32 0, %v997
          %v999 = vrot.slane %v994, %v998
          %v1005 = vunpack.c.l.b16 %v990
          %v1006 = vunpack.c.l.b16 %v991
          %v1007 = vunpack.c.l.b16 %v992
          %v1008 = vunpack.c.l.b16 %v993
          %v1009 = vpack.c.b16 %v1006, %v1005
          %v1010 = vpack.c.b16 %v1008, %v1007
          %v1014 = vsel %vm871, %v989, 0
          %1016 = vmatprep.subr.bf16.mxu0 0
          %1017 = vmatpush1.bf16.msra.mxu0 0
          %1018 = vmatprep.subr.bf16.mxu0 0
          %1019 = vmatpush1.bf16.msra.mxu0 0
          %1020 = vmatprep.subr.bf16.mxu0 0
          %1021 = vmatpush1.bf16.msra.mxu0 0
          %1022 = vmatprep.subr.bf16.mxu0 0
          %1023 = vmatpush1.bf16.msra.mxu0 0
          %1024 = vmatprep.subr.bf16.mxu0 0
          %1025 = vmatpush1.bf16.msra.mxu0 0
          %1026 = vmatprep.subr.bf16.mxu0 0
          %1027 = vmatpush1.bf16.msra.mxu0 0
          %1028 = vmatprep.subr.bf16.mxu0 0
          %1029 = vmatpush1.bf16.msra.mxu0 %v1010
          %1030 = vmatprep.subr.bf16.mxu0 0
          %1031 = vmatpush1.bf16.msra.mxu0 %v1009
          %1032 = vmatprep.subr.bf16.mxu0 0
          %1033 = vmatpush2.bf16.msra.mxu0 0
          %1034 = vmatprep.subr.bf16.mxu0 0
          %1035 = vmatpush2.bf16.msra.mxu0 0
          %1036 = vmatprep.subr.bf16.mxu0 0
          %1037 = vmatpush2.bf16.msra.mxu0 0
          %1038 = vmatprep.subr.bf16.mxu0 0
          %1039 = vmatpush2.bf16.msra.mxu0 0
          %1040 = vmatprep.subr.bf16.mxu0 0
          %1041 = vmatpush2.bf16.msra.mxu0 0
          %1042 = vmatprep.subr.bf16.mxu0 0
          %1043 = vmatpush2.bf16.msra.mxu0 0
          %1044 = vmatprep.subr.bf16.mxu0 0
          %1045 = vmatpush2.bf16.msra.mxu0 0
          %1046 = vmatprep.subr.bf16.mxu0 0
          %1047 = vmatpush2.bf16.msra.mxu0 0
          %1048 = vmatprep.mubr.bf16.mxu0 0
          %1049 = vmatmul.mubr.bf16.gmra.mxu0 %v1014
          %v1050 = vpop.f32.mrf.mxu0
          %v1051 = vadd.f32 %v999, %v1050
          %v1052 = vpop.f32.mrf.mxu0
          %v1053 = vpop.f32.mrf.mxu0
          %v1054 = vpop.f32.mrf.mxu0
          %1055 = vdwg.mxu0
          %v1056 = vpack.c.bf16 %v986, %v983
          %v1058 = vunpack.c.l.b16 %v1056
          %v1059 = vunpack.c.h.b16 %v1056
          %v1060 = vpack.c.b16 %v1058, %v1058
          %v1061 = vpack.c.b16 %v1059, %v1059
          %vm1064 = vcmask 60416
          %1065 = vst.msk [vmem:[#allocation3] sm:$0xf] %vm1064, %v1060
          %1066 = vst.msk [vmem:[#allocation3 + $0x4] sm:$0xf] %vm1064, %v1061
          %1067 = vrot.lane.b32.xlu0 %v1060, 96
          %v1068 = vpop.permute.xlu0 %1067
          %1069 = vrot.lane.b32.xlu0 %v1061, 96
          %v1070 = vpop.permute.xlu0 %1069
          %s1073 = scalar_lea.vmem [#allocation3], 32
          %1074 = vst.msk [vmem:[%s1073] sm:$0xf] %vm1064, %v1068
          %1075 = vst.msk [vmem:[%s1073 + $0x4] sm:$0xf] %vm1064, %v1070
          %v1076 = vpack.c.bf16 %v1051, %v1051
          %1077 = vst.msk [vmem:[#allocation4] sm:$0xf] %vm1064, %v1076
          %v1079 = vunpack.c.l.b16 %v1076
          %v1080 = vpack.c.b16 %v1079, %v1079
          %1081 = vrot.lane.b32.xlu0 %v1080, 96
          %v1082 = vpop.permute.xlu0 %1081
          %s1084 = scalar_lea.vmem [#allocation4], 16
          %1085 = vst.msk [vmem:[%s1084] sm:$0xf] %vm1064, %v1082
          %1086 = vrot.lane.b32.xlu0 %v1060, 120
          %v1087 = vpop.permute.xlu0 %1086
          %1088 = vrot.lane.b32.xlu0 %v1061, 120
          %v1089 = vpop.permute.xlu0 %1088
          %s1092 = scalar_lea.vmem [#allocation3], 8
          %1093 = vst.msk [vmem:[%s1092] sm:$0xf] %vm1064, %v1087
          %1094 = vst.msk [vmem:[%s1092 + $0x4] sm:$0xf] %vm1064, %v1089
          %1095 = vrot.lane.b32.xlu0 %v1060, 88
          %v1096 = vpop.permute.xlu0 %1095
          %1097 = vrot.lane.b32.xlu0 %v1061, 88
          %v1098 = vpop.permute.xlu0 %1097
          %s1101 = scalar_lea.vmem [#allocation3], 40
          %1102 = vst.msk [vmem:[%s1101] sm:$0xf] %vm1064, %v1096
          %1103 = vst.msk [vmem:[%s1101 + $0x4] sm:$0xf] %vm1064, %v1098
          %1104 = vrot.lane.b32.xlu0 %v1080, 120
          %v1105 = vpop.permute.xlu0 %1104
          %s1107 = scalar_lea.vmem [#allocation4], 4
          %1108 = vst.msk [vmem:[%s1107] sm:$0xf] %vm1064, %v1105
          %1109 = vrot.lane.b32.xlu0 %v1080, 88
          %v1110 = vpop.permute.xlu0 %1109
          %s1112 = scalar_lea.vmem [#allocation4], 20
          %1113 = vst.msk [vmem:[%s1112] sm:$0xf] %vm1064, %v1110
          %1114 = vrot.lane.b32.xlu0 %v1060, 112
          %v1115 = vpop.permute.xlu0 %1114
          %1116 = vrot.lane.b32.xlu0 %v1061, 112
          %v1117 = vpop.permute.xlu0 %1116
          %s1120 = scalar_lea.vmem [#allocation3], 16
          %1121 = vst.msk [vmem:[%s1120] sm:$0xf] %vm1064, %v1115
          %1122 = vst.msk [vmem:[%s1120 + $0x4] sm:$0xf] %vm1064, %v1117
          %1123 = vrot.lane.b32.xlu0 %v1060, 80
          %v1124 = vpop.permute.xlu0 %1123
          %1125 = vrot.lane.b32.xlu0 %v1061, 80
          %v1126 = vpop.permute.xlu0 %1125
          %s1129 = scalar_lea.vmem [#allocation3], 48
          %1130 = vst.msk [vmem:[%s1129] sm:$0xf] %vm1064, %v1124
          %1131 = vst.msk [vmem:[%s1129 + $0x4] sm:$0xf] %vm1064, %v1126
          %1132 = vrot.lane.b32.xlu0 %v1080, 112
          %v1133 = vpop.permute.xlu0 %1132
          %s1135 = scalar_lea.vmem [#allocation4], 8
          %1136 = vst.msk [vmem:[%s1135] sm:$0xf] %vm1064, %v1133
          %1137 = vrot.lane.b32.xlu0 %v1080, 80
          %v1138 = vpop.permute.xlu0 %1137
          %s1140 = scalar_lea.vmem [#allocation4], 24
          %1141 = vst.msk [vmem:[%s1140] sm:$0xf] %vm1064, %v1138
          %1142 = vrot.lane.b32.xlu0 %v1060, 104
          %v1143 = vpop.permute.xlu0 %1142
          %1144 = vrot.lane.b32.xlu0 %v1061, 104
          %v1145 = vpop.permute.xlu0 %1144
          %s1148 = scalar_lea.vmem [#allocation3], 24
          %1149 = vst.msk [vmem:[%s1148] sm:$0xf] %vm1064, %v1143
          %1150 = vst.msk [vmem:[%s1148 + $0x4] sm:$0xf] %vm1064, %v1145
          %1151 = vrot.lane.b32.xlu0 %v1060, 72
          %v1152 = vpop.permute.xlu0 %1151
          %1153 = vrot.lane.b32.xlu0 %v1061, 72
          %v1154 = vpop.permute.xlu0 %1153
          %s1157 = scalar_lea.vmem [#allocation3], 56
          %1158 = vst.msk [vmem:[%s1157] sm:$0xf] %vm1064, %v1152
          %1159 = vst.msk [vmem:[%s1157 + $0x4] sm:$0xf] %vm1064, %v1154
          %1160 = vrot.lane.b32.xlu0 %v1080, 104
          %v1161 = vpop.permute.xlu0 %1160
          %s1163 = scalar_lea.vmem [#allocation4], 12
          %1164 = vst.msk [vmem:[%s1163] sm:$0xf] %vm1064, %v1161
          %1165 = vrot.lane.b32.xlu0 %v1080, 72
          %v1166 = vpop.permute.xlu0 %1165
          %s1168 = scalar_lea.vmem [#allocation4], 28
          %1169 = vst.msk [vmem:[%s1168] sm:$0xf] %vm1064, %v1166
        $region160: #{tpu_custom_call.1} parent=99 // pred_fallthru
          _
        %s1170 = sshra.s32 %s856, 3
        %s1171 = sand.u32 %s856, 7
        %s1172 = smul.addr %s1170, 4
        %s1173 = scalar_lea.vmem %s854, %s1172
        %v1174 = vld [vmem:[%s1173] sm:$0xf]
        %v1175 = vunpack.c.l.bf16 %v1174
        %s1176 = smul.addr %s1170, 4
        %s1177 = scalar_lea.vmem [#allocation2], %s1176
        %v1178 = vld [vmem:[%s1177] sm:$0xf]
        %v1179 = vld [vmem:[%s5] sm:$0xf]
        %v1180 = vld [vmem:[%s5 + $0x4] sm:$0xf]
        %v1181 = vld [vmem:[%s5 + $0x8] sm:$0xf]
        %v1182 = vld [vmem:[%s5 + $0xc] sm:$0xf]
        %v1183 = vld [vmem:[#allocation15] sm:$0x1]
        %v1185 = vlaneseq
        %v1186 = vshrl.u32 %v1185, 7
        %v1187 = vsub.s32 0, %v1186
        %v1188 = vrot.slane %v1183, %v1187
        %v1194 = vunpack.c.l.b16 %v1179
        %v1195 = vunpack.c.l.b16 %v1180
        %v1196 = vunpack.c.l.b16 %v1181
        %v1197 = vunpack.c.l.b16 %v1182
        %v1198 = vpack.c.b16 %v1195, %v1194
        %v1199 = vpack.c.b16 %v1197, %v1196
        %vm1202 = vcmask 261120
        %v1204 = vsel %vm1202, %v1178, 0
        %1206 = vmatprep.subr.bf16.mxu0 0
        %1207 = vmatpush1.bf16.msra.mxu0 0
        %1208 = vmatprep.subr.bf16.mxu0 0
        %1209 = vmatpush1.bf16.msra.mxu0 0
        %1210 = vmatprep.subr.bf16.mxu0 0
        %1211 = vmatpush1.bf16.msra.mxu0 0
        %1212 = vmatprep.subr.bf16.mxu0 0
        %1213 = vmatpush1.bf16.msra.mxu0 0
        %1214 = vmatprep.subr.bf16.mxu0 0
        %1215 = vmatpush1.bf16.msra.mxu0 0
        %1216 = vmatprep.subr.bf16.mxu0 0
        %1217 = vmatpush1.bf16.msra.mxu0 0
        %1218 = vmatprep.subr.bf16.mxu0 0
        %1219 = vmatpush1.bf16.msra.mxu0 %v1199
        %1220 = vmatprep.subr.bf16.mxu0 0
        %1221 = vmatpush1.bf16.msra.mxu0 %v1198
        %1222 = vmatprep.subr.bf16.mxu0 0
        %1223 = vmatpush2.bf16.msra.mxu0 0
        %1224 = vmatprep.subr.bf16.mxu0 0
        %1225 = vmatpush2.bf16.msra.mxu0 0
        %1226 = vmatprep.subr.bf16.mxu0 0
        %1227 = vmatpush2.bf16.msra.mxu0 0
        %1228 = vmatprep.subr.bf16.mxu0 0
        %1229 = vmatpush2.bf16.msra.mxu0 0
        %1230 = vmatprep.subr.bf16.mxu0 0
        %1231 = vmatpush2.bf16.msra.mxu0 0
        %1232 = vmatprep.subr.bf16.mxu0 0
        %1233 = vmatpush2.bf16.msra.mxu0 0
        %1234 = vmatprep.subr.bf16.mxu0 0
        %1235 = vmatpush2.bf16.msra.mxu0 0
        %1236 = vmatprep.subr.bf16.mxu0 0
        %1237 = vmatpush2.bf16.msra.mxu0 0
        %1238 = vmatprep.mubr.bf16.mxu0 0
        %1239 = vmatmul.mubr.bf16.gmra.mxu0 %v1204
        %v1240 = vpop.f32.mrf.mxu0
        %v1241 = vadd.f32 %v1188, %v1240
        %v1242 = vpop.f32.mrf.mxu0
        %v1243 = vpop.f32.mrf.mxu0
        %v1244 = vpop.f32.mrf.mxu0
        %1245 = vdwg.mxu0
        %v1246 = vlaneseq
        %v1247 = vshrl.u32 %v1246, 7
        %v1248 = vstv %s856
        %v1249 = vadd.s32 %v1248, %v1247
        %v1250 = vlaneseq
        %v1251 = vand.u32 %v1250, 127
        %vm1252 = vcmp.le.s32.totalorder %v1251, %v1249
        %v1253 = vstv %s858
        %vm1254 = vcmp.lt.s32.totalorder %v1251, %v1253
        %vm1255 = vmand %vm1252, %vm1254
        %v1256 = vmul.f32 %v1241, 0.35355338
        %v1257 = vpack.c.bf16 %v1256, %v1256
        %vm1258 = vcmask 60416
        %1259 = vst.msk [vmem:[#allocation5] sm:$0xf] %vm1258, %v1257
        %v1261 = vunpack.c.l.b16 %v1257
        %v1262 = vpack.c.b16 %v1261, %v1261
        %1263 = vrot.lane.b32.xlu0 %v1262, 120
        %v1264 = vpop.permute.xlu0 %1263
        %s1266 = scalar_lea.vmem [#allocation5], 4
        %1267 = vst.msk [vmem:[%s1266] sm:$0xf] %vm1258, %v1264
        %1268 = vrot.lane.b32.xlu0 %v1262, 112
        %v1269 = vpop.permute.xlu0 %1268
        %s1271 = scalar_lea.vmem [#allocation5], 8
        %1272 = vst.msk [vmem:[%s1271] sm:$0xf] %vm1258, %v1269
        %1273 = vrot.lane.b32.xlu0 %v1262, 104
        %v1274 = vpop.permute.xlu0 %1273
        %s1276 = scalar_lea.vmem [#allocation5], 12
        %1277 = vst.msk [vmem:[%s1276] sm:$0xf] %vm1258, %v1274
        %v1278 = vld [vmem:[#allocation5] sm:$0xf]
        %v1279 = vld [vmem:[#allocation5 + $0x4] sm:$0xf]
        %v1280 = vld [vmem:[#allocation5 + $0x8] sm:$0xf]
        %v1281 = vld [vmem:[#allocation5 + $0xc] sm:$0xf]
        %v1282 = vld [vmem:[#allocation3] sm:$0xf]
        %v1283 = vld [vmem:[#allocation3 + $0x4] sm:$0xf]
        %v1284 = vld [vmem:[#allocation3 + $0x8] sm:$0xf]
        %v1285 = vld [vmem:[#allocation3 + $0xc] sm:$0xf]
        %v1286 = vld [vmem:[#allocation3 + $0x10] sm:$0xf]
        %v1287 = vld [vmem:[#allocation3 + $0x14] sm:$0xf]
        %v1288 = vld [vmem:[#allocation3 + $0x18] sm:$0xf]
        %v1289 = vld [vmem:[#allocation3 + $0x1c] sm:$0xf]
        %s1290 = scalar_lea.vmem [#allocation3], 32
        %v1291 = vld [vmem:[%s1290] sm:$0xf]
        %v1292 = vld [vmem:[%s1290 + $0x4] sm:$0xf]
        %v1293 = vld [vmem:[%s1290 + $0x8] sm:$0xf]
        %v1294 = vld [vmem:[%s1290 + $0xc] sm:$0xf]
        %v1295 = vld [vmem:[%s1290 + $0x10] sm:$0xf]
        %v1296 = vld [vmem:[%s1290 + $0x14] sm:$0xf]
        %v1297 = vld [vmem:[%s1290 + $0x18] sm:$0xf]
        %v1298 = vld [vmem:[%s1290 + $0x1c] sm:$0xf]
        %v1301 = vunpack.c.l.b16 %v1282
        %v1302 = vunpack.c.l.b16 %v1283
        %v1303 = vpack.c.b16 %v1302, %v1301
        %vm1304 = vcmask 64512
        %v1306 = vsel %vm1304, %v1278, 0
        %v1309 = vsel %vm1304, %v1303, 0
        %1311 = vmatprep.subr.bf16.mxu0 0
        %1312 = vmatpush1.bf16.xpose.msra.mxu0 0
        %1313 = vmatprep.subr.bf16.mxu0 0
        %1314 = vmatpush1.bf16.xpose.msra.mxu0 0
        %1315 = vmatprep.subr.bf16.mxu0 0
        %1316 = vmatpush1.bf16.xpose.msra.mxu0 0
        %1317 = vmatprep.subr.bf16.mxu0 0
        %1318 = vmatpush1.bf16.xpose.msra.mxu0 0
        %1319 = vmatprep.subr.bf16.mxu0 0
        %1320 = vmatpush1.bf16.xpose.msra.mxu0 0
        %1321 = vmatprep.subr.bf16.mxu0 0
        %1322 = vmatpush1.bf16.xpose.msra.mxu0 0
        %1323 = vmatprep.subr.bf16.mxu0 0
        %1324 = vmatpush1.bf16.xpose.msra.mxu0 0
        %1325 = vmatprep.subr.bf16.mxu0 0
        %1326 = vmatpush1.bf16.xpose.msra.mxu0 %v1309
        %1327 = vmatprep.subr.bf16.mxu0 0
        %1328 = vmatpush2.bf16.xpose.msra.mxu0 0
        %1329 = vmatprep.subr.bf16.mxu0 0
        %1330 = vmatpush2.bf16.xpose.msra.mxu0 0
        %1331 = vmatprep.subr.bf16.mxu0 0
        %1332 = vmatpush2.bf16.xpose.msra.mxu0 0
        %1333 = vmatprep.subr.bf16.mxu0 0
        %1334 = vmatpush2.bf16.xpose.msra.mxu0 0
        %1335 = vmatprep.subr.bf16.mxu0 0
        %1336 = vmatpush2.bf16.xpose.msra.mxu0 0
        %1337 = vmatprep.subr.bf16.mxu0 0
        %1338 = vmatpush2.bf16.xpose.msra.mxu0 0
        %1339 = vmatprep.subr.bf16.mxu0 0
        %1340 = vmatpush2.bf16.xpose.msra.mxu0 0
        %1341 = vmatprep.subr.bf16.mxu0 0
        %1342 = vmatpush2.bf16.xpose.msra.mxu0 0
        %1343 = vmatprep.mubr.bf16.mxu0 0
        %1344 = vmatmul.mubr.bf16.gmra.mxu0 %v1306
        %v1345 = vpop.f32.mrf.mxu0
        %v1346 = vadd.f32 0.0, %v1345
        %v1347 = vpop.f32.mrf.mxu0
        %v1348 = vpop.f32.mrf.mxu0
        %v1349 = vpop.f32.mrf.mxu0
        %1350 = vdwg.mxu0
        %v1353 = vunpack.c.l.b16 %v1284
        %v1354 = vunpack.c.l.b16 %v1285
        %v1355 = vpack.c.b16 %v1354, %v1353
        %v1357 = vsel %vm1304, %v1279, 0
        %v1360 = vsel %vm1304, %v1355, 0
        %1362 = vmatprep.subr.bf16.mxu0 0
        %1363 = vmatpush1.bf16.xpose.msra.mxu0 0
        %1364 = vmatprep.subr.bf16.mxu0 0
        %1365 = vmatpush1.bf16.xpose.msra.mxu0 0
        %1366 = vmatprep.subr.bf16.mxu0 0
        %1367 = vmatpush1.bf16.xpose.msra.mxu0 0
        %1368 = vmatprep.subr.bf16.mxu0 0
        %1369 = vmatpush1.bf16.xpose.msra.mxu0 0
        %1370 = vmatprep.subr.bf16.mxu0 0
        %1371 = vmatpush1.bf16.xpose.msra.mxu0 0
        %1372 = vmatprep.subr.bf16.mxu0 0
        %1373 = vmatpush1.bf16.xpose.msra.mxu0 0
        %1374 = vmatprep.subr.bf16.mxu0 0
        %1375 = vmatpush1.bf16.xpose.msra.mxu0 0
        %1376 = vmatprep.subr.bf16.mxu0 0
        %1377 = vmatpush1.bf16.xpose.msra.mxu0 %v1360
        %1378 = vmatprep.subr.bf16.mxu0 0
        %1379 = vmatpush2.bf16.xpose.msra.mxu0 0
        %1380 = vmatprep.subr.bf16.mxu0 0
        %1381 = vmatpush2.bf16.xpose.msra.mxu0 0
        %1382 = vmatprep.subr.bf16.mxu0 0
        %1383 = vmatpush2.bf16.xpose.msra.mxu0 0
        %1384 = vmatprep.subr.bf16.mxu0 0
        %1385 = vmatpush2.bf16.xpose.msra.mxu0 0
        %1386 = vmatprep.subr.bf16.mxu0 0
        %1387 = vmatpush2.bf16.xpose.msra.mxu0 0
        %1388 = vmatprep.subr.bf16.mxu0 0
        %1389 = vmatpush2.bf16.xpose.msra.mxu0 0
        %1390 = vmatprep.subr.bf16.mxu0 0
        %1391 = vmatpush2.bf16.xpose.msra.mxu0 0
        %1392 = vmatprep.subr.bf16.mxu0 0
        %1393 = vmatpush2.bf16.xpose.msra.mxu0 0
        %1394 = vmatprep.mubr.bf16.mxu0 0
        %1395 = vmatmul.mubr.bf16.gmra.mxu0 %v1357
        %v1396 = vpop.f32.mrf.mxu0
        %v1397 = vadd.f32 0.0, %v1396
        %v1398 = vpop.f32.mrf.mxu0
        %v1399 = vpop.f32.mrf.mxu0
        %v1400 = vpop.f32.mrf.mxu0
        %1401 = vdwg.mxu0
        %v1404 = vunpack.c.l.b16 %v1286
        %v1405 = vunpack.c.l.b16 %v1287
        %v1406 = vpack.c.b16 %v1405, %v1404
        %v1408 = vsel %vm1304, %v1280, 0
        %v1411 = vsel %vm1304, %v1406, 0
        %1413 = vmatprep.subr.bf16.mxu0 0
        %1414 = vmatpush1.bf16.xpose.msra.mxu0 0
        %1415 = vmatprep.subr.bf16.mxu0 0
        %1416 = vmatpush1.bf16.xpose.msra.mxu0 0
        %1417 = vmatprep.subr.bf16.mxu0 0
        %1418 = vmatpush1.bf16.xpose.msra.mxu0 0
        %1419 = vmatprep.subr.bf16.mxu0 0
        %1420 = vmatpush1.bf16.xpose.msra.mxu0 0
        %1421 = vmatprep.subr.bf16.mxu0 0
        %1422 = vmatpush1.bf16.xpose.msra.mxu0 0
        %1423 = vmatprep.subr.bf16.mxu0 0
        %1424 = vmatpush1.bf16.xpose.msra.mxu0 0
        %1425 = vmatprep.subr.bf16.mxu0 0
        %1426 = vmatpush1.bf16.xpose.msra.mxu0 0
        %1427 = vmatprep.subr.bf16.mxu0 0
        %1428 = vmatpush1.bf16.xpose.msra.mxu0 %v1411
        %1429 = vmatprep.subr.bf16.mxu0 0
        %1430 = vmatpush2.bf16.xpose.msra.mxu0 0
        %1431 = vmatprep.subr.bf16.mxu0 0
        %1432 = vmatpush2.bf16.xpose.msra.mxu0 0
        %1433 = vmatprep.subr.bf16.mxu0 0
        %1434 = vmatpush2.bf16.xpose.msra.mxu0 0
        %1435 = vmatprep.subr.bf16.mxu0 0
        %1436 = vmatpush2.bf16.xpose.msra.mxu0 0
        %1437 = vmatprep.subr.bf16.mxu0 0
        %1438 = vmatpush2.bf16.xpose.msra.mxu0 0
        %1439 = vmatprep.subr.bf16.mxu0 0
        %1440 = vmatpush2.bf16.xpose.msra.mxu0 0
        %1441 = vmatprep.subr.bf16.mxu0 0
        %1442 = vmatpush2.bf16.xpose.msra.mxu0 0
        %1443 = vmatprep.subr.bf16.mxu0 0
        %1444 = vmatpush2.bf16.xpose.msra.mxu0 0
        %1445 = vmatprep.mubr.bf16.mxu0 0
        %1446 = vmatmul.mubr.bf16.gmra.mxu0 %v1408
        %v1447 = vpop.f32.mrf.mxu0
        %v1448 = vadd.f32 0.0, %v1447
        %v1449 = vpop.f32.mrf.mxu0
        %v1450 = vpop.f32.mrf.mxu0
        %v1451 = vpop.f32.mrf.mxu0
        %1452 = vdwg.mxu0
        %v1455 = vunpack.c.l.b16 %v1288
        %v1456 = vunpack.c.l.b16 %v1289
        %v1457 = vpack.c.b16 %v1456, %v1455
        %v1459 = vsel %vm1304, %v1281, 0
        %v1462 = vsel %vm1304, %v1457, 0
        %1464 = vmatprep.subr.bf16.mxu0 0
        %1465 = vmatpush1.bf16.xpose.msra.mxu0 0
        %1466 = vmatprep.subr.bf16.mxu0 0
        %1467 = vmatpush1.bf16.xpose.msra.mxu0 0
        %1468 = vmatprep.subr.bf16.mxu0 0
        %1469 = vmatpush1.bf16.xpose.msra.mxu0 0
        %1470 = vmatprep.subr.bf16.mxu0 0
        %1471 = vmatpush1.bf16.xpose.msra.mxu0 0
        %1472 = vmatprep.subr.bf16.mxu0 0
        %1473 = vmatpush1.bf16.xpose.msra.mxu0 0
        %1474 = vmatprep.subr.bf16.mxu0 0
        %1475 = vmatpush1.bf16.xpose.msra.mxu0 0
        %1476 = vmatprep.subr.bf16.mxu0 0
        %1477 = vmatpush1.bf16.xpose.msra.mxu0 0
        %1478 = vmatprep.subr.bf16.mxu0 0
        %1479 = vmatpush1.bf16.xpose.msra.mxu0 %v1462
        %1480 = vmatprep.subr.bf16.mxu0 0
        %1481 = vmatpush2.bf16.xpose.msra.mxu0 0
        %1482 = vmatprep.subr.bf16.mxu0 0
        %1483 = vmatpush2.bf16.xpose.msra.mxu0 0
        %1484 = vmatprep.subr.bf16.mxu0 0
        %1485 = vmatpush2.bf16.xpose.msra.mxu0 0
        %1486 = vmatprep.subr.bf16.mxu0 0
        %1487 = vmatpush2.bf16.xpose.msra.mxu0 0
        %1488 = vmatprep.subr.bf16.mxu0 0
        %1489 = vmatpush2.bf16.xpose.msra.mxu0 0
        %1490 = vmatprep.subr.bf16.mxu0 0
        %1491 = vmatpush2.bf16.xpose.msra.mxu0 0
        %1492 = vmatprep.subr.bf16.mxu0 0
        %1493 = vmatpush2.bf16.xpose.msra.mxu0 0
        %1494 = vmatprep.subr.bf16.mxu0 0
        %1495 = vmatpush2.bf16.xpose.msra.mxu0 0
        %1496 = vmatprep.mubr.bf16.mxu0 0
        %1497 = vmatmul.mubr.bf16.gmra.mxu0 %v1459
        %v1498 = vpop.f32.mrf.mxu0
        %v1499 = vadd.f32 0.0, %v1498
        %v1500 = vpop.f32.mrf.mxu0
        %v1501 = vpop.f32.mrf.mxu0
        %v1502 = vpop.f32.mrf.mxu0
        %1503 = vdwg.mxu0
        %v1504 = vsel %vm1255, 1, 0
        %vm1505 = vcmp.eq.s32.totalorder %v1504, 1
        %v1506 = vsel %vm1505, %v1346, -1e+30
        %v1507 = vsel %vm1505, %v1397, -1e+30
        %v1508 = vsel %vm1505, %v1448, -1e+30
        %v1509 = vsel %vm1505, %v1499, -1e+30
        %vm1510 = vcmask 130048
        %v1511 = vsel %vm1510, %v1506, -inf
        %1512 = vmax.xlane.f32.xlu0 %v1511
        %v1513 = vpop.xlane.xlu0 %1512
        %v1514 = vsel %vm1510, %v1507, -inf
        %1515 = vmax.xlane.f32.xlu0 %v1514
        %v1516 = vpop.xlane.xlu0 %1515
        %v1517 = vsel %vm1510, %v1508, -inf
        %1518 = vmax.xlane.f32.xlu0 %v1517
        %v1519 = vpop.xlane.xlu0 %1518
        %v1520 = vsel %vm1510, %v1509, -inf
        %1521 = vmax.xlane.f32.xlu0 %v1520
        %v1522 = vpop.xlane.xlu0 %1521
        %v1523 = vsub.f32 %v1506, %v1513
        %v1524 = vsub.f32 %v1507, %v1516
        %v1525 = vsub.f32 %v1508, %v1519
        %v1526 = vsub.f32 %v1509, %v1522
        %v1527 = vpack.c.bf16 %v1523, %v1523
        %v1528 = vpack.c.bf16 %v1524, %v1524
        %v1529 = vpack.c.bf16 %v1525, %v1525
        %v1530 = vpack.c.bf16 %v1526, %v1526
        %v1532 = vmul.bf16 %v1527, 1069105081
        %v1533 = vpow.bf16.pop %v1532
        %v1535 = vmul.bf16 %v1528, 1069105081
        %v1536 = vpow.bf16.pop %v1535
        %v1538 = vmul.bf16 %v1529, 1069105081
        %v1539 = vpow.bf16.pop %v1538
        %v1541 = vmul.bf16 %v1530, 1069105081
        %v1542 = vpow.bf16.pop %v1541
        %v1543 = vunpack.c.l.bf16 %v1533
        %v1544 = vunpack.c.l.bf16 %v1536
        %v1545 = vunpack.c.l.bf16 %v1539
        %v1546 = vunpack.c.l.bf16 %v1542
        %v1547 = vsel %vm1510, %v1543, 0.0
        %1548 = vadd.xlane.f32.xlu0 %v1547
        %v1549 = vpop.xlane.xlu0 %1548
        %v1550 = vsel %vm1510, %v1544, 0.0
        %1551 = vadd.xlane.f32.xlu0 %v1550
        %v1552 = vpop.xlane.xlu0 %1551
        %v1553 = vsel %vm1510, %v1545, 0.0
        %1554 = vadd.xlane.f32.xlu0 %v1553
        %v1555 = vpop.xlane.xlu0 %1554
        %v1556 = vsel %vm1510, %v1546, 0.0
        %1557 = vadd.xlane.f32.xlu0 %v1556
        %v1558 = vpop.xlane.xlu0 %1557
        %v1561 = vunpack.c.l.b16 %v1291
        %v1562 = vunpack.c.l.b16 %v1292
        %v1563 = vpack.c.b16 %v1562, %v1561
        %v1566 = vsel %vm1510, %v1533, 0
        %1568 = vmatprep.subr.bf16.mxu0 0
        %1569 = vmatpush1.bf16.msra.mxu0 0
        %1570 = vmatprep.subr.bf16.mxu0 0
        %1571 = vmatpush1.bf16.msra.mxu0 0
        %1572 = vmatprep.subr.bf16.mxu0 0
        %1573 = vmatpush1.bf16.msra.mxu0 0
        %1574 = vmatprep.subr.bf16.mxu0 0
        %1575 = vmatpush1.bf16.msra.mxu0 0
        %1576 = vmatprep.subr.bf16.mxu0 0
        %1577 = vmatpush1.bf16.msra.mxu0 0
        %1578 = vmatprep.subr.bf16.mxu0 0
        %1579 = vmatpush1.bf16.msra.mxu0 0
        %1580 = vmatprep.subr.bf16.mxu0 0
        %1581 = vmatpush1.bf16.msra.mxu0 0
        %1582 = vmatprep.subr.bf16.mxu0 0
        %1583 = vmatpush1.bf16.msra.mxu0 %v1563
        %1584 = vmatprep.subr.bf16.mxu0 0
        %1585 = vmatpush2.bf16.msra.mxu0 0
        %1586 = vmatprep.subr.bf16.mxu0 0
        %1587 = vmatpush2.bf16.msra.mxu0 0
        %1588 = vmatprep.subr.bf16.mxu0 0
        %1589 = vmatpush2.bf16.msra.mxu0 0
        %1590 = vmatprep.subr.bf16.mxu0 0
        %1591 = vmatpush2.bf16.msra.mxu0 0
        %1592 = vmatprep.subr.bf16.mxu0 0
        %1593 = vmatpush2.bf16.msra.mxu0 0
        %1594 = vmatprep.subr.bf16.mxu0 0
        %1595 = vmatpush2.bf16.msra.mxu0 0
        %1596 = vmatprep.subr.bf16.mxu0 0
        %1597 = vmatpush2.bf16.msra.mxu0 0
        %1598 = vmatprep.subr.bf16.mxu0 0
        %1599 = vmatpush2.bf16.msra.mxu0 0
        %1600 = vmatprep.mubr.bf16.mxu0 0
        %1601 = vmatmul.mubr.bf16.gmra.mxu0 %v1566
        %v1602 = vpop.f32.mrf.mxu0
        %v1603 = vadd.f32 0.0, %v1602
        %v1604 = vpop.f32.mrf.mxu0
        %v1605 = vpop.f32.mrf.mxu0
        %v1606 = vpop.f32.mrf.mxu0
        %1607 = vdwg.mxu0
        %v1610 = vunpack.c.l.b16 %v1293
        %v1611 = vunpack.c.l.b16 %v1294
        %v1612 = vpack.c.b16 %v1611, %v1610
        %v1615 = vsel %vm1510, %v1536, 0
        %1617 = vmatprep.subr.bf16.mxu0 0
        %1618 = vmatpush1.bf16.msra.mxu0 0
        %1619 = vmatprep.subr.bf16.mxu0 0
        %1620 = vmatpush1.bf16.msra.mxu0 0
        %1621 = vmatprep.subr.bf16.mxu0 0
        %1622 = vmatpush1.bf16.msra.mxu0 0
        %1623 = vmatprep.subr.bf16.mxu0 0
        %1624 = vmatpush1.bf16.msra.mxu0 0
        %1625 = vmatprep.subr.bf16.mxu0 0
        %1626 = vmatpush1.bf16.msra.mxu0 0
        %1627 = vmatprep.subr.bf16.mxu0 0
        %1628 = vmatpush1.bf16.msra.mxu0 0
        %1629 = vmatprep.subr.bf16.mxu0 0
        %1630 = vmatpush1.bf16.msra.mxu0 0
        %1631 = vmatprep.subr.bf16.mxu0 0
        %1632 = vmatpush1.bf16.msra.mxu0 %v1612
        %1633 = vmatprep.subr.bf16.mxu0 0
        %1634 = vmatpush2.bf16.msra.mxu0 0
        %1635 = vmatprep.subr.bf16.mxu0 0
        %1636 = vmatpush2.bf16.msra.mxu0 0
        %1637 = vmatprep.subr.bf16.mxu0 0
        %1638 = vmatpush2.bf16.msra.mxu0 0
        %1639 = vmatprep.subr.bf16.mxu0 0
        %1640 = vmatpush2.bf16.msra.mxu0 0
        %1641 = vmatprep.subr.bf16.mxu0 0
        %1642 = vmatpush2.bf16.msra.mxu0 0
        %1643 = vmatprep.subr.bf16.mxu0 0
        %1644 = vmatpush2.bf16.msra.mxu0 0
        %1645 = vmatprep.subr.bf16.mxu0 0
        %1646 = vmatpush2.bf16.msra.mxu0 0
        %1647 = vmatprep.subr.bf16.mxu0 0
        %1648 = vmatpush2.bf16.msra.mxu0 0
        %1649 = vmatprep.mubr.bf16.mxu0 0
        %1650 = vmatmul.mubr.bf16.gmra.mxu0 %v1615
        %v1651 = vpop.f32.mrf.mxu0
        %v1652 = vadd.f32 0.0, %v1651
        %v1653 = vpop.f32.mrf.mxu0
        %v1654 = vpop.f32.mrf.mxu0
        %v1655 = vpop.f32.mrf.mxu0
        %1656 = vdwg.mxu0
        %v1659 = vunpack.c.l.b16 %v1295
        %v1660 = vunpack.c.l.b16 %v1296
        %v1661 = vpack.c.b16 %v1660, %v1659
        %v1664 = vsel %vm1510, %v1539, 0
        %1666 = vmatprep.subr.bf16.mxu0 0
        %1667 = vmatpush1.bf16.msra.mxu0 0
        %1668 = vmatprep.subr.bf16.mxu0 0
        %1669 = vmatpush1.bf16.msra.mxu0 0
        %1670 = vmatprep.subr.bf16.mxu0 0
        %1671 = vmatpush1.bf16.msra.mxu0 0
        %1672 = vmatprep.subr.bf16.mxu0 0
        %1673 = vmatpush1.bf16.msra.mxu0 0
        %1674 = vmatprep.subr.bf16.mxu0 0
        %1675 = vmatpush1.bf16.msra.mxu0 0
        %1676 = vmatprep.subr.bf16.mxu0 0
        %1677 = vmatpush1.bf16.msra.mxu0 0
        %1678 = vmatprep.subr.bf16.mxu0 0
        %1679 = vmatpush1.bf16.msra.mxu0 0
        %1680 = vmatprep.subr.bf16.mxu0 0
        %1681 = vmatpush1.bf16.msra.mxu0 %v1661
        %1682 = vmatprep.subr.bf16.mxu0 0
        %1683 = vmatpush2.bf16.msra.mxu0 0
        %1684 = vmatprep.subr.bf16.mxu0 0
        %1685 = vmatpush2.bf16.msra.mxu0 0
        %1686 = vmatprep.subr.bf16.mxu0 0
        %1687 = vmatpush2.bf16.msra.mxu0 0
        %1688 = vmatprep.subr.bf16.mxu0 0
        %1689 = vmatpush2.bf16.msra.mxu0 0
        %1690 = vmatprep.subr.bf16.mxu0 0
        %1691 = vmatpush2.bf16.msra.mxu0 0
        %1692 = vmatprep.subr.bf16.mxu0 0
        %1693 = vmatpush2.bf16.msra.mxu0 0
        %1694 = vmatprep.subr.bf16.mxu0 0
        %1695 = vmatpush2.bf16.msra.mxu0 0
        %1696 = vmatprep.subr.bf16.mxu0 0
        %1697 = vmatpush2.bf16.msra.mxu0 0
        %1698 = vmatprep.mubr.bf16.mxu0 0
        %1699 = vmatmul.mubr.bf16.gmra.mxu0 %v1664
        %v1700 = vpop.f32.mrf.mxu0
        %v1701 = vadd.f32 0.0, %v1700
        %v1702 = vpop.f32.mrf.mxu0
        %v1703 = vpop.f32.mrf.mxu0
        %v1704 = vpop.f32.mrf.mxu0
        %1705 = vdwg.mxu0
        %v1708 = vunpack.c.l.b16 %v1297
        %v1709 = vunpack.c.l.b16 %v1298
        %v1710 = vpack.c.b16 %v1709, %v1708
        %v1713 = vsel %vm1510, %v1542, 0
        %1715 = vmatprep.subr.bf16.mxu0 0
        %1716 = vmatpush1.bf16.msra.mxu0 0
        %1717 = vmatprep.subr.bf16.mxu0 0
        %1718 = vmatpush1.bf16.msra.mxu0 0
        %1719 = vmatprep.subr.bf16.mxu0 0
        %1720 = vmatpush1.bf16.msra.mxu0 0
        %1721 = vmatprep.subr.bf16.mxu0 0
        %1722 = vmatpush1.bf16.msra.mxu0 0
        %1723 = vmatprep.subr.bf16.mxu0 0
        %1724 = vmatpush1.bf16.msra.mxu0 0
        %1725 = vmatprep.subr.bf16.mxu0 0
        %1726 = vmatpush1.bf16.msra.mxu0 0
        %1727 = vmatprep.subr.bf16.mxu0 0
        %1728 = vmatpush1.bf16.msra.mxu0 0
        %1729 = vmatprep.subr.bf16.mxu0 0
        %1730 = vmatpush1.bf16.msra.mxu0 %v1710
        %1731 = vmatprep.subr.bf16.mxu0 0
        %1732 = vmatpush2.bf16.msra.mxu0 0
        %1733 = vmatprep.subr.bf16.mxu0 0
        %1734 = vmatpush2.bf16.msra.mxu0 0
        %1735 = vmatprep.subr.bf16.mxu0 0
        %1736 = vmatpush2.bf16.msra.mxu0 0
        %1737 = vmatprep.subr.bf16.mxu0 0
        %1738 = vmatpush2.bf16.msra.mxu0 0
        %1739 = vmatprep.subr.bf16.mxu0 0
        %1740 = vmatpush2.bf16.msra.mxu0 0
        %1741 = vmatprep.subr.bf16.mxu0 0
        %1742 = vmatpush2.bf16.msra.mxu0 0
        %1743 = vmatprep.subr.bf16.mxu0 0
        %1744 = vmatpush2.bf16.msra.mxu0 0
        %1745 = vmatprep.subr.bf16.mxu0 0
        %1746 = vmatpush2.bf16.msra.mxu0 0
        %1747 = vmatprep.mubr.bf16.mxu0 0
        %1748 = vmatmul.mubr.bf16.gmra.mxu0 %v1713
        %v1749 = vpop.f32.mrf.mxu0
        %v1750 = vadd.f32 0.0, %v1749
        %v1751 = vpop.f32.mrf.mxu0
        %v1752 = vpop.f32.mrf.mxu0
        %v1753 = vpop.f32.mrf.mxu0
        %1754 = vdwg.mxu0
        %v1755 = vrcp.pop %v1549
        %v1756 = vrcp.pop %v1552
        %v1757 = vrcp.pop %v1555
        %v1758 = vrcp.pop %v1558
        %v1759 = vmul.f32 %v1603, %v1755
        %v1760 = vmul.f32 %v1652, %v1756
        %v1761 = vmul.f32 %v1701, %v1757
        %v1762 = vmul.f32 %v1750, %v1758
        %1763 = vst.msk [vmem:[#allocation6] sm:$0xff] %vm1304, %v1759
        %1765 = vrot.lane.b32.xlu0 %v1760, 8
        %v1766 = vpop.permute.xlu0 %1765
        %vm1768 = vcmask 130112
        %1769 = vst.msk [vmem:[#allocation6] sm:$0xff] %vm1768, %v1766
        %1771 = vrot.lane.b32.xlu0 %v1761, 16
        %v1772 = vpop.permute.xlu0 %1771
        %vm1774 = vcmask 195712
        %1775 = vst.msk [vmem:[#allocation6] sm:$0xff] %vm1774, %v1772
        %1777 = vrot.lane.b32.xlu0 %v1762, 24
        %v1778 = vpop.permute.xlu0 %1777
        %vm1780 = vcmask 261312
        %1781 = vst.msk [vmem:[#allocation6] sm:$0xff] %vm1780, %v1778
        %v1782 = vld [vmem:[#allocation6] sm:$0xff]
        %v1783 = vpack.c.bf16 %v1782, %v1782
        %v1784 = vld [vmem:[%s9] sm:$0xf]
        %v1785 = vld [vmem:[%s9 + $0x4] sm:$0xf]
        %v1786 = vld [vmem:[%s9 + $0x8] sm:$0xf]
        %v1787 = vld [vmem:[%s9 + $0xc] sm:$0xf]
        %v1788 = vld [vmem:[#allocation18] sm:$0x1]
        %v1790 = vlaneseq
        %v1791 = vshrl.u32 %v1790, 7
        %v1792 = vsub.s32 0, %v1791
        %v1793 = vrot.slane %v1788, %v1792
        %v1799 = vunpack.c.l.b16 %v1784
        %v1800 = vunpack.c.l.b16 %v1785
        %v1801 = vunpack.c.l.b16 %v1786
        %v1802 = vunpack.c.l.b16 %v1787
        %v1803 = vpack.c.b16 %v1800, %v1799
        %v1804 = vpack.c.b16 %v1802, %v1801
        %v1808 = vsel %vm1202, %v1783, 0
        %1810 = vmatprep.subr.bf16.mxu0 0
        %1811 = vmatpush1.bf16.msra.mxu0 0
        %1812 = vmatprep.subr.bf16.mxu0 0
        %1813 = vmatpush1.bf16.msra.mxu0 0
        %1814 = vmatprep.subr.bf16.mxu0 0
        %1815 = vmatpush1.bf16.msra.mxu0 0
        %1816 = vmatprep.subr.bf16.mxu0 0
        %1817 = vmatpush1.bf16.msra.mxu0 0
        %1818 = vmatprep.subr.bf16.mxu0 0
        %1819 = vmatpush1.bf16.msra.mxu0 0
        %1820 = vmatprep.subr.bf16.mxu0 0
        %1821 = vmatpush1.bf16.msra.mxu0 0
        %1822 = vmatprep.subr.bf16.mxu0 0
        %1823 = vmatpush1.bf16.msra.mxu0 %v1804
        %1824 = vmatprep.subr.bf16.mxu0 0
        %1825 = vmatpush1.bf16.msra.mxu0 %v1803
        %1826 = vmatprep.subr.bf16.mxu0 0
        %1827 = vmatpush2.bf16.msra.mxu0 0
        %1828 = vmatprep.subr.bf16.mxu0 0
        %1829 = vmatpush2.bf16.msra.mxu0 0
        %1830 = vmatprep.subr.bf16.mxu0 0
        %1831 = vmatpush2.bf16.msra.mxu0 0
        %1832 = vmatprep.subr.bf16.mxu0 0
        %1833 = vmatpush2.bf16.msra.mxu0 0
        %1834 = vmatprep.subr.bf16.mxu0 0
        %1835 = vmatpush2.bf16.msra.mxu0 0
        %1836 = vmatprep.subr.bf16.mxu0 0
        %1837 = vmatpush2.bf16.msra.mxu0 0
        %1838 = vmatprep.subr.bf16.mxu0 0
        %1839 = vmatpush2.bf16.msra.mxu0 0
        %1840 = vmatprep.subr.bf16.mxu0 0
        %1841 = vmatpush2.bf16.msra.mxu0 0
        %1842 = vmatprep.mubr.bf16.mxu0 0
        %1843 = vmatmul.mubr.bf16.gmra.mxu0 %v1808
        %v1844 = vpop.f32.mrf.mxu0
        %v1845 = vadd.f32 %v1793, %v1844
        %v1846 = vpop.f32.mrf.mxu0
        %v1847 = vpop.f32.mrf.mxu0
        %v1848 = vpop.f32.mrf.mxu0
        %1849 = vdwg.mxu0
        %v1850 = vadd.f32 %v1845, %v1175
        %v1851 = vld [vmem:[#allocation12 + $0x1] sm:$0x1]
        %v1852 = vld [vmem:[#allocation14 + $0x1] sm:$0x1]
        %v1853 = vsel %vm1202, %v1850, 0.0
        %1854 = vadd.xlane.f32.xlu0 %v1853
        %v1855 = vpop.xlane.xlu0 %1854
        %v1856 = vrcp.pop 32.0
        %v1857 = vmul.f32 %v1855, %v1856
        %v1858 = vsub.f32 %v1850, %v1857
        %v1859 = vmul.f32 %v1858, %v1858
        %v1860 = vsel %vm1202, %v1859, 0.0
        %1861 = vadd.xlane.f32.xlu0 %v1860
        %v1862 = vpop.xlane.xlu0 %1861
        %v1863 = vmul.f32 %v1862, %v1856
        %v1864 = vadd.f32 %v1863, 1e-06
        %v1865 = vrsqrt.pop %v1864
        %v1866 = vmul.f32 %v1858, %v1865
        %v1867 = vlaneseq
        %v1868 = vshrl.u32 %v1867, 7
        %v1869 = vsub.s32 0, %v1868
        %v1870 = vrot.slane %v1851, %v1869
        %v1871 = vmul.f32 %v1866, %v1870
        %v1872 = vlaneseq
        %v1873 = vshrl.u32 %v1872, 7
        %v1874 = vsub.s32 0, %v1873
        %v1875 = vrot.slane %v1852, %v1874
        %v1876 = vadd.f32 %v1871, %v1875
        %v1877 = vpack.c.bf16 %v1876, %v1876
        %v1878 = vld [vmem:[#allocation20] sm:$0xf]
        %v1879 = vld [vmem:[#allocation20 + $0x4] sm:$0xf]
        %v1880 = vld [vmem:[#allocation20 + $0x8] sm:$0xf]
        %v1881 = vld [vmem:[#allocation20 + $0xc] sm:$0xf]
        %v1882 = vld [vmem:[#allocation21] sm:$0x1]
        %v1884 = vlaneseq
        %v1885 = vshrl.u32 %v1884, 7
        %v1886 = vsub.s32 0, %v1885
        %v1887 = vrot.slane %v1882, %v1886
        %v1893 = vunpack.c.l.b16 %v1878
        %v1894 = vunpack.c.l.b16 %v1879
        %v1895 = vunpack.c.l.b16 %v1880
        %v1896 = vunpack.c.l.b16 %v1881
        %v1897 = vpack.c.b16 %v1894, %v1893
        %v1898 = vpack.c.b16 %v1896, %v1895
        %v1902 = vsel %vm1202, %v1877, 0
        %1904 = vmatprep.subr.bf16.mxu0 0
        %1905 = vmatpush1.bf16.msra.mxu0 0
        %1906 = vmatprep.subr.bf16.mxu0 0
        %1907 = vmatpush1.bf16.msra.mxu0 0
        %1908 = vmatprep.subr.bf16.mxu0 0
        %1909 = vmatpush1.bf16.msra.mxu0 0
        %1910 = vmatprep.subr.bf16.mxu0 0
        %1911 = vmatpush1.bf16.msra.mxu0 0
        %1912 = vmatprep.subr.bf16.mxu0 0
        %1913 = vmatpush1.bf16.msra.mxu0 0
        %1914 = vmatprep.subr.bf16.mxu0 0
        %1915 = vmatpush1.bf16.msra.mxu0 0
        %1916 = vmatprep.subr.bf16.mxu0 0
        %1917 = vmatpush1.bf16.msra.mxu0 %v1898
        %1918 = vmatprep.subr.bf16.mxu0 0
        %1919 = vmatpush1.bf16.msra.mxu0 %v1897
        %1920 = vmatprep.subr.bf16.mxu0 0
        %1921 = vmatpush2.bf16.msra.mxu0 0
        %1922 = vmatprep.subr.bf16.mxu0 0
        %1923 = vmatpush2.bf16.msra.mxu0 0
        %1924 = vmatprep.subr.bf16.mxu0 0
        %1925 = vmatpush2.bf16.msra.mxu0 0
        %1926 = vmatprep.subr.bf16.mxu0 0
        %1927 = vmatpush2.bf16.msra.mxu0 0
        %1928 = vmatprep.subr.bf16.mxu0 0
        %1929 = vmatpush2.bf16.msra.mxu0 0
        %1930 = vmatprep.subr.bf16.mxu0 0
        %1931 = vmatpush2.bf16.msra.mxu0 0
        %1932 = vmatprep.subr.bf16.mxu0 0
        %1933 = vmatpush2.bf16.msra.mxu0 0
        %1934 = vmatprep.subr.bf16.mxu0 0
        %1935 = vmatpush2.bf16.msra.mxu0 0
        %1936 = vmatprep.mubr.bf16.mxu0 0
        %1937 = vmatmul.mubr.bf16.gmra.mxu0 %v1902
        %v1938 = vpop.f32.mrf.mxu0
        %v1939 = vadd.f32 %v1887, %v1938
        %v1940 = vpop.f32.mrf.mxu0
        %v1941 = vpop.f32.mrf.mxu0
        %v1942 = vpop.f32.mrf.mxu0
        %1943 = vdwg.mxu0
        %v1944 = vstv %s860
        %vm1945 = vcmp.lt.s32.totalorder %v1251, %v1944
        %v1946 = vmul.f32 %v1939, 0.35355338
        %v1947 = vpack.c.bf16 %v1946, %v1946
        %1948 = vst.msk [vmem:[#allocation5] sm:$0xf] %vm1258, %v1947
        %v1950 = vunpack.c.l.b16 %v1947
        %v1951 = vpack.c.b16 %v1950, %v1950
        %1952 = vrot.lane.b32.xlu0 %v1951, 120
        %v1953 = vpop.permute.xlu0 %1952
        %1955 = vst.msk [vmem:[%s1266] sm:$0xf] %vm1258, %v1953
        %1956 = vrot.lane.b32.xlu0 %v1951, 112
        %v1957 = vpop.permute.xlu0 %1956
        %1959 = vst.msk [vmem:[%s1271] sm:$0xf] %vm1258, %v1957
        %1960 = vrot.lane.b32.xlu0 %v1951, 104
        %v1961 = vpop.permute.xlu0 %1960
        %1963 = vst.msk [vmem:[%s1276] sm:$0xf] %vm1258, %v1961
        %v1964 = vld [vmem:[#allocation5] sm:$0xf]
        %v1965 = vld [vmem:[#allocation5 + $0x4] sm:$0xf]
        %v1966 = vld [vmem:[#allocation5 + $0x8] sm:$0xf]
        %v1967 = vld [vmem:[#allocation5 + $0xc] sm:$0xf]
        %v1968 = vld [vmem:[#allocation4] sm:$0xf]
        %v1969 = vld [vmem:[#allocation4 + $0x4] sm:$0xf]
        %v1970 = vld [vmem:[#allocation4 + $0x8] sm:$0xf]
        %v1971 = vld [vmem:[#allocation4 + $0xc] sm:$0xf]
        %s1972 = scalar_lea.vmem [#allocation4], 16
        %v1973 = vld [vmem:[%s1972] sm:$0xf]
        %v1974 = vld [vmem:[%s1972 + $0x4] sm:$0xf]
        %v1975 = vld [vmem:[%s1972 + $0x8] sm:$0xf]
        %v1976 = vld [vmem:[%s1972 + $0xc] sm:$0xf]
        %v1978 = vsel %vm1304, %v1964, 0
        %v1981 = vsel %vm1304, %v1968, 0
        %1983 = vmatprep.subr.bf16.mxu0 0
        %1984 = vmatpush1.bf16.xpose.msra.mxu0 0
        %1985 = vmatprep.subr.bf16.mxu0 0
        %1986 = vmatpush1.bf16.xpose.msra.mxu0 0
        %1987 = vmatprep.subr.bf16.mxu0 0
        %1988 = vmatpush1.bf16.xpose.msra.mxu0 0
        %1989 = vmatprep.subr.bf16.mxu0 0
        %1990 = vmatpush1.bf16.xpose.msra.mxu0 0
        %1991 = vmatprep.subr.bf16.mxu0 0
        %1992 = vmatpush1.bf16.xpose.msra.mxu0 0
        %1993 = vmatprep.subr.bf16.mxu0 0
        %1994 = vmatpush1.bf16.xpose.msra.mxu0 0
        %1995 = vmatprep.subr.bf16.mxu0 0
        %1996 = vmatpush1.bf16.xpose.msra.mxu0 0
        %1997 = vmatprep.subr.bf16.mxu0 0
        %1998 = vmatpush1.bf16.xpose.msra.mxu0 %v1981
        %1999 = vmatprep.subr.bf16.mxu0 0
        %2000 = vmatpush2.bf16.xpose.msra.mxu0 0
        %2001 = vmatprep.subr.bf16.mxu0 0
        %2002 = vmatpush2.bf16.xpose.msra.mxu0 0
        %2003 = vmatprep.subr.bf16.mxu0 0
        %2004 = vmatpush2.bf16.xpose.msra.mxu0 0
        %2005 = vmatprep.subr.bf16.mxu0 0
        %2006 = vmatpush2.bf16.xpose.msra.mxu0 0
        %2007 = vmatprep.subr.bf16.mxu0 0
        %2008 = vmatpush2.bf16.xpose.msra.mxu0 0
        %2009 = vmatprep.subr.bf16.mxu0 0
        %2010 = vmatpush2.bf16.xpose.msra.mxu0 0
        %2011 = vmatprep.subr.bf16.mxu0 0
        %2012 = vmatpush2.bf16.xpose.msra.mxu0 0
        %2013 = vmatprep.subr.bf16.mxu0 0
        %2014 = vmatpush2.bf16.xpose.msra.mxu0 0
        %2015 = vmatprep.mubr.bf16.mxu0 0
        %2016 = vmatmul.mubr.bf16.gmra.mxu0 %v1978
        %v2017 = vpop.f32.mrf.mxu0
        %v2018 = vadd.f32 0.0, %v2017
        %v2019 = vpop.f32.mrf.mxu0
        %v2020 = vpop.f32.mrf.mxu0
        %v2021 = vpop.f32.mrf.mxu0
        %2022 = vdwg.mxu0
        %v2024 = vsel %vm1304, %v1965, 0
        %v2027 = vsel %vm1304, %v1969, 0
        %2029 = vmatprep.subr.bf16.mxu0 0
        %2030 = vmatpush1.bf16.xpose.msra.mxu0 0
        %2031 = vmatprep.subr.bf16.mxu0 0
        %2032 = vmatpush1.bf16.xpose.msra.mxu0 0
        %2033 = vmatprep.subr.bf16.mxu0 0
        %2034 = vmatpush1.bf16.xpose.msra.mxu0 0
        %2035 = vmatprep.subr.bf16.mxu0 0
        %2036 = vmatpush1.bf16.xpose.msra.mxu0 0
        %2037 = vmatprep.subr.bf16.mxu0 0
        %2038 = vmatpush1.bf16.xpose.msra.mxu0 0
        %2039 = vmatprep.subr.bf16.mxu0 0
        %2040 = vmatpush1.bf16.xpose.msra.mxu0 0
        %2041 = vmatprep.subr.bf16.mxu0 0
        %2042 = vmatpush1.bf16.xpose.msra.mxu0 0
        %2043 = vmatprep.subr.bf16.mxu0 0
        %2044 = vmatpush1.bf16.xpose.msra.mxu0 %v2027
        %2045 = vmatprep.subr.bf16.mxu0 0
        %2046 = vmatpush2.bf16.xpose.msra.mxu0 0
        %2047 = vmatprep.subr.bf16.mxu0 0
        %2048 = vmatpush2.bf16.xpose.msra.mxu0 0
        %2049 = vmatprep.subr.bf16.mxu0 0
        %2050 = vmatpush2.bf16.xpose.msra.mxu0 0
        %2051 = vmatprep.subr.bf16.mxu0 0
        %2052 = vmatpush2.bf16.xpose.msra.mxu0 0
        %2053 = vmatprep.subr.bf16.mxu0 0
        %2054 = vmatpush2.bf16.xpose.msra.mxu0 0
        %2055 = vmatprep.subr.bf16.mxu0 0
        %2056 = vmatpush2.bf16.xpose.msra.mxu0 0
        %2057 = vmatprep.subr.bf16.mxu0 0
        %2058 = vmatpush2.bf16.xpose.msra.mxu0 0
        %2059 = vmatprep.subr.bf16.mxu0 0
        %2060 = vmatpush2.bf16.xpose.msra.mxu0 0
        %2061 = vmatprep.mubr.bf16.mxu0 0
        %2062 = vmatmul.mubr.bf16.gmra.mxu0 %v2024
        %v2063 = vpop.f32.mrf.mxu0
        %v2064 = vadd.f32 0.0, %v2063
        %v2065 = vpop.f32.mrf.mxu0
        %v2066 = vpop.f32.mrf.mxu0
        %v2067 = vpop.f32.mrf.mxu0
        %2068 = vdwg.mxu0
        %v2070 = vsel %vm1304, %v1966, 0
        %v2073 = vsel %vm1304, %v1970, 0
        %2075 = vmatprep.subr.bf16.mxu0 0
        %2076 = vmatpush1.bf16.xpose.msra.mxu0 0
        %2077 = vmatprep.subr.bf16.mxu0 0
        %2078 = vmatpush1.bf16.xpose.msra.mxu0 0
        %2079 = vmatprep.subr.bf16.mxu0 0
        %2080 = vmatpush1.bf16.xpose.msra.mxu0 0
        %2081 = vmatprep.subr.bf16.mxu0 0
        %2082 = vmatpush1.bf16.xpose.msra.mxu0 0
        %2083 = vmatprep.subr.bf16.mxu0 0
        %2084 = vmatpush1.bf16.xpose.msra.mxu0 0
        %2085 = vmatprep.subr.bf16.mxu0 0
        %2086 = vmatpush1.bf16.xpose.msra.mxu0 0
        %2087 = vmatprep.subr.bf16.mxu0 0
        %2088 = vmatpush1.bf16.xpose.msra.mxu0 0
        %2089 = vmatprep.subr.bf16.mxu0 0
        %2090 = vmatpush1.bf16.xpose.msra.mxu0 %v2073
        %2091 = vmatprep.subr.bf16.mxu0 0
        %2092 = vmatpush2.bf16.xpose.msra.mxu0 0
        %2093 = vmatprep.subr.bf16.mxu0 0
        %2094 = vmatpush2.bf16.xpose.msra.mxu0 0
        %2095 = vmatprep.subr.bf16.mxu0 0
        %2096 = vmatpush2.bf16.xpose.msra.mxu0 0
        %2097 = vmatprep.subr.bf16.mxu0 0
        %2098 = vmatpush2.bf16.xpose.msra.mxu0 0
        %2099 = vmatprep.subr.bf16.mxu0 0
        %2100 = vmatpush2.bf16.xpose.msra.mxu0 0
        %2101 = vmatprep.subr.bf16.mxu0 0
        %2102 = vmatpush2.bf16.xpose.msra.mxu0 0
        %2103 = vmatprep.subr.bf16.mxu0 0
        %2104 = vmatpush2.bf16.xpose.msra.mxu0 0
        %2105 = vmatprep.subr.bf16.mxu0 0
        %2106 = vmatpush2.bf16.xpose.msra.mxu0 0
        %2107 = vmatprep.mubr.bf16.mxu0 0
        %2108 = vmatmul.mubr.bf16.gmra.mxu0 %v2070
        %v2109 = vpop.f32.mrf.mxu0
        %v2110 = vadd.f32 0.0, %v2109
        %v2111 = vpop.f32.mrf.mxu0
        %v2112 = vpop.f32.mrf.mxu0
        %v2113 = vpop.f32.mrf.mxu0
        %2114 = vdwg.mxu0
        %v2116 = vsel %vm1304, %v1967, 0
        %v2119 = vsel %vm1304, %v1971, 0
        %2121 = vmatprep.subr.bf16.mxu0 0
        %2122 = vmatpush1.bf16.xpose.msra.mxu0 0
        %2123 = vmatprep.subr.bf16.mxu0 0
        %2124 = vmatpush1.bf16.xpose.msra.mxu0 0
        %2125 = vmatprep.subr.bf16.mxu0 0
        %2126 = vmatpush1.bf16.xpose.msra.mxu0 0
        %2127 = vmatprep.subr.bf16.mxu0 0
        %2128 = vmatpush1.bf16.xpose.msra.mxu0 0
        %2129 = vmatprep.subr.bf16.mxu0 0
        %2130 = vmatpush1.bf16.xpose.msra.mxu0 0
        %2131 = vmatprep.subr.bf16.mxu0 0
        %2132 = vmatpush1.bf16.xpose.msra.mxu0 0
        %2133 = vmatprep.subr.bf16.mxu0 0
        %2134 = vmatpush1.bf16.xpose.msra.mxu0 0
        %2135 = vmatprep.subr.bf16.mxu0 0
        %2136 = vmatpush1.bf16.xpose.msra.mxu0 %v2119
        %2137 = vmatprep.subr.bf16.mxu0 0
        %2138 = vmatpush2.bf16.xpose.msra.mxu0 0
        %2139 = vmatprep.subr.bf16.mxu0 0
        %2140 = vmatpush2.bf16.xpose.msra.mxu0 0
        %2141 = vmatprep.subr.bf16.mxu0 0
        %2142 = vmatpush2.bf16.xpose.msra.mxu0 0
        %2143 = vmatprep.subr.bf16.mxu0 0
        %2144 = vmatpush2.bf16.xpose.msra.mxu0 0
        %2145 = vmatprep.subr.bf16.mxu0 0
        %2146 = vmatpush2.bf16.xpose.msra.mxu0 0
        %2147 = vmatprep.subr.bf16.mxu0 0
        %2148 = vmatpush2.bf16.xpose.msra.mxu0 0
        %2149 = vmatprep.subr.bf16.mxu0 0
        %2150 = vmatpush2.bf16.xpose.msra.mxu0 0
        %2151 = vmatprep.subr.bf16.mxu0 0
        %2152 = vmatpush2.bf16.xpose.msra.mxu0 0
        %2153 = vmatprep.mubr.bf16.mxu0 0
        %2154 = vmatmul.mubr.bf16.gmra.mxu0 %v2116
        %v2155 = vpop.f32.mrf.mxu0
        %v2156 = vadd.f32 0.0, %v2155
        %v2157 = vpop.f32.mrf.mxu0
        %v2158 = vpop.f32.mrf.mxu0
        %v2159 = vpop.f32.mrf.mxu0
        %2160 = vdwg.mxu0
        %v2161 = vsel %vm1945, 1, 0
        %vm2162 = vcmp.eq.s32.totalorder %v2161, 1
        %v2163 = vsel %vm2162, %v2018, -1e+30
        %v2164 = vsel %vm2162, %v2064, -1e+30
        %v2165 = vsel %vm2162, %v2110, -1e+30
        %v2166 = vsel %vm2162, %v2156, -1e+30
        %v2167 = vsel %vm1304, %v2163, -inf
        %2168 = vmax.xlane.f32.xlu0 %v2167
        %v2169 = vpop.xlane.xlu0 %2168
        %v2170 = vsel %vm1304, %v2164, -inf
        %2171 = vmax.xlane.f32.xlu0 %v2170
        %v2172 = vpop.xlane.xlu0 %2171
        %v2173 = vsel %vm1304, %v2165, -inf
        %2174 = vmax.xlane.f32.xlu0 %v2173
        %v2175 = vpop.xlane.xlu0 %2174
        %v2176 = vsel %vm1304, %v2166, -inf
        %2177 = vmax.xlane.f32.xlu0 %v2176
        %v2178 = vpop.xlane.xlu0 %2177
        %v2179 = vsub.f32 %v2163, %v2169
        %v2180 = vsub.f32 %v2164, %v2172
        %v2181 = vsub.f32 %v2165, %v2175
        %v2182 = vsub.f32 %v2166, %v2178
        %v2183 = vpack.c.bf16 %v2179, %v2179
        %v2184 = vpack.c.bf16 %v2180, %v2180
        %v2185 = vpack.c.bf16 %v2181, %v2181
        %v2186 = vpack.c.bf16 %v2182, %v2182
        %v2188 = vmul.bf16 %v2183, 1069105081
        %v2189 = vpow.bf16.pop %v2188
        %v2191 = vmul.bf16 %v2184, 1069105081
        %v2192 = vpow.bf16.pop %v2191
        %v2194 = vmul.bf16 %v2185, 1069105081
        %v2195 = vpow.bf16.pop %v2194
        %v2197 = vmul.bf16 %v2186, 1069105081
        %v2198 = vpow.bf16.pop %v2197
        %v2199 = vunpack.c.l.bf16 %v2189
        %v2200 = vunpack.c.l.bf16 %v2192
        %v2201 = vunpack.c.l.bf16 %v2195
        %v2202 = vunpack.c.l.bf16 %v2198
        %v2203 = vsel %vm1304, %v2199, 0.0
        %2204 = vadd.xlane.f32.xlu0 %v2203
        %v2205 = vpop.xlane.xlu0 %2204
        %v2206 = vsel %vm1304, %v2200, 0.0
        %2207 = vadd.xlane.f32.xlu0 %v2206
        %v2208 = vpop.xlane.xlu0 %2207
        %v2209 = vsel %vm1304, %v2201, 0.0
        %2210 = vadd.xlane.f32.xlu0 %v2209
        %v2211 = vpop.xlane.xlu0 %2210
        %v2212 = vsel %vm1304, %v2202, 0.0
        %2213 = vadd.xlane.f32.xlu0 %v2212
        %v2214 = vpop.xlane.xlu0 %2213
        %v2216 = vsel %vm1304, %v2189, 0
        %vm2218 = vcmask 1043456
        %v2220 = vsel %vm2218, %v1973, 0
        %2222 = vmatprep.subr.bf16.mxu0 0
        %2223 = vmatpush1.bf16.msra.mxu0 0
        %2224 = vmatprep.subr.bf16.mxu0 0
        %2225 = vmatpush1.bf16.msra.mxu0 0
        %2226 = vmatprep.subr.bf16.mxu0 0
        %2227 = vmatpush1.bf16.msra.mxu0 0
        %2228 = vmatprep.subr.bf16.mxu0 0
        %2229 = vmatpush1.bf16.msra.mxu0 0
        %2230 = vmatprep.subr.bf16.mxu0 0
        %2231 = vmatpush1.bf16.msra.mxu0 0
        %2232 = vmatprep.subr.bf16.mxu0 0
        %2233 = vmatpush1.bf16.msra.mxu0 0
        %2234 = vmatprep.subr.bf16.mxu0 0
        %2235 = vmatpush1.bf16.msra.mxu0 0
        %2236 = vmatprep.subr.bf16.mxu0 0
        %2237 = vmatpush1.bf16.msra.mxu0 %v2220
        %2238 = vmatprep.subr.bf16.mxu0 0
        %2239 = vmatpush2.bf16.msra.mxu0 0
        %2240 = vmatprep.subr.bf16.mxu0 0
        %2241 = vmatpush2.bf16.msra.mxu0 0
        %2242 = vmatprep.subr.bf16.mxu0 0
        %2243 = vmatpush2.bf16.msra.mxu0 0
        %2244 = vmatprep.subr.bf16.mxu0 0
        %2245 = vmatpush2.bf16.msra.mxu0 0
        %2246 = vmatprep.subr.bf16.mxu0 0
        %2247 = vmatpush2.bf16.msra.mxu0 0
        %2248 = vmatprep.subr.bf16.mxu0 0
        %2249 = vmatpush2.bf16.msra.mxu0 0
        %2250 = vmatprep.subr.bf16.mxu0 0
        %2251 = vmatpush2.bf16.msra.mxu0 0
        %2252 = vmatprep.subr.bf16.mxu0 0
        %2253 = vmatpush2.bf16.msra.mxu0 0
        %2254 = vmatprep.mubr.bf16.mxu0 0
        %2255 = vmatmul.mubr.bf16.gmra.mxu0 %v2216
        %v2256 = vpop.f32.mrf.mxu0
        %v2257 = vadd.f32 0.0, %v2256
        %v2258 = vpop.f32.mrf.mxu0
        %v2259 = vpop.f32.mrf.mxu0
        %v2260 = vpop.f32.mrf.mxu0
        %2261 = vdwg.mxu0
        %v2263 = vsel %vm1304, %v2192, 0
        %v2266 = vsel %vm2218, %v1974, 0
        %2268 = vmatprep.subr.bf16.mxu0 0
        %2269 = vmatpush1.bf16.msra.mxu0 0
        %2270 = vmatprep.subr.bf16.mxu0 0
        %2271 = vmatpush1.bf16.msra.mxu0 0
        %2272 = vmatprep.subr.bf16.mxu0 0
        %2273 = vmatpush1.bf16.msra.mxu0 0
        %2274 = vmatprep.subr.bf16.mxu0 0
        %2275 = vmatpush1.bf16.msra.mxu0 0
        %2276 = vmatprep.subr.bf16.mxu0 0
        %2277 = vmatpush1.bf16.msra.mxu0 0
        %2278 = vmatprep.subr.bf16.mxu0 0
        %2279 = vmatpush1.bf16.msra.mxu0 0
        %2280 = vmatprep.subr.bf16.mxu0 0
        %2281 = vmatpush1.bf16.msra.mxu0 0
        %2282 = vmatprep.subr.bf16.mxu0 0
        %2283 = vmatpush1.bf16.msra.mxu0 %v2266
        %2284 = vmatprep.subr.bf16.mxu0 0
        %2285 = vmatpush2.bf16.msra.mxu0 0
        %2286 = vmatprep.subr.bf16.mxu0 0
        %2287 = vmatpush2.bf16.msra.mxu0 0
        %2288 = vmatprep.subr.bf16.mxu0 0
        %2289 = vmatpush2.bf16.msra.mxu0 0
        %2290 = vmatprep.subr.bf16.mxu0 0
        %2291 = vmatpush2.bf16.msra.mxu0 0
        %2292 = vmatprep.subr.bf16.mxu0 0
        %2293 = vmatpush2.bf16.msra.mxu0 0
        %2294 = vmatprep.subr.bf16.mxu0 0
        %2295 = vmatpush2.bf16.msra.mxu0 0
        %2296 = vmatprep.subr.bf16.mxu0 0
        %2297 = vmatpush2.bf16.msra.mxu0 0
        %2298 = vmatprep.subr.bf16.mxu0 0
        %2299 = vmatpush2.bf16.msra.mxu0 0
        %2300 = vmatprep.mubr.bf16.mxu0 0
        %2301 = vmatmul.mubr.bf16.gmra.mxu0 %v2263
        %v2302 = vpop.f32.mrf.mxu0
        %v2303 = vadd.f32 0.0, %v2302
        %v2304 = vpop.f32.mrf.mxu0
        %v2305 = vpop.f32.mrf.mxu0
        %v2306 = vpop.f32.mrf.mxu0
        %2307 = vdwg.mxu0
        %v2309 = vsel %vm1304, %v2195, 0
        %v2312 = vsel %vm2218, %v1975, 0
        %2314 = vmatprep.subr.bf16.mxu0 0
        %2315 = vmatpush1.bf16.msra.mxu0 0
        %2316 = vmatprep.subr.bf16.mxu0 0
        %2317 = vmatpush1.bf16.msra.mxu0 0
        %2318 = vmatprep.subr.bf16.mxu0 0
        %2319 = vmatpush1.bf16.msra.mxu0 0
        %2320 = vmatprep.subr.bf16.mxu0 0
        %2321 = vmatpush1.bf16.msra.mxu0 0
        %2322 = vmatprep.subr.bf16.mxu0 0
        %2323 = vmatpush1.bf16.msra.mxu0 0
        %2324 = vmatprep.subr.bf16.mxu0 0
        %2325 = vmatpush1.bf16.msra.mxu0 0
        %2326 = vmatprep.subr.bf16.mxu0 0
        %2327 = vmatpush1.bf16.msra.mxu0 0
        %2328 = vmatprep.subr.bf16.mxu0 0
        %2329 = vmatpush1.bf16.msra.mxu0 %v2312
        %2330 = vmatprep.subr.bf16.mxu0 0
        %2331 = vmatpush2.bf16.msra.mxu0 0
        %2332 = vmatprep.subr.bf16.mxu0 0
        %2333 = vmatpush2.bf16.msra.mxu0 0
        %2334 = vmatprep.subr.bf16.mxu0 0
        %2335 = vmatpush2.bf16.msra.mxu0 0
        %2336 = vmatprep.subr.bf16.mxu0 0
        %2337 = vmatpush2.bf16.msra.mxu0 0
        %2338 = vmatprep.subr.bf16.mxu0 0
        %2339 = vmatpush2.bf16.msra.mxu0 0
        %2340 = vmatprep.subr.bf16.mxu0 0
        %2341 = vmatpush2.bf16.msra.mxu0 0
        %2342 = vmatprep.subr.bf16.mxu0 0
        %2343 = vmatpush2.bf16.msra.mxu0 0
        %2344 = vmatprep.subr.bf16.mxu0 0
        %2345 = vmatpush2.bf16.msra.mxu0 0
        %2346 = vmatprep.mubr.bf16.mxu0 0
        %2347 = vmatmul.mubr.bf16.gmra.mxu0 %v2309
        %v2348 = vpop.f32.mrf.mxu0
        %v2349 = vadd.f32 0.0, %v2348
        %v2350 = vpop.f32.mrf.mxu0
        %v2351 = vpop.f32.mrf.mxu0
        %v2352 = vpop.f32.mrf.mxu0
        %2353 = vdwg.mxu0
        %v2355 = vsel %vm1304, %v2198, 0
        %v2358 = vsel %vm2218, %v1976, 0
        %2360 = vmatprep.subr.bf16.mxu0 0
        %2361 = vmatpush1.bf16.msra.mxu0 0
        %2362 = vmatprep.subr.bf16.mxu0 0
        %2363 = vmatpush1.bf16.msra.mxu0 0
        %2364 = vmatprep.subr.bf16.mxu0 0
        %2365 = vmatpush1.bf16.msra.mxu0 0
        %2366 = vmatprep.subr.bf16.mxu0 0
        %2367 = vmatpush1.bf16.msra.mxu0 0
        %2368 = vmatprep.subr.bf16.mxu0 0
        %2369 = vmatpush1.bf16.msra.mxu0 0
        %2370 = vmatprep.subr.bf16.mxu0 0
        %2371 = vmatpush1.bf16.msra.mxu0 0
        %2372 = vmatprep.subr.bf16.mxu0 0
        %2373 = vmatpush1.bf16.msra.mxu0 0
        %2374 = vmatprep.subr.bf16.mxu0 0
        %2375 = vmatpush1.bf16.msra.mxu0 %v2358
        %2376 = vmatprep.subr.bf16.mxu0 0
        %2377 = vmatpush2.bf16.msra.mxu0 0
        %2378 = vmatprep.subr.bf16.mxu0 0
        %2379 = vmatpush2.bf16.msra.mxu0 0
        %2380 = vmatprep.subr.bf16.mxu0 0
        %2381 = vmatpush2.bf16.msra.mxu0 0
        %2382 = vmatprep.subr.bf16.mxu0 0
        %2383 = vmatpush2.bf16.msra.mxu0 0
        %2384 = vmatprep.subr.bf16.mxu0 0
        %2385 = vmatpush2.bf16.msra.mxu0 0
        %2386 = vmatprep.subr.bf16.mxu0 0
        %2387 = vmatpush2.bf16.msra.mxu0 0
        %2388 = vmatprep.subr.bf16.mxu0 0
        %2389 = vmatpush2.bf16.msra.mxu0 0
        %2390 = vmatprep.subr.bf16.mxu0 0
        %2391 = vmatpush2.bf16.msra.mxu0 0
        %2392 = vmatprep.mubr.bf16.mxu0 0
        %2393 = vmatmul.mubr.bf16.gmra.mxu0 %v2355
        %v2394 = vpop.f32.mrf.mxu0
        %v2395 = vadd.f32 0.0, %v2394
        %v2396 = vpop.f32.mrf.mxu0
        %v2397 = vpop.f32.mrf.mxu0
        %v2398 = vpop.f32.mrf.mxu0
        %2399 = vdwg.mxu0
        %v2400 = vrcp.pop %v2205
        %v2401 = vrcp.pop %v2208
        %v2402 = vrcp.pop %v2211
        %v2403 = vrcp.pop %v2214
        %v2404 = vmul.f32 %v2257, %v2400
        %v2405 = vmul.f32 %v2303, %v2401
        %v2406 = vmul.f32 %v2349, %v2402
        %v2407 = vmul.f32 %v2395, %v2403
        %2408 = vst.msk [vmem:[#allocation6] sm:$0xff] %vm1304, %v2404
        %2410 = vrot.lane.b32.xlu0 %v2405, 8
        %v2411 = vpop.permute.xlu0 %2410
        %2413 = vst.msk [vmem:[#allocation6] sm:$0xff] %vm1768, %v2411
        %2415 = vrot.lane.b32.xlu0 %v2406, 16
        %v2416 = vpop.permute.xlu0 %2415
        %2418 = vst.msk [vmem:[#allocation6] sm:$0xff] %vm1774, %v2416
        %2420 = vrot.lane.b32.xlu0 %v2407, 24
        %v2421 = vpop.permute.xlu0 %2420
        %2423 = vst.msk [vmem:[#allocation6] sm:$0xff] %vm1780, %v2421
        %v2424 = vld [vmem:[#allocation6] sm:$0xff]
        %v2425 = vpack.c.bf16 %v2424, %v2424
        %v2426 = vld [vmem:[#allocation26] sm:$0xf]
        %v2427 = vld [vmem:[#allocation26 + $0x4] sm:$0xf]
        %v2428 = vld [vmem:[#allocation26 + $0x8] sm:$0xf]
        %v2429 = vld [vmem:[#allocation26 + $0xc] sm:$0xf]
        %v2430 = vld [vmem:[#allocation27] sm:$0x1]
        %v2432 = vlaneseq
        %v2433 = vshrl.u32 %v2432, 7
        %v2434 = vsub.s32 0, %v2433
        %v2435 = vrot.slane %v2430, %v2434
        %v2441 = vunpack.c.l.b16 %v2426
        %v2442 = vunpack.c.l.b16 %v2427
        %v2443 = vunpack.c.l.b16 %v2428
        %v2444 = vunpack.c.l.b16 %v2429
        %v2445 = vpack.c.b16 %v2442, %v2441
        %v2446 = vpack.c.b16 %v2444, %v2443
        %v2450 = vsel %vm1202, %v2425, 0
        %2452 = vmatprep.subr.bf16.mxu0 0
        %2453 = vmatpush1.bf16.msra.mxu0 0
        %2454 = vmatprep.subr.bf16.mxu0 0
        %2455 = vmatpush1.bf16.msra.mxu0 0
        %2456 = vmatprep.subr.bf16.mxu0 0
        %2457 = vmatpush1.bf16.msra.mxu0 0
        %2458 = vmatprep.subr.bf16.mxu0 0
        %2459 = vmatpush1.bf16.msra.mxu0 0
        %2460 = vmatprep.subr.bf16.mxu0 0
        %2461 = vmatpush1.bf16.msra.mxu0 0
        %2462 = vmatprep.subr.bf16.mxu0 0
        %2463 = vmatpush1.bf16.msra.mxu0 0
        %2464 = vmatprep.subr.bf16.mxu0 0
        %2465 = vmatpush1.bf16.msra.mxu0 %v2446
        %2466 = vmatprep.subr.bf16.mxu0 0
        %2467 = vmatpush1.bf16.msra.mxu0 %v2445
        %2468 = vmatprep.subr.bf16.mxu0 0
        %2469 = vmatpush2.bf16.msra.mxu0 0
        %2470 = vmatprep.subr.bf16.mxu0 0
        %2471 = vmatpush2.bf16.msra.mxu0 0
        %2472 = vmatprep.subr.bf16.mxu0 0
        %2473 = vmatpush2.bf16.msra.mxu0 0
        %2474 = vmatprep.subr.bf16.mxu0 0
        %2475 = vmatpush2.bf16.msra.mxu0 0
        %2476 = vmatprep.subr.bf16.mxu0 0
        %2477 = vmatpush2.bf16.msra.mxu0 0
        %2478 = vmatprep.subr.bf16.mxu0 0
        %2479 = vmatpush2.bf16.msra.mxu0 0
        %2480 = vmatprep.subr.bf16.mxu0 0
        %2481 = vmatpush2.bf16.msra.mxu0 0
        %2482 = vmatprep.subr.bf16.mxu0 0
        %2483 = vmatpush2.bf16.msra.mxu0 0
        %2484 = vmatprep.mubr.bf16.mxu0 0
        %2485 = vmatmul.mubr.bf16.gmra.mxu0 %v2450
        %v2486 = vpop.f32.mrf.mxu0
        %v2487 = vadd.f32 %v2435, %v2486
        %v2488 = vpop.f32.mrf.mxu0
        %v2489 = vpop.f32.mrf.mxu0
        %v2490 = vpop.f32.mrf.mxu0
        %2491 = vdwg.mxu0
        %v2492 = vadd.f32 %v2487, %v1850
        %v2493 = vld [vmem:[#allocation12 + $0x2] sm:$0x1]
        %v2494 = vld [vmem:[#allocation14 + $0x2] sm:$0x1]
        %v2495 = vsel %vm1202, %v2492, 0.0
        %2496 = vadd.xlane.f32.xlu0 %v2495
        %v2497 = vpop.xlane.xlu0 %2496
        %v2498 = vmul.f32 %v2497, %v1856
        %v2499 = vsub.f32 %v2492, %v2498
        %v2500 = vmul.f32 %v2499, %v2499
        %v2501 = vsel %vm1202, %v2500, 0.0
        %2502 = vadd.xlane.f32.xlu0 %v2501
        %v2503 = vpop.xlane.xlu0 %2502
        %v2504 = vmul.f32 %v2503, %v1856
        %v2505 = vadd.f32 %v2504, 1e-06
        %v2506 = vrsqrt.pop %v2505
        %v2507 = vmul.f32 %v2499, %v2506
        %v2508 = vlaneseq
        %v2509 = vshrl.u32 %v2508, 7
        %v2510 = vsub.s32 0, %v2509
        %v2511 = vrot.slane %v2493, %v2510
        %v2512 = vmul.f32 %v2507, %v2511
        %v2513 = vlaneseq
        %v2514 = vshrl.u32 %v2513, 7
        %v2515 = vsub.s32 0, %v2514
        %v2516 = vrot.slane %v2494, %v2515
        %v2517 = vadd.f32 %v2512, %v2516
        %v2518 = vpack.c.bf16 %v2517, %v2517
        %v2519 = vld [vmem:[#allocation29] sm:$0xf]
        %v2520 = vld [vmem:[#allocation29 + $0x4] sm:$0xf]
        %v2521 = vld [vmem:[#allocation29 + $0x8] sm:$0xf]
        %v2522 = vld [vmem:[#allocation29 + $0xc] sm:$0xf]
        %v2523 = vld [vmem:[#allocation30] sm:$0x1]
        %v2525 = vlaneseq
        %v2526 = vshrl.u32 %v2525, 7
        %v2527 = vsub.s32 0, %v2526
        %v2528 = vrot.slane %v2523, %v2527
        %v2534 = vunpack.c.l.b16 %v2519
        %v2535 = vunpack.c.l.b16 %v2520
        %v2536 = vunpack.c.l.b16 %v2521
        %v2537 = vunpack.c.l.b16 %v2522
        %v2538 = vpack.c.b16 %v2535, %v2534
        %v2539 = vpack.c.b16 %v2537, %v2536
        %v2543 = vsel %vm1202, %v2518, 0
        %2545 = vmatprep.subr.bf16.mxu0 0
        %2546 = vmatpush1.bf16.msra.mxu0 0
        %2547 = vmatprep.subr.bf16.mxu0 0
        %2548 = vmatpush1.bf16.msra.mxu0 0
        %2549 = vmatprep.subr.bf16.mxu0 0
        %2550 = vmatpush1.bf16.msra.mxu0 0
        %2551 = vmatprep.subr.bf16.mxu0 0
        %2552 = vmatpush1.bf16.msra.mxu0 0
        %2553 = vmatprep.subr.bf16.mxu0 0
        %2554 = vmatpush1.bf16.msra.mxu0 0
        %2555 = vmatprep.subr.bf16.mxu0 0
        %2556 = vmatpush1.bf16.msra.mxu0 0
        %2557 = vmatprep.subr.bf16.mxu0 0
        %2558 = vmatpush1.bf16.msra.mxu0 %v2539
        %2559 = vmatprep.subr.bf16.mxu0 0
        %2560 = vmatpush1.bf16.msra.mxu0 %v2538
        %2561 = vmatprep.subr.bf16.mxu0 0
        %2562 = vmatpush2.bf16.msra.mxu0 0
        %2563 = vmatprep.subr.bf16.mxu0 0
        %2564 = vmatpush2.bf16.msra.mxu0 0
        %2565 = vmatprep.subr.bf16.mxu0 0
        %2566 = vmatpush2.bf16.msra.mxu0 0
        %2567 = vmatprep.subr.bf16.mxu0 0
        %2568 = vmatpush2.bf16.msra.mxu0 0
        %2569 = vmatprep.subr.bf16.mxu0 0
        %2570 = vmatpush2.bf16.msra.mxu0 0
        %2571 = vmatprep.subr.bf16.mxu0 0
        %2572 = vmatpush2.bf16.msra.mxu0 0
        %2573 = vmatprep.subr.bf16.mxu0 0
        %2574 = vmatpush2.bf16.msra.mxu0 0
        %2575 = vmatprep.subr.bf16.mxu0 0
        %2576 = vmatpush2.bf16.msra.mxu0 0
        %2577 = vmatprep.mubr.bf16.mxu0 0
        %2578 = vmatmul.mubr.bf16.gmra.mxu0 %v2543
        %v2579 = vpop.f32.mrf.mxu0
        %v2580 = vadd.f32 %v2528, %v2579
        %v2581 = vpop.f32.mrf.mxu0
        %v2582 = vpop.f32.mrf.mxu0
        %v2583 = vpop.f32.mrf.mxu0
        %2584 = vdwg.mxu0
        %v2585 = vmax.f32 %v2580, 0.0
        %v2586 = vpack.c.bf16 %v2585, %v2585
        %v2587 = vld [vmem:[%s19] sm:$0xf]
        %v2588 = vld [vmem:[%s19 + $0x4] sm:$0xf]
        %v2589 = vld [vmem:[%s19 + $0x8] sm:$0xf]
        %v2590 = vld [vmem:[%s19 + $0xc] sm:$0xf]
        %v2591 = vld [vmem:[%s19 + $0x10] sm:$0xf]
        %v2592 = vld [vmem:[%s19 + $0x14] sm:$0xf]
        %v2593 = vld [vmem:[%s19 + $0x18] sm:$0xf]
        %v2594 = vld [vmem:[%s19 + $0x1c] sm:$0xf]
        %v2595 = vld [vmem:[%s20] sm:$0x1]
        %v2597 = vlaneseq
        %v2598 = vshrl.u32 %v2597, 7
        %v2599 = vsub.s32 0, %v2598
        %v2600 = vrot.slane %v2595, %v2599
        %v2610 = vunpack.c.l.b16 %v2587
        %v2611 = vunpack.c.l.b16 %v2588
        %v2612 = vunpack.c.l.b16 %v2589
        %v2613 = vunpack.c.l.b16 %v2590
        %v2614 = vunpack.c.l.b16 %v2591
        %v2615 = vunpack.c.l.b16 %v2592
        %v2616 = vunpack.c.l.b16 %v2593
        %v2617 = vunpack.c.l.b16 %v2594
        %v2618 = vpack.c.b16 %v2611, %v2610
        %v2619 = vpack.c.b16 %v2613, %v2612
        %v2620 = vpack.c.b16 %v2615, %v2614
        %v2621 = vpack.c.b16 %v2617, %v2616
        %vm2626 = vcmask 523264
        %v2628 = vsel %vm2626, %v2586, 0
        %2630 = vmatprep.subr.bf16.mxu0 0
        %2631 = vmatpush1.bf16.msra.mxu0 0
        %2632 = vmatprep.subr.bf16.mxu0 0
        %2633 = vmatpush1.bf16.msra.mxu0 0
        %2634 = vmatprep.subr.bf16.mxu0 0
        %2635 = vmatpush1.bf16.msra.mxu0 0
        %2636 = vmatprep.subr.bf16.mxu0 0
        %2637 = vmatpush1.bf16.msra.mxu0 0
        %2638 = vmatprep.subr.bf16.mxu0 0
        %2639 = vmatpush1.bf16.msra.mxu0 %v2621
        %2640 = vmatprep.subr.bf16.mxu0 0
        %2641 = vmatpush1.bf16.msra.mxu0 %v2620
        %2642 = vmatprep.subr.bf16.mxu0 0
        %2643 = vmatpush1.bf16.msra.mxu0 %v2619
        %2644 = vmatprep.subr.bf16.mxu0 0
        %2645 = vmatpush1.bf16.msra.mxu0 %v2618
        %2646 = vmatprep.subr.bf16.mxu0 0
        %2647 = vmatpush2.bf16.msra.mxu0 0
        %2648 = vmatprep.subr.bf16.mxu0 0
        %2649 = vmatpush2.bf16.msra.mxu0 0
        %2650 = vmatprep.subr.bf16.mxu0 0
        %2651 = vmatpush2.bf16.msra.mxu0 0
        %2652 = vmatprep.subr.bf16.mxu0 0
        %2653 = vmatpush2.bf16.msra.mxu0 0
        %2654 = vmatprep.subr.bf16.mxu0 0
        %2655 = vmatpush2.bf16.msra.mxu0 0
        %2656 = vmatprep.subr.bf16.mxu0 0
        %2657 = vmatpush2.bf16.msra.mxu0 0
        %2658 = vmatprep.subr.bf16.mxu0 0
        %2659 = vmatpush2.bf16.msra.mxu0 0
        %2660 = vmatprep.subr.bf16.mxu0 0
        %2661 = vmatpush2.bf16.msra.mxu0 0
        %2662 = vmatprep.mubr.bf16.mxu0 0
        %2663 = vmatmul.mubr.bf16.gmra.mxu0 %v2628
        %v2664 = vpop.f32.mrf.mxu0
        %v2665 = vadd.f32 %v2600, %v2664
        %v2666 = vpop.f32.mrf.mxu0
        %v2667 = vpop.f32.mrf.mxu0
        %v2668 = vpop.f32.mrf.mxu0
        %2669 = vdwg.mxu0
        %v2670 = vadd.f32 %v2665, %v2492
        %2671 = vst.msk [vmem:[%s849] sm:$0xff] %vm1202, %v2670
        %s2672 = sand.u32 %s501, 1
        %s2673 = scalar_lea.sflag [#allocation11], %s2672
        %s2674 = sand.u32 %s501, 1
        %s2675 = smul.addr %s2674, 8
        %s2676 = scalar_lea.vmem [#allocation32], %s2675
        // Predicated region
        $region161: #{tpu_custom_call.1} parent=99 // pred_check
          %p2677 = pneg %p511
        $region162: #{tpu_custom_call.1} parent=99 // pred_check_branch
          %2679 = sbr.rel (%p2677) target = $region164
        $region163: #{tpu_custom_call.1} parent=99 // pred_region
          %s2681 = ssub.s32 128, 128
          %2682 = vsyncadd %s2673, %s2681
          %s2683 = smul.addr %s53, 2
          %s2684 = sadd.s32 %s54, %s2683
          %s2685 = smul.addr %s2684, 128
          %s2686 = scalar_lea.hbm %s21, %s2685
          %s2688 = sshll.u32 %s2676, 4
          %s2689 = int_to_ptr.vmem [resolvable:$true] %s2688
          %2691 = dma.vmem_to_hbm [thread:$0]  %s2689, 128, %s2686, %s2673
        $region164: #{tpu_custom_call.1} parent=99 // pred_fallthru
          _
      $region100: #{tpu_custom_call.1} parent=5 // pred_fallthru
        _
      %p2692 = scmp.le.s32.totalorder 2, %s44
      // Predicated region
      $region165: #{tpu_custom_call.1} parent=5 // pred_check
        %p2693 = pneg %p2692
      $region166: #{tpu_custom_call.1} parent=5 // pred_check_branch
        %2695 = sbr.rel (%p2693) target = $region168
      $region167: #{tpu_custom_call.1} parent=5 // pred_region
        %s2696 = ssub.s32 %s44, 2
        // Predicated region
        $region169: #{tpu_custom_call.1} parent=167 // pred_check
          %p2697 = pneg %p517
        $region170: #{tpu_custom_call.1} parent=167 // pred_check_branch
          %2699 = sbr.rel (%p2697) target = $region172
        $region171: #{tpu_custom_call.1} parent=167 // pred_region
          %s2700 = sand.u32 %s502, 1
          %s2701 = scalar_lea.sflag [#allocation11], %s2700
          %s2702 = sand.u32 %s502, 1
          %s2703 = smul.addr %s2702, 8
          %s2704 = scalar_lea.vmem [#allocation32], %s2703
          %2705 = dma.done %s2701, 128
        $region172: #{tpu_custom_call.1} parent=167 // pred_fallthru
          _
      $region168: #{tpu_custom_call.1} parent=5 // pred_fallthru
        _
    $region6: #{tpu_custom_call.1} parent=1 // loop_footer
      %s48 = sadd.s32 1, %s44
    $region7: #{tpu_custom_call.1} parent=1 // loop_footer_branch
      %43 = sbr.rel target = $region3
    $region8: #{tpu_custom_call.1} parent=1 // loop_exit
      _
    %2706 = vsyncpa [#allocation10], 1
    %s2707 = scalar_lea.sflag [#allocation10], 1
    %2708 = vsyncpa %s2707, 1
    %2709 = vsyncpa [#allocation13], 1
    %2710 = vsyncpa [#allocation16], 1
    %2711 = vsyncpa [#allocation19], 1
    %2712 = vsyncpa [#allocation22], 1
    %2713 = vsyncpa [#allocation25], 1
    %2714 = vsyncpa [#allocation28], 1
    %2715 = vsyncpa [#allocation31], 1
    %2716 = vsyncpa [#allocation11], 1
    %s2717 = scalar_lea.sflag [#allocation11], 1
    %2718 = vsyncpa %s2717, 1

</llo_original>
